<compile_context>
chip_gen: v7x
topology: tpu7x:2x2x1
jax: 0.10.0
libtpu: 0.0.40
codegen_flags: <defaults>
</compile_context>

<pallas_src>
import functools
import math

import jax
import jax.numpy as jnp
from jax.experimental import pallas as pl
from jax.experimental.pallas import tpu as pltpu


# --------------------------------------------------------------------------
# Pallas kernel: full VAE forward for Bt batch elements per grid step.
# --------------------------------------------------------------------------
def _vae_kernel(x_ref, eps_ref,
                m_ref, mt_ref, s_ref, st_ref, t_ref,
                ewb1, ewb2, ewb3, ewb4,
                fcwb, dfw_ref, dfb_ref,
                dwb1, dwb2, dwb3, dwb4,
                recon_ref, ml_ref,
                *, L, lc, ld, Bt):
    N = Bt * L

    M = m_ref[...]            # (N, L*lc)  one-hot: column group t == (row mod L)
    Mt = mt_ref[...]          # (N, L)     one-hot over t
    S = s_ref[...]            # (Bt, N)    sample-membership selection
    ST = st_ref[...]          # (N, Bt)
    Tm = t_ref[...]           # (L*lc, lc) column-group collapse (tiled identity)

    # Boundary masks, hoisted once and reused by all 8 conv layers.
    left_ok = 1.0 - Mt[:, 0:1]          # row has a t-1 neighbour inside its sample
    right_ok = 1.0 - Mt[:, L - 1:L]     # row has a t+1 neighbour inside its sample

    def relu(v):
        return jnp.maximum(v, 0.0)

    def conv3(h, wb_ref):
        # Fused 3-tap "same" conv: one (N, 3*Ci) @ (3*Ci, Co) matmul.
        ci = h.shape[1]
        hl = pltpu.roll(h, 1, axis=0) * left_ok        # h[t-1], zeroed at t == 0
        hr = pltpu.roll(h, N - 1, axis=0) * right_ok   # h[t+1], zeroed at t == L-1
        hcat = jnp.concatenate([hl, h, hr], axis=1)    # (N, 3*Ci)
        w = wb_ref[0:3 * ci, :]
        b = wb_ref[3 * ci:3 * ci + 1, :]
        return jnp.dot(hcat, w, preferred_element_type=jnp.float32) + b

    # ------------------------------ encoder ------------------------------
    h = x_ref[...]                                     # (N, 1)
    h = relu(conv3(h, ewb1))                           # (N, 36)
    h = relu(conv3(h, ewb2))
    h = relu(conv3(h, ewb3))
    h = relu(conv3(h, ewb4))                           # (N, lc)

    # Fused fc_mean + fc_logvar (single packed weight), no per-t loop:
    # (N,lc) -> (Bt, L*lc) via a constant selection matmul, then one dot.
    hE = jnp.concatenate([h] * L, axis=1) * M          # (N, L*lc)
    h2 = jnp.dot(S, hE, preferred_element_type=jnp.float32)          # (Bt, L*lc)
    fw = fcwb[0:L * lc, :]
    fb = fcwb[L * lc:L * lc + 1, :]
    ml = jnp.dot(h2, fw, preferred_element_type=jnp.float32) + fb    # (Bt, 2*ld)
    ml_ref[...] = ml                                   # packed [mean | logvar]

    # -------------------------- reparameterize ---------------------------
    mean = ml[:, 0:ld]
    logvar = ml[:, ld:2 * ld]
    z = mean + eps_ref[...] * jnp.exp(0.5 * logvar)    # (Bt, ld)

    # ------------------------------ decoder ------------------------------
    # fc: replicate z per (sample,time) row, one big dot, collapse column groups.
    zr = jnp.dot(ST, z, preferred_element_type=jnp.float32)              # (N, ld)
    dall = jnp.dot(zr, dfw_ref[...], preferred_element_type=jnp.float32)  # (N, L*lc)
    d = jnp.dot(dall * M, Tm, preferred_element_type=jnp.float32) + dfb_ref[...]
    d = relu(d)                                        # (N, lc)
    d = relu(conv3(d, dwb1))                           # ConvTranspose1d == flipped conv
    d = relu(conv3(d, dwb2))
    d = relu(conv3(d, dwb3))
    d = relu(conv3(d, dwb4))                           # (N, 1)  (final F.relu applied)

    # Lane-dense output: scatter (N,1) back to (Bt, L) with one selection matmul.
    recon_ref[...] = jnp.dot(S, d * Mt, preferred_element_type=jnp.float32)


# --------------------------------------------------------------------------
# Wrapper: layout conversion, batch padding + pallas_call
# --------------------------------------------------------------------------
def vae_forward(x_ncl, eps, params, *, L, lc, ld, Bt):
    B, cin, Lx = x_ncl.shape
    assert cin == 1 and Lx == L
    nb = (B + Bt - 1) // Bt
    B_pad = nb * Bt

    # channels-last rows (b*L + t, c) and zero-pad batch to a multiple of Bt
    x_rows = jnp.transpose(x_ncl, (0, 2, 1)).reshape(B * L, 1).astype(jnp.float32)
    x_rows = jnp.pad(x_rows, ((0, (B_pad - B) * L), (0, 0)))
    eps_p = jnp.pad(eps.astype(jnp.float32), ((0, B_pad - B), (0, 0)))

    kern = functools.partial(_vae_kernel, L=L, lc=lc, ld=ld, Bt=Bt)

    def const_spec(a):
        nd = a.ndim
        return pl.BlockSpec(a.shape, lambda b, _nd=nd: (0,) * _nd)

    in_specs = [pl.BlockSpec((Bt * L, 1), lambda b: (b, 0)),
                pl.BlockSpec((Bt, ld), lambda b: (b, 0))] + \
               [const_spec(p) for p in params]
    out_specs = (pl.BlockSpec((Bt, L), lambda b: (b, 0)),
                 pl.BlockSpec((Bt, 2 * ld), lambda b: (b, 0)))
    out_shape = (jax.ShapeDtypeStruct((B_pad, L), jnp.float32),
                 jax.ShapeDtypeStruct((B_pad, 2 * ld), jnp.float32))

    recon2, ml = pl.pallas_call(
        kern,
        grid=(nb,),
        in_specs=in_specs,
        out_specs=out_specs,
        out_shape=out_shape,
        compiler_params=pltpu.CompilerParams(dimension_semantics=("parallel",)),
    )(x_rows, eps_p, *params)

    recon = recon2[:B][:, None, :]          # back to PyTorch (B, 1, L)
    mean = ml[:B, :ld]
    logvar = ml[:B, ld:]
    return recon, mean, logvar


# --------------------------------------------------------------------------
# Deterministic parameter init (PyTorch layouts) + kernel-layout transforms
# --------------------------------------------------------------------------
def init_pt_params(key, latent_dim, lc, L):
    keys = iter(jax.random.split(key, 32))

    def unif(shape, bound):
        return jax.random.uniform(next(keys), shape, jnp.float32, -bound, bound)

    def linear(cin, cout):
        b = 1.0 / math.sqrt(cin)
        return unif((cout, cin), b), unif((cout,), b)

    def conv(cin, cout, k=3):
        b = 1.0 / math.sqrt(cin * k)
        return unif((cout, cin, k), b), unif((cout,), b)

    def convT(cin, cout, k=3):
        b = 1.0 / math.sqrt(cin * k)
        return unif((cin, cout, k), b), unif((cout,), b)

    return dict(
        enc1=conv(1, 36), enc2=conv(36, 36), enc3=conv(36, 36), enc4=conv(36, lc),
        fc_mean=linear(lc * L, latent_dim), fc_logvar=linear(lc * L, latent_dim),
        dec_fc=linear(latent_dim, lc * L),
        dec1=convT(lc, 36), dec2=convT(36, 36), dec3=convT(36, 36), dec4=convT(36, 1),
    )


def prepare_kernel_params(pt, ld, lc, L, Bt):
    N = Bt * L

    def conv_pack(W, b):      # Conv1d (Co,Ci,3) -> packed [(3*Ci,Co); bias row]
        ci, co = W.shape[1], W.shape[0]
        Wk = jnp.transpose(W, (2, 1, 0)).reshape(3 * ci, co)
        return jnp.concatenate([Wk, b.reshape(1, co)], axis=0)

    def convT_pack(W, b):     # ConvTranspose1d (Ci,Co,3) -> flipped, packed
        ci, co = W.shape[0], W.shape[1]
        Wk = jnp.transpose(W[:, :, ::-1], (2, 0, 1)).reshape(3 * ci, co)
        return jnp.concatenate([Wk, b.reshape(1, co)], axis=0)

    def enc_fc_w(W):          # (ld, lc*L) -> (L*lc, ld) with row t*lc+c = W[:, c*L+t]
        return W.reshape(ld, lc, L).transpose(2, 1, 0).reshape(L * lc, ld)

    # fused fc_mean / fc_logvar: weight (L*lc, 2*ld) + bias row -> (L*lc+1, 2*ld)
    fw = jnp.concatenate([enc_fc_w(pt['fc_mean'][0]),
                          enc_fc_w(pt['fc_logvar'][0])], axis=1)
    fb = jnp.concatenate([pt['fc_mean'][1], pt['fc_logvar'][1]]).reshape(1, 2 * ld)
    fcwb = jnp.concatenate([fw, fb], axis=0)

    # decoder fc: (lc*L, ld) -> (ld, L*lc) with column t*lc+c = W[c*L+t, :]
    Wd, bd = pt['dec_fc']
    dfw = Wd.reshape(lc, L, ld).transpose(1, 0, 2).reshape(L * lc, ld).T
    dfb = jnp.tile(bd.reshape(lc, L).T, (Bt, 1))       # (N, lc), row b*L+t -> bias[c*L+t]

    # constant selection / mask matrices (host precomputed, f32 0/1)
    rows = jnp.arange(N)
    tmod = rows % L
    samp = rows // L
    M = (tmod[:, None] == (jnp.arange(L * lc)[None, :] // lc)).astype(jnp.float32)
    Mt = (tmod[:, None] == jnp.arange(L)[None, :]).astype(jnp.float32)
    S = (samp[None, :] == jnp.arange(Bt)[:, None]).astype(jnp.float32)
    ST = S.T
    T = jnp.tile(jnp.eye(lc, dtype=jnp.float32), (L, 1))

    return [M, Mt, S, ST, T,
            conv_pack(*pt['enc1']), conv_pack(*pt['enc2']),
            conv_pack(*pt['enc3']), conv_pack(*pt['enc4']),
            fcwb, dfw, dfb,
            convT_pack(*pt['dec1']), convT_pack(*pt['dec2']),
            convT_pack(*pt['dec3']), convT_pack(*pt['dec4'])]


# --------------------------------------------------------------------------
# Pure-JAX reference (mirrors the PyTorch module exactly) for a sanity check
# --------------------------------------------------------------------------
def ref_forward(x_ncl, eps, pt, latent_dim, lc, L):
    relu = jax.nn.relu
    B = x_ncl.shape[0]
    hp = jax.lax.Precision.HIGHEST

    def conv1d(x, W, b):          # x (B,Ci,L), W (Co,Ci,3), pad=1
        xp = jnp.pad(x, ((0, 0), (0, 0), (1, 1)))
        out = b[None, :, None] * jnp.ones((B, W.shape[0], L), jnp.float32)
        for k in range(3):
            out = out + jnp.einsum('bil,oi->bol', xp[:, :, k:k + L], W[:, :, k],
                                   precision=hp)
        return out

    def convT1d(x, W, b):         # x (B,Ci,L), W (Ci,Co,3), stride=1, pad=1
        xp = jnp.pad(x, ((0, 0), (0, 0), (1, 1)))
        out = b[None, :, None] * jnp.ones((B, W.shape[1], L), jnp.float32)
        for k in range(3):
            out = out + jnp.einsum('bil,io->bol', xp[:, :, 2 - k:2 - k + L],
                                   W[:, :, k], precision=hp)
        return out

    h = x_ncl
    h = relu(conv1d(h, *pt['enc1']))
    h = relu(conv1d(h, *pt['enc2']))
    h = relu(conv1d(h, *pt['enc3']))
    h = relu(conv1d(h, *pt['enc4']))
    flat = h.reshape(B, -1)
    mean = jnp.dot(flat, pt['fc_mean'][0].T, precision=hp) + pt['fc_mean'][1]
    logvar = jnp.dot(flat, pt['fc_logvar'][0].T, precision=hp) + pt['fc_logvar'][1]
    z = mean + eps * jnp.exp(0.5 * logvar)
    xd = (jnp.dot(z, pt['dec_fc'][0].T, precision=hp) + pt['dec_fc'][1]).reshape(B, lc, L)
    xd = relu(xd)
    xd = relu(convT1d(xd, *pt['dec1']))
    xd = relu(convT1d(xd, *pt['dec2']))
    xd = relu(convT1d(xd, *pt['dec3']))
    xd = convT1d(xd, *pt['dec4'])
    return relu(xd), mean, logvar


# --------------------------------------------------------------------------
if __name__ == "__main__":
    B, latent_dim, latent_channel, seq_length = 2, 16, 4, 8
    Bt = 16   # samples per grid step -> Bt*L = 128 sublane rows

    key = jax.random.PRNGKey(0)
    kx, keps, kp = jax.random.split(key, 3)
    x = jax.random.normal(kx, (B, 1, seq_length), jnp.float32)      # PyTorch NCL
    # torch.randn_like noise for reparameterize, drawn deterministically host-side
    eps = jax.random.normal(keps, (B, latent_dim), jnp.float32)

    pt_params = init_pt_params(kp, latent_dim, latent_channel, seq_length)
    kparams = prepare_kernel_params(pt_params, latent_dim, latent_channel,
                                    seq_length, Bt)

    recon, mean, logvar = vae_forward(x, eps, kparams,
                                      L=seq_length, lc=latent_channel,
                                      ld=latent_dim, Bt=Bt)
    jax.block_until_ready((recon, mean, logvar))

    assert recon.shape == (B, 1, seq_length)
    assert mean.shape == (B, latent_dim) and logvar.shape == (B, latent_dim)

    r_ref, m_ref, lv_ref = ref_forward(x, eps, pt_params, latent_dim,
                                       latent_channel, seq_length)
    assert float(jnp.max(jnp.abs(recon - r_ref))) < 1e-3
    assert float(jnp.max(jnp.abs(mean - m_ref))) < 1e-3
    assert float(jnp.max(jnp.abs(logvar - lv_ref))) < 1e-3

    print("KERNEL_OK")
</pallas_src>

<mosaic_0001>
module attributes {stable_mosaic.version = 11 : i64} {
  func.func @_vae_kernel(%arg0: i32, %arg1: memref<128x1xf32, #tpu.memory_space<vmem>>, %arg2: memref<16x16xf32, #tpu.memory_space<vmem>>, %arg3: memref<128x32xf32, #tpu.memory_space<vmem>>, %arg4: memref<128x8xf32, #tpu.memory_space<vmem>>, %arg5: memref<16x128xf32, #tpu.memory_space<vmem>>, %arg6: memref<128x16xf32, #tpu.memory_space<vmem>>, %arg7: memref<32x4xf32, #tpu.memory_space<vmem>>, %arg8: memref<4x36xf32, #tpu.memory_space<vmem>>, %arg9: memref<109x36xf32, #tpu.memory_space<vmem>>, %arg10: memref<109x36xf32, #tpu.memory_space<vmem>>, %arg11: memref<109x4xf32, #tpu.memory_space<vmem>>, %arg12: memref<33x32xf32, #tpu.memory_space<vmem>>, %arg13: memref<16x32xf32, #tpu.memory_space<vmem>>, %arg14: memref<128x4xf32, #tpu.memory_space<vmem>>, %arg15: memref<13x36xf32, #tpu.memory_space<vmem>>, %arg16: memref<109x36xf32, #tpu.memory_space<vmem>>, %arg17: memref<109x36xf32, #tpu.memory_space<vmem>>, %arg18: memref<109x1xf32, #tpu.memory_space<vmem>>, %arg19: memref<16x8xf32, #tpu.memory_space<vmem>>, %arg20: memref<16x32xf32, #tpu.memory_space<vmem>>) attributes {dimension_semantics = [#tpu.dimension_semantics<parallel>], iteration_bounds = array<i64: 1>, scalar_prefetch = 0 : i64, scratch_operands = 0 : i64, tpu.core_type = #tpu.core_type<tc>, window_params = [{transform_indices = @transform_0, window_bounds = array<i64: 128, 1>}, {transform_indices = @transform_1, window_bounds = array<i64: 16, 16>}, {pipeline_mode = #tpu.pipeline_mode<synchronous>, transform_indices = @transform_2, window_bounds = array<i64: 128, 32>}, {pipeline_mode = #tpu.pipeline_mode<synchronous>, transform_indices = @transform_3, window_bounds = array<i64: 128, 8>}, {pipeline_mode = #tpu.pipeline_mode<synchronous>, transform_indices = @transform_4, window_bounds = array<i64: 16, 128>}, {pipeline_mode = #tpu.pipeline_mode<synchronous>, transform_indices = @transform_5, window_bounds = array<i64: 128, 16>}, {pipeline_mode = #tpu.pipeline_mode<synchronous>, transform_indices = @transform_6, window_bounds = array<i64: 32, 4>}, {pipeline_mode = #tpu.pipeline_mode<synchronous>, transform_indices = @transform_7, window_bounds = array<i64: 4, 36>}, {pipeline_mode = #tpu.pipeline_mode<synchronous>, transform_indices = @transform_8, window_bounds = array<i64: 109, 36>}, {pipeline_mode = #tpu.pipeline_mode<synchronous>, transform_indices = @transform_9, window_bounds = array<i64: 109, 36>}, {pipeline_mode = #tpu.pipeline_mode<synchronous>, transform_indices = @transform_10, window_bounds = array<i64: 109, 4>}, {pipeline_mode = #tpu.pipeline_mode<synchronous>, transform_indices = @transform_11, window_bounds = array<i64: 33, 32>}, {pipeline_mode = #tpu.pipeline_mode<synchronous>, transform_indices = @transform_12, window_bounds = array<i64: 16, 32>}, {pipeline_mode = #tpu.pipeline_mode<synchronous>, transform_indices = @transform_13, window_bounds = array<i64: 128, 4>}, {pipeline_mode = #tpu.pipeline_mode<synchronous>, transform_indices = @transform_14, window_bounds = array<i64: 13, 36>}, {pipeline_mode = #tpu.pipeline_mode<synchronous>, transform_indices = @transform_15, window_bounds = array<i64: 109, 36>}, {pipeline_mode = #tpu.pipeline_mode<synchronous>, transform_indices = @transform_16, window_bounds = array<i64: 109, 36>}, {pipeline_mode = #tpu.pipeline_mode<synchronous>, transform_indices = @transform_17, window_bounds = array<i64: 109, 1>}, {transform_indices = @transform_18, window_bounds = array<i64: 16, 8>}, {transform_indices = @transform_19, window_bounds = array<i64: 16, 32>}]} {
    %c0 = arith.constant 0 : index
    %c0_0 = arith.constant 0 : index
    %0 = vector.load %arg3[%c0, %c0_0] : memref<128x32xf32, #tpu.memory_space<vmem>>, vector<128x32xf32>
    %c0_1 = arith.constant 0 : index
    %c0_2 = arith.constant 0 : index
    %1 = vector.load %arg4[%c0_1, %c0_2] : memref<128x8xf32, #tpu.memory_space<vmem>>, vector<128x8xf32>
    %c0_3 = arith.constant 0 : index
    %c0_4 = arith.constant 0 : index
    %2 = vector.load %arg5[%c0_3, %c0_4] : memref<16x128xf32, #tpu.memory_space<vmem>>, vector<16x128xf32>
    %c0_5 = arith.constant 0 : index
    %c0_6 = arith.constant 0 : index
    %3 = vector.load %arg6[%c0_5, %c0_6] : memref<128x16xf32, #tpu.memory_space<vmem>>, vector<128x16xf32>
    %c0_7 = arith.constant 0 : index
    %c0_8 = arith.constant 0 : index
    %4 = vector.load %arg7[%c0_7, %c0_8] : memref<32x4xf32, #tpu.memory_space<vmem>>, vector<32x4xf32>
    %5 = vector.extract_strided_slice %1 {offsets = [0, 0], sizes = [128, 1], strides = [1, 1]} : vector<128x8xf32> to vector<128x1xf32>
    %cst = arith.constant 1.000000e+00 : f32
    %6 = vector.broadcast %cst : f32 to vector<128x1xf32>
    %7 = arith.subf %6, %5 : vector<128x1xf32>
    %8 = vector.extract_strided_slice %1 {offsets = [0, 7], sizes = [128, 1], strides = [1, 1]} : vector<128x8xf32> to vector<128x1xf32>
    %cst_9 = arith.constant 1.000000e+00 : f32
    %9 = vector.broadcast %cst_9 : f32 to vector<128x1xf32>
    %10 = arith.subf %9, %8 : vector<128x1xf32>
    %c0_10 = arith.constant 0 : index
    %c0_11 = arith.constant 0 : index
    %11 = vector.load %arg1[%c0_10, %c0_11] : memref<128x1xf32, #tpu.memory_space<vmem>>, vector<128x1xf32>
    %c1_i32 = arith.constant 1 : i32
    %12 = tpu.dynamic_rotate %11 by %c1_i32 dim 0 : vector<128x1xf32>, i32 -> vector<128x1xf32>
    %13 = arith.mulf %12, %7 : vector<128x1xf32>
    %c127_i32 = arith.constant 127 : i32
    %14 = tpu.dynamic_rotate %11 by %c127_i32 dim 0 : vector<128x1xf32>, i32 -> vector<128x1xf32>
    %15 = arith.mulf %14, %10 : vector<128x1xf32>
    %16 = tpu.concatenate %13, %11, %15 in 1 : vector<128x1xf32>, vector<128x1xf32>, vector<128x1xf32> -> vector<128x3xf32>
    %c0_12 = arith.constant 0 : index
    %c0_13 = arith.constant 0 : index
    %17 = vector.load %arg8[%c0_12, %c0_13] : memref<4x36xf32, #tpu.memory_space<vmem>>, vector<3x36xf32>
    %c3 = arith.constant 3 : index
    %c0_14 = arith.constant 0 : index
    %18 = vector.load %arg8[%c3, %c0_14] : memref<4x36xf32, #tpu.memory_space<vmem>>, vector<1x36xf32>
    %cst_15 = arith.constant dense<0.000000e+00> : vector<128x36xf32>
    %19 = tpu.matmul %16, %17, %cst_15 {dimension_numbers = #tpu.dot_dimension_numbers<[1], [0], [0], [1], [0, 0, 1, 1], [], []>} : vector<128x3xf32>, vector<3x36xf32>, vector<128x36xf32> -> vector<128x36xf32>
    %20 = vector.broadcast %18 : vector<1x36xf32> to vector<128x36xf32>
    %21 = arith.addf %19, %20 : vector<128x36xf32>
    %cst_16 = arith.constant 0.000000e+00 : f32
    %22 = vector.broadcast %cst_16 : f32 to vector<128x36xf32>
    %23 = arith.maximumf %21, %22 : vector<128x36xf32>
    %c1_i32_17 = arith.constant 1 : i32
    %24 = tpu.dynamic_rotate %23 by %c1_i32_17 dim 0 : vector<128x36xf32>, i32 -> vector<128x36xf32>
    %25 = vector.broadcast %7 : vector<128x1xf32> to vector<128x36xf32>
    %26 = arith.mulf %24, %25 : vector<128x36xf32>
    %c127_i32_18 = arith.constant 127 : i32
    %27 = tpu.dynamic_rotate %23 by %c127_i32_18 dim 0 : vector<128x36xf32>, i32 -> vector<128x36xf32>
    %28 = vector.broadcast %10 : vector<128x1xf32> to vector<128x36xf32>
    %29 = arith.mulf %27, %28 : vector<128x36xf32>
    %30 = tpu.concatenate %26, %23, %29 in 1 : vector<128x36xf32>, vector<128x36xf32>, vector<128x36xf32> -> vector<128x108xf32>
    %c0_19 = arith.constant 0 : index
    %c0_20 = arith.constant 0 : index
    %31 = vector.load %arg9[%c0_19, %c0_20] : memref<109x36xf32, #tpu.memory_space<vmem>>, vector<108x36xf32>
    %c108 = arith.constant 108 : index
    %c0_21 = arith.constant 0 : index
    %32 = vector.load %arg9[%c108, %c0_21] : memref<109x36xf32, #tpu.memory_space<vmem>>, vector<1x36xf32>
    %cst_22 = arith.constant dense<0.000000e+00> : vector<128x36xf32>
    %33 = tpu.matmul %30, %31, %cst_22 {dimension_numbers = #tpu.dot_dimension_numbers<[1], [0], [0], [1], [0, 0, 1, 1], [], []>} : vector<128x108xf32>, vector<108x36xf32>, vector<128x36xf32> -> vector<128x36xf32>
    %34 = vector.broadcast %32 : vector<1x36xf32> to vector<128x36xf32>
    %35 = arith.addf %33, %34 : vector<128x36xf32>
    %cst_23 = arith.constant 0.000000e+00 : f32
    %36 = vector.broadcast %cst_23 : f32 to vector<128x36xf32>
    %37 = arith.maximumf %35, %36 : vector<128x36xf32>
    %c1_i32_24 = arith.constant 1 : i32
    %38 = tpu.dynamic_rotate %37 by %c1_i32_24 dim 0 : vector<128x36xf32>, i32 -> vector<128x36xf32>
    %39 = vector.broadcast %7 : vector<128x1xf32> to vector<128x36xf32>
    %40 = arith.mulf %38, %39 : vector<128x36xf32>
    %c127_i32_25 = arith.constant 127 : i32
    %41 = tpu.dynamic_rotate %37 by %c127_i32_25 dim 0 : vector<128x36xf32>, i32 -> vector<128x36xf32>
    %42 = vector.broadcast %10 : vector<128x1xf32> to vector<128x36xf32>
    %43 = arith.mulf %41, %42 : vector<128x36xf32>
    %44 = tpu.concatenate %40, %37, %43 in 1 : vector<128x36xf32>, vector<128x36xf32>, vector<128x36xf32> -> vector<128x108xf32>
    %c0_26 = arith.constant 0 : index
    %c0_27 = arith.constant 0 : index
    %45 = vector.load %arg10[%c0_26, %c0_27] : memref<109x36xf32, #tpu.memory_space<vmem>>, vector<108x36xf32>
    %c108_28 = arith.constant 108 : index
    %c0_29 = arith.constant 0 : index
    %46 = vector.load %arg10[%c108_28, %c0_29] : memref<109x36xf32, #tpu.memory_space<vmem>>, vector<1x36xf32>
    %cst_30 = arith.constant dense<0.000000e+00> : vector<128x36xf32>
    %47 = tpu.matmul %44, %45, %cst_30 {dimension_numbers = #tpu.dot_dimension_numbers<[1], [0], [0], [1], [0, 0, 1, 1], [], []>} : vector<128x108xf32>, vector<108x36xf32>, vector<128x36xf32> -> vector<128x36xf32>
    %48 = vector.broadcast %46 : vector<1x36xf32> to vector<128x36xf32>
    %49 = arith.addf %47, %48 : vector<128x36xf32>
    %cst_31 = arith.constant 0.000000e+00 : f32
    %50 = vector.broadcast %cst_31 : f32 to vector<128x36xf32>
    %51 = arith.maximumf %49, %50 : vector<128x36xf32>
    %c1_i32_32 = arith.constant 1 : i32
    %52 = tpu.dynamic_rotate %51 by %c1_i32_32 dim 0 : vector<128x36xf32>, i32 -> vector<128x36xf32>
    %53 = vector.broadcast %7 : vector<128x1xf32> to vector<128x36xf32>
    %54 = arith.mulf %52, %53 : vector<128x36xf32>
    %c127_i32_33 = arith.constant 127 : i32
    %55 = tpu.dynamic_rotate %51 by %c127_i32_33 dim 0 : vector<128x36xf32>, i32 -> vector<128x36xf32>
    %56 = vector.broadcast %10 : vector<128x1xf32> to vector<128x36xf32>
    %57 = arith.mulf %55, %56 : vector<128x36xf32>
    %58 = tpu.concatenate %54, %51, %57 in 1 : vector<128x36xf32>, vector<128x36xf32>, vector<128x36xf32> -> vector<128x108xf32>
    %c0_34 = arith.constant 0 : index
    %c0_35 = arith.constant 0 : index
    %59 = vector.load %arg11[%c0_34, %c0_35] : memref<109x4xf32, #tpu.memory_space<vmem>>, vector<108x4xf32>
    %c108_36 = arith.constant 108 : index
    %c0_37 = arith.constant 0 : index
    %60 = vector.load %arg11[%c108_36, %c0_37] : memref<109x4xf32, #tpu.memory_space<vmem>>, vector<1x4xf32>
    %cst_38 = arith.constant dense<0.000000e+00> : vector<128x4xf32>
    %61 = tpu.matmul %58, %59, %cst_38 {dimension_numbers = #tpu.dot_dimension_numbers<[1], [0], [0], [1], [0, 0, 1, 1], [], []>} : vector<128x108xf32>, vector<108x4xf32>, vector<128x4xf32> -> vector<128x4xf32>
    %62 = vector.broadcast %60 : vector<1x4xf32> to vector<128x4xf32>
    %63 = arith.addf %61, %62 : vector<128x4xf32>
    %cst_39 = arith.constant 0.000000e+00 : f32
    %64 = vector.broadcast %cst_39 : f32 to vector<128x4xf32>
    %65 = arith.maximumf %63, %64 : vector<128x4xf32>
    %66 = tpu.concatenate %65, %65, %65, %65, %65, %65, %65, %65 in 1 : vector<128x4xf32>, vector<128x4xf32>, vector<128x4xf32>, vector<128x4xf32>, vector<128x4xf32>, vector<128x4xf32>, vector<128x4xf32>, vector<128x4xf32> -> vector<128x32xf32>
    %67 = arith.mulf %66, %0 : vector<128x32xf32>
    %cst_40 = arith.constant dense<0.000000e+00> : vector<16x32xf32>
    %68 = tpu.matmul %2, %67, %cst_40 {dimension_numbers = #tpu.dot_dimension_numbers<[1], [0], [0], [1], [0, 0, 1, 1], [], []>} : vector<16x128xf32>, vector<128x32xf32>, vector<16x32xf32> -> vector<16x32xf32>
    %c0_41 = arith.constant 0 : index
    %c0_42 = arith.constant 0 : index
    %69 = vector.load %arg12[%c0_41, %c0_42] : memref<33x32xf32, #tpu.memory_space<vmem>>, vector<32x32xf32>
    %c32 = arith.constant 32 : index
    %c0_43 = arith.constant 0 : index
    %70 = vector.load %arg12[%c32, %c0_43] : memref<33x32xf32, #tpu.memory_space<vmem>>, vector<1x32xf32>
    %cst_44 = arith.constant dense<0.000000e+00> : vector<16x32xf32>
    %71 = tpu.matmul %68, %69, %cst_44 {dimension_numbers = #tpu.dot_dimension_numbers<[1], [0], [0], [1], [0, 0, 1, 1], [], []>} : vector<16x32xf32>, vector<32x32xf32>, vector<16x32xf32> -> vector<16x32xf32>
    %72 = vector.broadcast %70 : vector<1x32xf32> to vector<16x32xf32>
    %73 = arith.addf %71, %72 : vector<16x32xf32>
    %c0_45 = arith.constant 0 : index
    %c0_46 = arith.constant 0 : index
    %74 = vector.load %arg20[%c0_45, %c0_46] : memref<16x32xf32, #tpu.memory_space<vmem>>, vector<16x32xf32>
    tpu.vector_store %arg20[%c0_45, %c0_46], %73 {strides = array<i32>} : memref<16x32xf32, #tpu.memory_space<vmem>>, vector<16x32xf32>,
    %75 = vector.extract_strided_slice %73 {offsets = [0, 0], sizes = [16, 16], strides = [1, 1]} : vector<16x32xf32> to vector<16x16xf32>
    %76 = vector.extract_strided_slice %73 {offsets = [0, 16], sizes = [16, 16], strides = [1, 1]} : vector<16x32xf32> to vector<16x16xf32>
    %c0_47 = arith.constant 0 : index
    %c0_48 = arith.constant 0 : index
    %77 = vector.load %arg2[%c0_47, %c0_48] : memref<16x16xf32, #tpu.memory_space<vmem>>, vector<16x16xf32>
    %cst_49 = arith.constant 5.000000e-01 : f32
    %78 = vector.broadcast %cst_49 : f32 to vector<16x16xf32>
    %79 = arith.mulf %78, %76 : vector<16x16xf32>
    %80 = math.exp %79 : vector<16x16xf32>
    %81 = arith.mulf %77, %80 : vector<16x16xf32>
    %82 = arith.addf %75, %81 : vector<16x16xf32>
    %cst_50 = arith.constant dense<0.000000e+00> : vector<128x16xf32>
    %83 = tpu.matmul %3, %82, %cst_50 {dimension_numbers = #tpu.dot_dimension_numbers<[1], [0], [0], [1], [0, 0, 1, 1], [], []>} : vector<128x16xf32>, vector<16x16xf32>, vector<128x16xf32> -> vector<128x16xf32>
    %c0_51 = arith.constant 0 : index
    %c0_52 = arith.constant 0 : index
    %84 = vector.load %arg13[%c0_51, %c0_52] : memref<16x32xf32, #tpu.memory_space<vmem>>, vector<16x32xf32>
    %cst_53 = arith.constant dense<0.000000e+00> : vector<128x32xf32>
    %85 = tpu.matmul %83, %84, %cst_53 {dimension_numbers = #tpu.dot_dimension_numbers<[1], [0], [0], [1], [0, 0, 1, 1], [], []>} : vector<128x16xf32>, vector<16x32xf32>, vector<128x32xf32> -> vector<128x32xf32>
    %86 = arith.mulf %85, %0 : vector<128x32xf32>
    %cst_54 = arith.constant dense<0.000000e+00> : vector<128x4xf32>
    %87 = tpu.matmul %86, %4, %cst_54 {dimension_numbers = #tpu.dot_dimension_numbers<[1], [0], [0], [1], [0, 0, 1, 1], [], []>} : vector<128x32xf32>, vector<32x4xf32>, vector<128x4xf32> -> vector<128x4xf32>
    %c0_55 = arith.constant 0 : index
    %c0_56 = arith.constant 0 : index
    %88 = vector.load %arg14[%c0_55, %c0_56] : memref<128x4xf32, #tpu.memory_space<vmem>>, vector<128x4xf32>
    %89 = arith.addf %87, %88 : vector<128x4xf32>
    %cst_57 = arith.constant 0.000000e+00 : f32
    %90 = vector.broadcast %cst_57 : f32 to vector<128x4xf32>
    %91 = arith.maximumf %89, %90 : vector<128x4xf32>
    %c1_i32_58 = arith.constant 1 : i32
    %92 = tpu.dynamic_rotate %91 by %c1_i32_58 dim 0 : vector<128x4xf32>, i32 -> vector<128x4xf32>
    %93 = vector.broadcast %7 : vector<128x1xf32> to vector<128x4xf32>
    %94 = arith.mulf %92, %93 : vector<128x4xf32>
    %c127_i32_59 = arith.constant 127 : i32
    %95 = tpu.dynamic_rotate %91 by %c127_i32_59 dim 0 : vector<128x4xf32>, i32 -> vector<128x4xf32>
    %96 = vector.broadcast %10 : vector<128x1xf32> to vector<128x4xf32>
    %97 = arith.mulf %95, %96 : vector<128x4xf32>
    %98 = tpu.concatenate %94, %91, %97 in 1 : vector<128x4xf32>, vector<128x4xf32>, vector<128x4xf32> -> vector<128x12xf32>
    %c0_60 = arith.constant 0 : index
    %c0_61 = arith.constant 0 : index
    %99 = vector.load %arg15[%c0_60, %c0_61] : memref<13x36xf32, #tpu.memory_space<vmem>>, vector<12x36xf32>
    %c12 = arith.constant 12 : index
    %c0_62 = arith.constant 0 : index
    %100 = vector.load %arg15[%c12, %c0_62] : memref<13x36xf32, #tpu.memory_space<vmem>>, vector<1x36xf32>
    %cst_63 = arith.constant dense<0.000000e+00> : vector<128x36xf32>
    %101 = tpu.matmul %98, %99, %cst_63 {dimension_numbers = #tpu.dot_dimension_numbers<[1], [0], [0], [1], [0, 0, 1, 1], [], []>} : vector<128x12xf32>, vector<12x36xf32>, vector<128x36xf32> -> vector<128x36xf32>
    %102 = vector.broadcast %100 : vector<1x36xf32> to vector<128x36xf32>
    %103 = arith.addf %101, %102 : vector<128x36xf32>
    %cst_64 = arith.constant 0.000000e+00 : f32
    %104 = vector.broadcast %cst_64 : f32 to vector<128x36xf32>
    %105 = arith.maximumf %103, %104 : vector<128x36xf32>
    %c1_i32_65 = arith.constant 1 : i32
    %106 = tpu.dynamic_rotate %105 by %c1_i32_65 dim 0 : vector<128x36xf32>, i32 -> vector<128x36xf32>
    %107 = vector.broadcast %7 : vector<128x1xf32> to vector<128x36xf32>
    %108 = arith.mulf %106, %107 : vector<128x36xf32>
    %c127_i32_66 = arith.constant 127 : i32
    %109 = tpu.dynamic_rotate %105 by %c127_i32_66 dim 0 : vector<128x36xf32>, i32 -> vector<128x36xf32>
    %110 = vector.broadcast %10 : vector<128x1xf32> to vector<128x36xf32>
    %111 = arith.mulf %109, %110 : vector<128x36xf32>
    %112 = tpu.concatenate %108, %105, %111 in 1 : vector<128x36xf32>, vector<128x36xf32>, vector<128x36xf32> -> vector<128x108xf32>
    %c0_67 = arith.constant 0 : index
    %c0_68 = arith.constant 0 : index
    %113 = vector.load %arg16[%c0_67, %c0_68] : memref<109x36xf32, #tpu.memory_space<vmem>>, vector<108x36xf32>
    %c108_69 = arith.constant 108 : index
    %c0_70 = arith.constant 0 : index
    %114 = vector.load %arg16[%c108_69, %c0_70] : memref<109x36xf32, #tpu.memory_space<vmem>>, vector<1x36xf32>
    %cst_71 = arith.constant dense<0.000000e+00> : vector<128x36xf32>
    %115 = tpu.matmul %112, %113, %cst_71 {dimension_numbers = #tpu.dot_dimension_numbers<[1], [0], [0], [1], [0, 0, 1, 1], [], []>} : vector<128x108xf32>, vector<108x36xf32>, vector<128x36xf32> -> vector<128x36xf32>
    %116 = vector.broadcast %114 : vector<1x36xf32> to vector<128x36xf32>
    %117 = arith.addf %115, %116 : vector<128x36xf32>
    %cst_72 = arith.constant 0.000000e+00 : f32
    %118 = vector.broadcast %cst_72 : f32 to vector<128x36xf32>
    %119 = arith.maximumf %117, %118 : vector<128x36xf32>
    %c1_i32_73 = arith.constant 1 : i32
    %120 = tpu.dynamic_rotate %119 by %c1_i32_73 dim 0 : vector<128x36xf32>, i32 -> vector<128x36xf32>
    %121 = vector.broadcast %7 : vector<128x1xf32> to vector<128x36xf32>
    %122 = arith.mulf %120, %121 : vector<128x36xf32>
    %c127_i32_74 = arith.constant 127 : i32
    %123 = tpu.dynamic_rotate %119 by %c127_i32_74 dim 0 : vector<128x36xf32>, i32 -> vector<128x36xf32>
    %124 = vector.broadcast %10 : vector<128x1xf32> to vector<128x36xf32>
    %125 = arith.mulf %123, %124 : vector<128x36xf32>
    %126 = tpu.concatenate %122, %119, %125 in 1 : vector<128x36xf32>, vector<128x36xf32>, vector<128x36xf32> -> vector<128x108xf32>
    %c0_75 = arith.constant 0 : index
    %c0_76 = arith.constant 0 : index
    %127 = vector.load %arg17[%c0_75, %c0_76] : memref<109x36xf32, #tpu.memory_space<vmem>>, vector<108x36xf32>
    %c108_77 = arith.constant 108 : index
    %c0_78 = arith.constant 0 : index
    %128 = vector.load %arg17[%c108_77, %c0_78] : memref<109x36xf32, #tpu.memory_space<vmem>>, vector<1x36xf32>
    %cst_79 = arith.constant dense<0.000000e+00> : vector<128x36xf32>
    %129 = tpu.matmul %126, %127, %cst_79 {dimension_numbers = #tpu.dot_dimension_numbers<[1], [0], [0], [1], [0, 0, 1, 1], [], []>} : vector<128x108xf32>, vector<108x36xf32>, vector<128x36xf32> -> vector<128x36xf32>
    %130 = vector.broadcast %128 : vector<1x36xf32> to vector<128x36xf32>
    %131 = arith.addf %129, %130 : vector<128x36xf32>
    %cst_80 = arith.constant 0.000000e+00 : f32
    %132 = vector.broadcast %cst_80 : f32 to vector<128x36xf32>
    %133 = arith.maximumf %131, %132 : vector<128x36xf32>
    %c1_i32_81 = arith.constant 1 : i32
    %134 = tpu.dynamic_rotate %133 by %c1_i32_81 dim 0 : vector<128x36xf32>, i32 -> vector<128x36xf32>
    %135 = vector.broadcast %7 : vector<128x1xf32> to vector<128x36xf32>
    %136 = arith.mulf %134, %135 : vector<128x36xf32>
    %c127_i32_82 = arith.constant 127 : i32
    %137 = tpu.dynamic_rotate %133 by %c127_i32_82 dim 0 : vector<128x36xf32>, i32 -> vector<128x36xf32>
    %138 = vector.broadcast %10 : vector<128x1xf32> to vector<128x36xf32>
    %139 = arith.mulf %137, %138 : vector<128x36xf32>
    %140 = tpu.concatenate %136, %133, %139 in 1 : vector<128x36xf32>, vector<128x36xf32>, vector<128x36xf32> -> vector<128x108xf32>
    %c0_83 = arith.constant 0 : index
    %c0_84 = arith.constant 0 : index
    %141 = vector.load %arg18[%c0_83, %c0_84] : memref<109x1xf32, #tpu.memory_space<vmem>>, vector<108x1xf32>
    %c108_85 = arith.constant 108 : index
    %c0_86 = arith.constant 0 : index
    %142 = vector.load %arg18[%c108_85, %c0_86] : memref<109x1xf32, #tpu.memory_space<vmem>>, vector<1x1xf32>
    %cst_87 = arith.constant dense<0.000000e+00> : vector<128x1xf32>
    %143 = tpu.matmul %140, %141, %cst_87 {dimension_numbers = #tpu.dot_dimension_numbers<[1], [0], [0], [1], [0, 0, 1, 1], [], []>} : vector<128x108xf32>, vector<108x1xf32>, vector<128x1xf32> -> vector<128x1xf32>
    %144 = vector.broadcast %142 : vector<1x1xf32> to vector<128x1xf32>
    %145 = arith.addf %143, %144 : vector<128x1xf32>
    %cst_88 = arith.constant 0.000000e+00 : f32
    %146 = vector.broadcast %cst_88 : f32 to vector<128x1xf32>
    %147 = arith.maximumf %145, %146 : vector<128x1xf32>
    %148 = vector.broadcast %147 : vector<128x1xf32> to vector<128x8xf32>
    %149 = arith.mulf %148, %1 : vector<128x8xf32>
    %cst_89 = arith.constant dense<0.000000e+00> : vector<16x8xf32>
    %150 = tpu.matmul %2, %149, %cst_89 {dimension_numbers = #tpu.dot_dimension_numbers<[1], [0], [0], [1], [0, 0, 1, 1], [], []>} : vector<16x128xf32>, vector<128x8xf32>, vector<16x8xf32> -> vector<16x8xf32>
    %c0_90 = arith.constant 0 : index
    %c0_91 = arith.constant 0 : index
    %151 = vector.load %arg19[%c0_90, %c0_91] : memref<16x8xf32, #tpu.memory_space<vmem>>, vector<16x8xf32>
    tpu.vector_store %arg19[%c0_90, %c0_91], %150 {strides = array<i32>} : memref<16x8xf32, #tpu.memory_space<vmem>>, vector<16x8xf32>,
    return
  }
  func.func @transform_0(%arg0: i32) -> (i32, i32) {
    %c0_i32 = arith.constant 0 : i32
    %c0_i32_0 = arith.constant 0 : i32
    return %arg0, %c0_i32 : i32, i32
  }
  func.func @transform_1(%arg0: i32) -> (i32, i32) {
    %c0_i32 = arith.constant 0 : i32
    %c0_i32_0 = arith.constant 0 : i32
    return %arg0, %c0_i32 : i32, i32
  }
  func.func @transform_2(%arg0: i32) -> (i32, i32) {
    %c0_i32 = arith.constant 0 : i32
    %c0_i32_0 = arith.constant 0 : i32
    %c0_i32_1 = arith.constant 0 : i32
    return %c0_i32, %c0_i32_0 : i32, i32
  }
  func.func @transform_3(%arg0: i32) -> (i32, i32) {
    %c0_i32 = arith.constant 0 : i32
    %c0_i32_0 = arith.constant 0 : i32
    %c0_i32_1 = arith.constant 0 : i32
    return %c0_i32, %c0_i32_0 : i32, i32
  }
  func.func @transform_4(%arg0: i32) -> (i32, i32) {
    %c0_i32 = arith.constant 0 : i32
    %c0_i32_0 = arith.constant 0 : i32
    %c0_i32_1 = arith.constant 0 : i32
    return %c0_i32, %c0_i32_0 : i32, i32
  }
  func.func @transform_5(%arg0: i32) -> (i32, i32) {
    %c0_i32 = arith.constant 0 : i32
    %c0_i32_0 = arith.constant 0 : i32
    %c0_i32_1 = arith.constant 0 : i32
    return %c0_i32, %c0_i32_0 : i32, i32
  }
  func.func @transform_6(%arg0: i32) -> (i32, i32) {
    %c0_i32 = arith.constant 0 : i32
    %c0_i32_0 = arith.constant 0 : i32
    %c0_i32_1 = arith.constant 0 : i32
    return %c0_i32, %c0_i32_0 : i32, i32
  }
  func.func @transform_7(%arg0: i32) -> (i32, i32) {
    %c0_i32 = arith.constant 0 : i32
    %c0_i32_0 = arith.constant 0 : i32
    %c0_i32_1 = arith.constant 0 : i32
    return %c0_i32, %c0_i32_0 : i32, i32
  }
  func.func @transform_8(%arg0: i32) -> (i32, i32) {
    %c0_i32 = arith.constant 0 : i32
    %c0_i32_0 = arith.constant 0 : i32
    %c0_i32_1 = arith.constant 0 : i32
    return %c0_i32, %c0_i32_0 : i32, i32
  }
  func.func @transform_9(%arg0: i32) -> (i32, i32) {
    %c0_i32 = arith.constant 0 : i32
    %c0_i32_0 = arith.constant 0 : i32
    %c0_i32_1 = arith.constant 0 : i32
    return %c0_i32, %c0_i32_0 : i32, i32
  }
  func.func @transform_10(%arg0: i32) -> (i32, i32) {
    %c0_i32 = arith.constant 0 : i32
    %c0_i32_0 = arith.constant 0 : i32
    %c0_i32_1 = arith.constant 0 : i32
    return %c0_i32, %c0_i32_0 : i32, i32
  }
  func.func @transform_11(%arg0: i32) -> (i32, i32) {
    %c0_i32 = arith.constant 0 : i32
    %c0_i32_0 = arith.constant 0 : i32
    %c0_i32_1 = arith.constant 0 : i32
    return %c0_i32, %c0_i32_0 : i32, i32
  }
  func.func @transform_12(%arg0: i32) -> (i32, i32) {
    %c0_i32 = arith.constant 0 : i32
    %c0_i32_0 = arith.constant 0 : i32
    %c0_i32_1 = arith.constant 0 : i32
    return %c0_i32, %c0_i32_0 : i32, i32
  }
  func.func @transform_13(%arg0: i32) -> (i32, i32) {
    %c0_i32 = arith.constant 0 : i32
    %c0_i32_0 = arith.constant 0 : i32
    %c0_i32_1 = arith.constant 0 : i32
    return %c0_i32, %c0_i32_0 : i32, i32
  }
  func.func @transform_14(%arg0: i32) -> (i32, i32) {
    %c0_i32 = arith.constant 0 : i32
    %c0_i32_0 = arith.constant 0 : i32
    %c0_i32_1 = arith.constant 0 : i32
    return %c0_i32, %c0_i32_0 : i32, i32
  }
  func.func @transform_15(%arg0: i32) -> (i32, i32) {
    %c0_i32 = arith.constant 0 : i32
    %c0_i32_0 = arith.constant 0 : i32
    %c0_i32_1 = arith.constant 0 : i32
    return %c0_i32, %c0_i32_0 : i32, i32
  }
  func.func @transform_16(%arg0: i32) -> (i32, i32) {
    %c0_i32 = arith.constant 0 : i32
    %c0_i32_0 = arith.constant 0 : i32
    %c0_i32_1 = arith.constant 0 : i32
    return %c0_i32, %c0_i32_0 : i32, i32
  }
  func.func @transform_17(%arg0: i32) -> (i32, i32) {
    %c0_i32 = arith.constant 0 : i32
    %c0_i32_0 = arith.constant 0 : i32
    %c0_i32_1 = arith.constant 0 : i32
    return %c0_i32, %c0_i32_0 : i32, i32
  }
  func.func @transform_18(%arg0: i32) -> (i32, i32) {
    %c0_i32 = arith.constant 0 : i32
    %c0_i32_0 = arith.constant 0 : i32
    return %arg0, %c0_i32 : i32, i32
  }
  func.func @transform_19(%arg0: i32) -> (i32, i32) {
    %c0_i32 = arith.constant 0 : i32
    %c0_i32_0 = arith.constant 0 : i32
    return %arg0, %c0_i32 : i32, i32
  }
}

</mosaic_0001>

<llo_original>
// kernel: tpu_custom_call.1
$region0: #{tpu_custom_call.1}
  #allocation0 [shape = 'u32[]', space=smem, size = 0x4, offset = 0x4, fixed_abs, tag = 'smem constant byte address 0x4 - core index']
  #allocation1 [shape = 'u32[144,128]{1,0:T(1,128)}', space=vmem, size = 0x12000, scoped, tag = 'internal scratch']
  %s0 = inlined_call_operand.vmem [shape: f32[128,1], index: 0, kind: input, shape index: {}]
  %s1 = inlined_call_operand.vmem [shape: f32[16,16], index: 1, kind: input, shape index: {}]
  %s2 = inlined_call_operand.vmem [shape: f32[128,32], index: 2, kind: input, shape index: {}]
  %s3 = inlined_call_operand.vmem [shape: f32[128,8], index: 3, kind: input, shape index: {}]
  %s4 = inlined_call_operand.vmem [shape: f32[16,128], index: 4, kind: input, shape index: {}]
  %s5 = inlined_call_operand.vmem [shape: f32[128,16], index: 5, kind: input, shape index: {}]
  %s6 = inlined_call_operand.vmem [shape: f32[32,4], index: 6, kind: input, shape index: {}]
  %s7 = inlined_call_operand.vmem [shape: f32[4,36], index: 7, kind: input, shape index: {}]
  %s8 = inlined_call_operand.vmem [shape: f32[109,36], index: 8, kind: input, shape index: {}]
  %s9 = inlined_call_operand.vmem [shape: f32[109,36], index: 9, kind: input, shape index: {}]
  %s10 = inlined_call_operand.vmem [shape: f32[109,4], index: 10, kind: input, shape index: {}]
  %s11 = inlined_call_operand.vmem [shape: f32[33,32], index: 11, kind: input, shape index: {}]
  %s12 = inlined_call_operand.vmem [shape: f32[16,32], index: 12, kind: input, shape index: {}]
  %s13 = inlined_call_operand.vmem [shape: f32[128,4], index: 13, kind: input, shape index: {}]
  %s14 = inlined_call_operand.vmem [shape: f32[13,36], index: 14, kind: input, shape index: {}]
  %s15 = inlined_call_operand.vmem [shape: f32[109,36], index: 15, kind: input, shape index: {}]
  %s16 = inlined_call_operand.vmem [shape: f32[109,36], index: 16, kind: input, shape index: {}]
  %s17 = inlined_call_operand.vmem [shape: f32[109,1], index: 17, kind: input, shape index: {}]
  %s18 = inlined_call_operand.vmem [shape: f32[16,8], index: 18, kind: output, shape index: {0}]
  %s19 = inlined_call_operand.hbm [shape: f32[16,32], index: 19, kind: output, shape index: {1}]
  %20 = xla_tuple %s18, %s19
  %s21 = sld [smem:[#allocation0]]
  $region90: #{tpu_custom_call.1} parent=0
    _
  %s23 = ssub.s32 1, %s21
  %s24 = scalar_select 0, %s23, %s21
  $region1: #{tpu_custom_call.1} parent=0
    #allocation2 [shape = 'u8[8192]{0}', space=vmem, size = 0x2000, scoped, tag = 'output window, operand 1, single buffered']
    #allocation3 [shape = 's32[1]{0}', space=sflag, size = 0x4, scoped, tag = 'scoped memory for tpu_custom_call.1']
    %25 = vsyncpa [#allocation3], 0
    // Predicated region
    $region2: #{tpu_custom_call.1} parent=1 // pred_check
      _
    $region3: #{tpu_custom_call.1} parent=1 // pred_check_branch
      %27 = sbr.rel (0) target = $region5
    $region4: #{tpu_custom_call.1} parent=1 // pred_region
      _
    $region5: #{tpu_custom_call.1} parent=1 // pred_fallthru
      _
    // Predicated region
    $region6: #{tpu_custom_call.1} parent=1 // pred_check
      _
    $region7: #{tpu_custom_call.1} parent=1 // pred_check_branch
      %29 = sbr.rel (0) target = $region9
    $region8: #{tpu_custom_call.1} parent=1 // pred_region
      _
    $region9: #{tpu_custom_call.1} parent=1 // pred_fallthru
      _
    // Predicated region
    $region10: #{tpu_custom_call.1} parent=1 // pred_check
      _
    $region11: #{tpu_custom_call.1} parent=1 // pred_check_branch
      %31 = sbr.rel (0) target = $region13
    $region12: #{tpu_custom_call.1} parent=1 // pred_region
      _
    $region13: #{tpu_custom_call.1} parent=1 // pred_fallthru
      _
    // Predicated region
    $region14: #{tpu_custom_call.1} parent=1 // pred_check
      _
    $region15: #{tpu_custom_call.1} parent=1 // pred_check_branch
      %33 = sbr.rel (0) target = $region17
    $region16: #{tpu_custom_call.1} parent=1 // pred_region
      _
    $region17: #{tpu_custom_call.1} parent=1 // pred_fallthru
      _
    // Predicated region
    $region18: #{tpu_custom_call.1} parent=1 // pred_check
      _
    $region19: #{tpu_custom_call.1} parent=1 // pred_check_branch
      %35 = sbr.rel (0) target = $region21
    $region20: #{tpu_custom_call.1} parent=1 // pred_region
      _
    $region21: #{tpu_custom_call.1} parent=1 // pred_fallthru
      _
    // Predicated region
    $region22: #{tpu_custom_call.1} parent=1 // pred_check
      _
    $region23: #{tpu_custom_call.1} parent=1 // pred_check_branch
      %37 = sbr.rel (0) target = $region25
    $region24: #{tpu_custom_call.1} parent=1 // pred_region
      _
    $region25: #{tpu_custom_call.1} parent=1 // pred_fallthru
      _
    // Predicated region
    $region26: #{tpu_custom_call.1} parent=1 // pred_check
      _
    $region27: #{tpu_custom_call.1} parent=1 // pred_check_branch
      %39 = sbr.rel (0) target = $region29
    $region28: #{tpu_custom_call.1} parent=1 // pred_region
      _
    $region29: #{tpu_custom_call.1} parent=1 // pred_fallthru
      _
    // Predicated region
    $region30: #{tpu_custom_call.1} parent=1 // pred_check
      _
    $region31: #{tpu_custom_call.1} parent=1 // pred_check_branch
      %41 = sbr.rel (0) target = $region33
    $region32: #{tpu_custom_call.1} parent=1 // pred_region
      _
    $region33: #{tpu_custom_call.1} parent=1 // pred_fallthru
      _
    // Predicated region
    $region34: #{tpu_custom_call.1} parent=1 // pred_check
      _
    $region35: #{tpu_custom_call.1} parent=1 // pred_check_branch
      %43 = sbr.rel (0) target = $region37
    $region36: #{tpu_custom_call.1} parent=1 // pred_region
      _
    $region37: #{tpu_custom_call.1} parent=1 // pred_fallthru
      _
    // Predicated region
    $region38: #{tpu_custom_call.1} parent=1 // pred_check
      _
    $region39: #{tpu_custom_call.1} parent=1 // pred_check_branch
      %45 = sbr.rel (0) target = $region41
    $region40: #{tpu_custom_call.1} parent=1 // pred_region
      _
    $region41: #{tpu_custom_call.1} parent=1 // pred_fallthru
      _
    // Predicated region
    $region42: #{tpu_custom_call.1} parent=1 // pred_check
      _
    $region43: #{tpu_custom_call.1} parent=1 // pred_check_branch
      %47 = sbr.rel (0) target = $region45
    $region44: #{tpu_custom_call.1} parent=1 // pred_region
      _
    $region45: #{tpu_custom_call.1} parent=1 // pred_fallthru
      _
    // Predicated region
    $region46: #{tpu_custom_call.1} parent=1 // pred_check
      _
    $region47: #{tpu_custom_call.1} parent=1 // pred_check_branch
      %49 = sbr.rel (0) target = $region49
    $region48: #{tpu_custom_call.1} parent=1 // pred_region
      _
    $region49: #{tpu_custom_call.1} parent=1 // pred_fallthru
      _
    // Predicated region
    $region50: #{tpu_custom_call.1} parent=1 // pred_check
      _
    $region51: #{tpu_custom_call.1} parent=1 // pred_check_branch
      %51 = sbr.rel (0) target = $region53
    $region52: #{tpu_custom_call.1} parent=1 // pred_region
      _
    $region53: #{tpu_custom_call.1} parent=1 // pred_fallthru
      _
    // Predicated region
    $region54: #{tpu_custom_call.1} parent=1 // pred_check
      _
    $region55: #{tpu_custom_call.1} parent=1 // pred_check_branch
      %53 = sbr.rel (0) target = $region57
    $region56: #{tpu_custom_call.1} parent=1 // pred_region
      _
    $region57: #{tpu_custom_call.1} parent=1 // pred_fallthru
      _
    // Predicated region
    $region58: #{tpu_custom_call.1} parent=1 // pred_check
      _
    $region59: #{tpu_custom_call.1} parent=1 // pred_check_branch
      %55 = sbr.rel (0) target = $region61
    $region60: #{tpu_custom_call.1} parent=1 // pred_region
      _
    $region61: #{tpu_custom_call.1} parent=1 // pred_fallthru
      _
    // Predicated region
    $region62: #{tpu_custom_call.1} parent=1 // pred_check
      _
    $region63: #{tpu_custom_call.1} parent=1 // pred_check_branch
      %57 = sbr.rel (0) target = $region65
    $region64: #{tpu_custom_call.1} parent=1 // pred_region
      _
    $region65: #{tpu_custom_call.1} parent=1 // pred_fallthru
      _
    // Predicated region
    $region66: #{tpu_custom_call.1} parent=1 // pred_check
      _
    $region67: #{tpu_custom_call.1} parent=1 // pred_check_branch
      %59 = sbr.rel (0) target = $region69
    $region68: #{tpu_custom_call.1} parent=1 // pred_region
      _
    $region69: #{tpu_custom_call.1} parent=1 // pred_fallthru
      _
    // Predicated region
    $region70: #{tpu_custom_call.1} parent=1 // pred_check
      _
    $region71: #{tpu_custom_call.1} parent=1 // pred_check_branch
      %61 = sbr.rel (0) target = $region73
    $region72: #{tpu_custom_call.1} parent=1 // pred_region
      _
    $region73: #{tpu_custom_call.1} parent=1 // pred_fallthru
      _
    %v62 = vld [vmem:[%s2] sm:$0xff]
    %v63 = vld [vmem:[%s2 + $0x8] sm:$0xff]
    %v64 = vld [vmem:[%s2 + $0x10] sm:$0xff]
    %v65 = vld [vmem:[%s2 + $0x18] sm:$0xff]
    %v66 = vld [vmem:[%s2 + $0x20] sm:$0xff]
    %v67 = vld [vmem:[%s2 + $0x28] sm:$0xff]
    %v68 = vld [vmem:[%s2 + $0x30] sm:$0xff]
    %v69 = vld [vmem:[%s2 + $0x38] sm:$0xff]
    %v70 = vld [vmem:[%s2 + $0x40] sm:$0xff]
    %v71 = vld [vmem:[%s2 + $0x48] sm:$0xff]
    %v72 = vld [vmem:[%s2 + $0x50] sm:$0xff]
    %v73 = vld [vmem:[%s2 + $0x58] sm:$0xff]
    %v74 = vld [vmem:[%s2 + $0x60] sm:$0xff]
    %v75 = vld [vmem:[%s2 + $0x68] sm:$0xff]
    %v76 = vld [vmem:[%s2 + $0x70] sm:$0xff]
    %v77 = vld [vmem:[%s2 + $0x78] sm:$0xff]
    %v78 = vld [vmem:[%s3] sm:$0xff]
    %v79 = vld [vmem:[%s3 + $0x8] sm:$0xff]
    %v80 = vld [vmem:[%s3 + $0x10] sm:$0xff]
    %v81 = vld [vmem:[%s3 + $0x18] sm:$0xff]
    %v82 = vld [vmem:[%s3 + $0x20] sm:$0xff]
    %v83 = vld [vmem:[%s3 + $0x28] sm:$0xff]
    %v84 = vld [vmem:[%s3 + $0x30] sm:$0xff]
    %v85 = vld [vmem:[%s3 + $0x38] sm:$0xff]
    %v86 = vld [vmem:[%s3 + $0x40] sm:$0xff]
    %v87 = vld [vmem:[%s3 + $0x48] sm:$0xff]
    %v88 = vld [vmem:[%s3 + $0x50] sm:$0xff]
    %v89 = vld [vmem:[%s3 + $0x58] sm:$0xff]
    %v90 = vld [vmem:[%s3 + $0x60] sm:$0xff]
    %v91 = vld [vmem:[%s3 + $0x68] sm:$0xff]
    %v92 = vld [vmem:[%s3 + $0x70] sm:$0xff]
    %v93 = vld [vmem:[%s3 + $0x78] sm:$0xff]
    %v94 = vld [vmem:[%s4] sm:$0xff]
    %v95 = vld [vmem:[%s4 + $0x8] sm:$0xff]
    %v96 = vld [vmem:[%s5] sm:$0xff]
    %v97 = vld [vmem:[%s5 + $0x8] sm:$0xff]
    %v98 = vld [vmem:[%s5 + $0x10] sm:$0xff]
    %v99 = vld [vmem:[%s5 + $0x18] sm:$0xff]
    %v100 = vld [vmem:[%s5 + $0x20] sm:$0xff]
    %v101 = vld [vmem:[%s5 + $0x28] sm:$0xff]
    %v102 = vld [vmem:[%s5 + $0x30] sm:$0xff]
    %v103 = vld [vmem:[%s5 + $0x38] sm:$0xff]
    %v104 = vld [vmem:[%s5 + $0x40] sm:$0xff]
    %v105 = vld [vmem:[%s5 + $0x48] sm:$0xff]
    %v106 = vld [vmem:[%s5 + $0x50] sm:$0xff]
    %v107 = vld [vmem:[%s5 + $0x58] sm:$0xff]
    %v108 = vld [vmem:[%s5 + $0x60] sm:$0xff]
    %v109 = vld [vmem:[%s5 + $0x68] sm:$0xff]
    %v110 = vld [vmem:[%s5 + $0x70] sm:$0xff]
    %v111 = vld [vmem:[%s5 + $0x78] sm:$0xff]
    %v112 = vld [vmem:[%s6] sm:$0xff]
    %v113 = vld [vmem:[%s6 + $0x8] sm:$0xff]
    %v114 = vld [vmem:[%s6 + $0x10] sm:$0xff]
    %v115 = vld [vmem:[%s6 + $0x18] sm:$0xff]
    %v116 = vsub.f32 1.0, %v78
    %v117 = vsub.f32 1.0, %v79
    %v118 = vsub.f32 1.0, %v80
    %v119 = vsub.f32 1.0, %v81
    %v120 = vsub.f32 1.0, %v82
    %v121 = vsub.f32 1.0, %v83
    %v122 = vsub.f32 1.0, %v84
    %v123 = vsub.f32 1.0, %v85
    %v124 = vsub.f32 1.0, %v86
    %v125 = vsub.f32 1.0, %v87
    %v126 = vsub.f32 1.0, %v88
    %v127 = vsub.f32 1.0, %v89
    %v128 = vsub.f32 1.0, %v90
    %v129 = vsub.f32 1.0, %v91
    %v130 = vsub.f32 1.0, %v92
    %v131 = vsub.f32 1.0, %v93
    %v132 = vld [vmem:[%s0] sm:$0xff]
    %v133 = vld [vmem:[%s0 + $0x8] sm:$0xff]
    %v134 = vld [vmem:[%s0 + $0x10] sm:$0xff]
    %v135 = vld [vmem:[%s0 + $0x18] sm:$0xff]
    %v136 = vld [vmem:[%s0 + $0x20] sm:$0xff]
    %v137 = vld [vmem:[%s0 + $0x28] sm:$0xff]
    %v138 = vld [vmem:[%s0 + $0x30] sm:$0xff]
    %v139 = vld [vmem:[%s0 + $0x38] sm:$0xff]
    %v140 = vld [vmem:[%s0 + $0x40] sm:$0xff]
    %v141 = vld [vmem:[%s0 + $0x48] sm:$0xff]
    %v142 = vld [vmem:[%s0 + $0x50] sm:$0xff]
    %v143 = vld [vmem:[%s0 + $0x58] sm:$0xff]
    %v144 = vld [vmem:[%s0 + $0x60] sm:$0xff]
    %v145 = vld [vmem:[%s0 + $0x68] sm:$0xff]
    %v146 = vld [vmem:[%s0 + $0x70] sm:$0xff]
    %v147 = vld [vmem:[%s0 + $0x78] sm:$0xff]
    %v148 = vrot.slane %v132, 7
    %v149 = vrot.slane %v133, 7
    %v150 = vrot.slane %v134, 7
    %v151 = vrot.slane %v135, 7
    %v152 = vrot.slane %v136, 7
    %v153 = vrot.slane %v137, 7
    %v154 = vrot.slane %v138, 7
    %v155 = vrot.slane %v139, 7
    %v156 = vrot.slane %v140, 7
    %v157 = vrot.slane %v141, 7
    %v158 = vrot.slane %v142, 7
    %v159 = vrot.slane %v143, 7
    %v160 = vrot.slane %v144, 7
    %v161 = vrot.slane %v145, 7
    %v162 = vrot.slane %v146, 7
    %v163 = vrot.slane %v147, 7
    %v164 = vlaneseq
    %v165 = vshrl.u32 %v164, 7
    %vm166 = vcmp.lt.s32.totalorder %v165, 1
    %v167 = vsel %vm166, %v162, %v163
    %v168 = vsel %vm166, %v161, %v162
    %v169 = vsel %vm166, %v160, %v161
    %v170 = vsel %vm166, %v159, %v160
    %v171 = vsel %vm166, %v158, %v159
    %v172 = vsel %vm166, %v157, %v158
    %v173 = vsel %vm166, %v156, %v157
    %v174 = vsel %vm166, %v155, %v156
    %v175 = vsel %vm166, %v154, %v155
    %v176 = vsel %vm166, %v153, %v154
    %v177 = vsel %vm166, %v152, %v153
    %v178 = vsel %vm166, %v151, %v152
    %v179 = vsel %vm166, %v150, %v151
    %v180 = vsel %vm166, %v149, %v150
    %v181 = vsel %vm166, %v148, %v149
    %v182 = vsel %vm166, %v163, %v148
    %v183 = vmul.f32 %v182, %v116
    %v184 = vmul.f32 %v181, %v117
    %v185 = vmul.f32 %v180, %v118
    %v186 = vmul.f32 %v179, %v119
    %v187 = vmul.f32 %v178, %v120
    %v188 = vmul.f32 %v177, %v121
    %v189 = vmul.f32 %v176, %v122
    %v190 = vmul.f32 %v175, %v123
    %v191 = vmul.f32 %v174, %v124
    %v192 = vmul.f32 %v173, %v125
    %v193 = vmul.f32 %v172, %v126
    %v194 = vmul.f32 %v171, %v127
    %v195 = vmul.f32 %v170, %v128
    %v196 = vmul.f32 %v169, %v129
    %v197 = vmul.f32 %v168, %v130
    %v198 = vmul.f32 %v167, %v131
    %v199 = vrot.slane %v132, 1
    %v200 = vrot.slane %v133, 1
    %v201 = vrot.slane %v134, 1
    %v202 = vrot.slane %v135, 1
    %v203 = vrot.slane %v136, 1
    %v204 = vrot.slane %v137, 1
    %v205 = vrot.slane %v138, 1
    %v206 = vrot.slane %v139, 1
    %v207 = vrot.slane %v140, 1
    %v208 = vrot.slane %v141, 1
    %v209 = vrot.slane %v142, 1
    %v210 = vrot.slane %v143, 1
    %v211 = vrot.slane %v144, 1
    %v212 = vrot.slane %v145, 1
    %v213 = vrot.slane %v146, 1
    %v214 = vrot.slane %v147, 1
    %vm215 = vcmp.lt.s32.totalorder %v165, 7
    %v216 = vsel %vm215, %v213, %v214
    %v217 = vsel %vm215, %v212, %v213
    %v218 = vsel %vm215, %v211, %v212
    %v219 = vsel %vm215, %v210, %v211
    %v220 = vsel %vm215, %v209, %v210
    %v221 = vsel %vm215, %v208, %v209
    %v222 = vsel %vm215, %v207, %v208
    %v223 = vsel %vm215, %v206, %v207
    %v224 = vsel %vm215, %v205, %v206
    %v225 = vsel %vm215, %v204, %v205
    %v226 = vsel %vm215, %v203, %v204
    %v227 = vsel %vm215, %v202, %v203
    %v228 = vsel %vm215, %v201, %v202
    %v229 = vsel %vm215, %v200, %v201
    %v230 = vsel %vm215, %v199, %v200
    %v231 = vsel %vm215, %v214, %v199
    %248 = vrot.lane.b32.xlu0 %v116, 121
    %v249 = vpop.permute.xlu0 %248
    %250 = vrot.lane.b32.xlu0 %v117, 121
    %v251 = vpop.permute.xlu0 %250
    %252 = vrot.lane.b32.xlu0 %v118, 121
    %v253 = vpop.permute.xlu0 %252
    %254 = vrot.lane.b32.xlu0 %v119, 121
    %v255 = vpop.permute.xlu0 %254
    %256 = vrot.lane.b32.xlu0 %v120, 121
    %v257 = vpop.permute.xlu0 %256
    %258 = vrot.lane.b32.xlu0 %v121, 121
    %v259 = vpop.permute.xlu0 %258
    %260 = vrot.lane.b32.xlu0 %v122, 121
    %v261 = vpop.permute.xlu0 %260
    %262 = vrot.lane.b32.xlu0 %v123, 121
    %v263 = vpop.permute.xlu0 %262
    %264 = vrot.lane.b32.xlu0 %v124, 121
    %v265 = vpop.permute.xlu0 %264
    %266 = vrot.lane.b32.xlu0 %v125, 121
    %v267 = vpop.permute.xlu0 %266
    %268 = vrot.lane.b32.xlu0 %v126, 121
    %v269 = vpop.permute.xlu0 %268
    %270 = vrot.lane.b32.xlu0 %v127, 121
    %v271 = vpop.permute.xlu0 %270
    %272 = vrot.lane.b32.xlu0 %v128, 121
    %v273 = vpop.permute.xlu0 %272
    %274 = vrot.lane.b32.xlu0 %v129, 121
    %v275 = vpop.permute.xlu0 %274
    %276 = vrot.lane.b32.xlu0 %v130, 121
    %v277 = vpop.permute.xlu0 %276
    %278 = vrot.lane.b32.xlu0 %v131, 121
    %v279 = vpop.permute.xlu0 %278
    %v296 = vmul.f32 %v230, %v249
    %v297 = vmul.f32 %v229, %v251
    %v298 = vmul.f32 %v228, %v253
    %v299 = vmul.f32 %v227, %v255
    %v300 = vmul.f32 %v226, %v257
    %v301 = vmul.f32 %v225, %v259
    %v302 = vmul.f32 %v224, %v261
    %v303 = vmul.f32 %v223, %v263
    %v304 = vmul.f32 %v222, %v265
    %v305 = vmul.f32 %v221, %v267
    %v306 = vmul.f32 %v220, %v269
    %v307 = vmul.f32 %v219, %v271
    %v308 = vmul.f32 %v218, %v273
    %v309 = vmul.f32 %v217, %v275
    %v310 = vmul.f32 %v216, %v277
    %v311 = vmul.f32 %v231, %v279
    %328 = vrot.lane.b32.xlu0 %v132, 1
    %v329 = vpop.permute.xlu0 %328
    %330 = vrot.lane.b32.xlu0 %v133, 1
    %v331 = vpop.permute.xlu0 %330
    %332 = vrot.lane.b32.xlu0 %v134, 1
    %v333 = vpop.permute.xlu0 %332
    %334 = vrot.lane.b32.xlu0 %v135, 1
    %v335 = vpop.permute.xlu0 %334
    %336 = vrot.lane.b32.xlu0 %v136, 1
    %v337 = vpop.permute.xlu0 %336
    %338 = vrot.lane.b32.xlu0 %v137, 1
    %v339 = vpop.permute.xlu0 %338
    %340 = vrot.lane.b32.xlu0 %v138, 1
    %v341 = vpop.permute.xlu0 %340
    %342 = vrot.lane.b32.xlu0 %v139, 1
    %v343 = vpop.permute.xlu0 %342
    %344 = vrot.lane.b32.xlu0 %v140, 1
    %v345 = vpop.permute.xlu0 %344
    %346 = vrot.lane.b32.xlu0 %v141, 1
    %v347 = vpop.permute.xlu0 %346
    %348 = vrot.lane.b32.xlu0 %v142, 1
    %v349 = vpop.permute.xlu0 %348
    %350 = vrot.lane.b32.xlu0 %v143, 1
    %v351 = vpop.permute.xlu0 %350
    %352 = vrot.lane.b32.xlu0 %v144, 1
    %v353 = vpop.permute.xlu0 %352
    %354 = vrot.lane.b32.xlu0 %v145, 1
    %v355 = vpop.permute.xlu0 %354
    %356 = vrot.lane.b32.xlu0 %v146, 1
    %v357 = vpop.permute.xlu0 %356
    %358 = vrot.lane.b32.xlu0 %v147, 1
    %v359 = vpop.permute.xlu0 %358
    %392 = vrot.lane.b32.xlu0 %v296, 2
    %v393 = vpop.permute.xlu0 %392
    %394 = vrot.lane.b32.xlu0 %v297, 2
    %v395 = vpop.permute.xlu0 %394
    %396 = vrot.lane.b32.xlu0 %v298, 2
    %v397 = vpop.permute.xlu0 %396
    %398 = vrot.lane.b32.xlu0 %v299, 2
    %v399 = vpop.permute.xlu0 %398
    %400 = vrot.lane.b32.xlu0 %v300, 2
    %v401 = vpop.permute.xlu0 %400
    %402 = vrot.lane.b32.xlu0 %v301, 2
    %v403 = vpop.permute.xlu0 %402
    %404 = vrot.lane.b32.xlu0 %v302, 2
    %v405 = vpop.permute.xlu0 %404
    %406 = vrot.lane.b32.xlu0 %v303, 2
    %v407 = vpop.permute.xlu0 %406
    %408 = vrot.lane.b32.xlu0 %v304, 2
    %v409 = vpop.permute.xlu0 %408
    %410 = vrot.lane.b32.xlu0 %v305, 2
    %v411 = vpop.permute.xlu0 %410
    %412 = vrot.lane.b32.xlu0 %v306, 2
    %v413 = vpop.permute.xlu0 %412
    %414 = vrot.lane.b32.xlu0 %v307, 2
    %v415 = vpop.permute.xlu0 %414
    %416 = vrot.lane.b32.xlu0 %v308, 2
    %v417 = vpop.permute.xlu0 %416
    %418 = vrot.lane.b32.xlu0 %v309, 2
    %v419 = vpop.permute.xlu0 %418
    %420 = vrot.lane.b32.xlu0 %v310, 2
    %v421 = vpop.permute.xlu0 %420
    %422 = vrot.lane.b32.xlu0 %v311, 2
    %v423 = vpop.permute.xlu0 %422
    %vm440 = vcmask 7168
    %v441 = vsel %vm440, %v183, %v329
    %v442 = vsel %vm440, %v184, %v331
    %v443 = vsel %vm440, %v185, %v333
    %v444 = vsel %vm440, %v186, %v335
    %v445 = vsel %vm440, %v187, %v337
    %v446 = vsel %vm440, %v188, %v339
    %v447 = vsel %vm440, %v189, %v341
    %v448 = vsel %vm440, %v190, %v343
    %v449 = vsel %vm440, %v191, %v345
    %v450 = vsel %vm440, %v192, %v347
    %v451 = vsel %vm440, %v193, %v349
    %v452 = vsel %vm440, %v194, %v351
    %v453 = vsel %vm440, %v195, %v353
    %v454 = vsel %vm440, %v196, %v355
    %v455 = vsel %vm440, %v197, %v357
    %v456 = vsel %vm440, %v198, %v359
    %vm457 = vcmask 15360
    %v458 = vsel %vm457, %v441, %v393
    %v459 = vsel %vm457, %v442, %v395
    %v460 = vsel %vm457, %v443, %v397
    %v461 = vsel %vm457, %v444, %v399
    %v462 = vsel %vm457, %v445, %v401
    %v463 = vsel %vm457, %v446, %v403
    %v464 = vsel %vm457, %v447, %v405
    %v465 = vsel %vm457, %v448, %v407
    %v466 = vsel %vm457, %v449, %v409
    %v467 = vsel %vm457, %v450, %v411
    %v468 = vsel %vm457, %v451, %v413
    %v469 = vsel %vm457, %v452, %v415
    %v470 = vsel %vm457, %v453, %v417
    %v471 = vsel %vm457, %v454, %v419
    %v472 = vsel %vm457, %v455, %v421
    %v473 = vsel %vm457, %v456, %v423
    %v474 = vld [vmem:[%s7] sm:$0x7]
    %v475 = vld [vmem:[%s7 + $0x3] sm:$0x1]
    %v476 = vlaneseq
    %v477 = vshrl.u32 %v476, 7
    %v478 = vsub.s32 0, %v477
    %v479 = vrot.slane %v475, %v478
    %vm480 = vcmask 23552
    %v482 = vsel %vm480, %v458, 0
    %v485 = vsel %vm480, %v459, 0
    %v488 = vsel %vm480, %v460, 0
    %v491 = vsel %vm480, %v461, 0
    %v494 = vsel %vm480, %v462, 0
    %v497 = vsel %vm480, %v463, 0
    %v500 = vsel %vm480, %v464, 0
    %v503 = vsel %vm480, %v465, 0
    %v506 = vsel %vm480, %v466, 0
    %v509 = vsel %vm480, %v467, 0
    %v512 = vsel %vm480, %v468, 0
    %v515 = vsel %vm480, %v469, 0
    %v518 = vsel %vm480, %v470, 0
    %v521 = vsel %vm480, %v471, 0
    %v524 = vsel %vm480, %v472, 0
    %v527 = vsel %vm480, %v473, 0
    %vm529 = vcmask 1042432
    %v531 = vsel %vm529, %v474, 0
    %533 = vmatprep.subr.mxu0 0.0
    %534 = vmatpush1.msra.mxu0 %v531
    %535 = vmatprep.subr.mxu0 0.0
    %536 = vmatpush1.msra.mxu0 0.0
    %537 = vmatprep.subr.mxu0 0.0
    %538 = vmatpush1.msra.mxu0 0.0
    %539 = vmatprep.subr.mxu0 0.0
    %540 = vmatpush1.msra.mxu0 0.0
    %541 = vmatprep.subr.mxu0 0.0
    %542 = vmatpush1.msra.mxu0 0.0
    %543 = vmatprep.subr.mxu0 0.0
    %544 = vmatpush1.msra.mxu0 0.0
    %545 = vmatprep.subr.mxu0 0.0
    %546 = vmatpush1.msra.mxu0 0.0
    %547 = vmatprep.subr.mxu0 0.0
    %548 = vmatpush1.msra.mxu0 0.0
    %549 = vmatprep.subr.mxu0 0.0
    %550 = vmatpush1.msra.mxu0 0.0
    %551 = vmatprep.subr.mxu0 0.0
    %552 = vmatpush1.msra.mxu0 0.0
    %553 = vmatprep.subr.mxu0 0.0
    %554 = vmatpush1.msra.mxu0 0.0
    %555 = vmatprep.subr.mxu0 0.0
    %556 = vmatpush1.msra.mxu0 0.0
    %557 = vmatprep.subr.mxu0 0.0
    %558 = vmatpush1.msra.mxu0 0.0
    %559 = vmatprep.subr.mxu0 0.0
    %560 = vmatpush1.msra.mxu0 0.0
    %561 = vmatprep.subr.mxu0 0.0
    %562 = vmatpush1.msra.mxu0 0.0
    %563 = vmatprep.subr.mxu0 0.0
    %564 = vmatpush1.msra.mxu0 0.0
    %565 = vmatprep.subr.mxu0 0.0
    %566 = vmatpush1.msra.mxu0 0.0
    %567 = vmatprep.subr.mxu0 0.0
    %568 = vmatpush1.msra.mxu0 0.0
    %569 = vmatprep.subr.mxu0 0.0
    %570 = vmatpush1.msra.mxu0 0.0
    %571 = vmatprep.subr.mxu0 0.0
    %572 = vmatpush1.msra.mxu0 0.0
    %573 = vmatprep.subr.mxu0 0.0
    %574 = vmatpush1.msra.mxu0 0.0
    %575 = vmatprep.subr.mxu0 0.0
    %576 = vmatpush1.msra.mxu0 0.0
    %577 = vmatprep.subr.mxu0 0.0
    %578 = vmatpush1.msra.mxu0 0.0
    %579 = vmatprep.subr.mxu0 0.0
    %580 = vmatpush1.msra.mxu0 0.0
    %581 = vmatprep.subr.mxu0 0.0
    %582 = vmatpush1.msra.mxu0 0.0
    %583 = vmatprep.subr.mxu0 0.0
    %584 = vmatpush1.msra.mxu0 0.0
    %585 = vmatprep.subr.mxu0 0.0
    %586 = vmatpush1.msra.mxu0 0.0
    %587 = vmatprep.subr.mxu0 0.0
    %588 = vmatpush1.msra.mxu0 0.0
    %589 = vmatprep.subr.mxu0 0.0
    %590 = vmatpush1.msra.mxu0 0.0
    %591 = vmatprep.subr.mxu0 0.0
    %592 = vmatpush1.msra.mxu0 0.0
    %593 = vmatprep.subr.mxu0 0.0
    %594 = vmatpush1.msra.mxu0 0.0
    %595 = vmatprep.subr.mxu0 0.0
    %596 = vmatpush1.msra.mxu0 0.0
    %597 = vmatprep.mubr.f32.mxu0 0.0
    %598 = vmatmul.mubr.f32.gmra.mrb[0].mxu0 %v482
    %v599 = vpop.f32.mrb[0].mxu0
    %v600 = vadd.f32 %v479, %v599
    %v601 = vpop.f32.mrb[0].mxu0
    %602 = vmatprep.mubr.f32.mxu0 0.0
    %603 = vmatmul.mubr.f32.gmra.mrb[0].mxu0 %v485
    %v604 = vpop.f32.mrb[0].mxu0
    %v605 = vadd.f32 %v479, %v604
    %v606 = vpop.f32.mrb[0].mxu0
    %607 = vmatprep.mubr.f32.mxu0 0.0
    %608 = vmatmul.mubr.f32.gmra.mrb[0].mxu0 %v488
    %v609 = vpop.f32.mrb[0].mxu0
    %v610 = vadd.f32 %v479, %v609
    %v611 = vpop.f32.mrb[0].mxu0
    %612 = vmatprep.mubr.f32.mxu0 0.0
    %613 = vmatmul.mubr.f32.gmra.mrb[0].mxu0 %v491
    %v614 = vpop.f32.mrb[0].mxu0
    %v615 = vadd.f32 %v479, %v614
    %v616 = vpop.f32.mrb[0].mxu0
    %617 = vmatprep.mubr.f32.mxu0 0.0
    %618 = vmatmul.mubr.f32.gmra.mrb[0].mxu0 %v494
    %v619 = vpop.f32.mrb[0].mxu0
    %v620 = vadd.f32 %v479, %v619
    %v621 = vpop.f32.mrb[0].mxu0
    %622 = vmatprep.mubr.f32.mxu0 0.0
    %623 = vmatmul.mubr.f32.gmra.mrb[0].mxu0 %v497
    %v624 = vpop.f32.mrb[0].mxu0
    %v625 = vadd.f32 %v479, %v624
    %v626 = vpop.f32.mrb[0].mxu0
    %627 = vmatprep.mubr.f32.mxu0 0.0
    %628 = vmatmul.mubr.f32.gmra.mrb[0].mxu0 %v500
    %v629 = vpop.f32.mrb[0].mxu0
    %v630 = vadd.f32 %v479, %v629
    %v631 = vpop.f32.mrb[0].mxu0
    %632 = vmatprep.mubr.f32.mxu0 0.0
    %633 = vmatmul.mubr.f32.gmra.mrb[0].mxu0 %v503
    %v634 = vpop.f32.mrb[0].mxu0
    %v635 = vadd.f32 %v479, %v634
    %v636 = vpop.f32.mrb[0].mxu0
    %637 = vmatprep.mubr.f32.mxu0 0.0
    %638 = vmatmul.mubr.f32.gmra.mrb[0].mxu0 %v506
    %v639 = vpop.f32.mrb[0].mxu0
    %v640 = vadd.f32 %v479, %v639
    %v641 = vpop.f32.mrb[0].mxu0
    %642 = vmatprep.mubr.f32.mxu0 0.0
    %643 = vmatmul.mubr.f32.gmra.mrb[0].mxu0 %v509
    %v644 = vpop.f32.mrb[0].mxu0
    %v645 = vadd.f32 %v479, %v644
    %v646 = vpop.f32.mrb[0].mxu0
    %647 = vmatprep.mubr.f32.mxu0 0.0
    %648 = vmatmul.mubr.f32.gmra.mrb[0].mxu0 %v512
    %v649 = vpop.f32.mrb[0].mxu0
    %v650 = vadd.f32 %v479, %v649
    %v651 = vpop.f32.mrb[0].mxu0
    %652 = vmatprep.mubr.f32.mxu0 0.0
    %653 = vmatmul.mubr.f32.gmra.mrb[0].mxu0 %v515
    %v654 = vpop.f32.mrb[0].mxu0
    %v655 = vadd.f32 %v479, %v654
    %v656 = vpop.f32.mrb[0].mxu0
    %657 = vmatprep.mubr.f32.mxu0 0.0
    %658 = vmatmul.mubr.f32.gmra.mrb[0].mxu0 %v518
    %v659 = vpop.f32.mrb[0].mxu0
    %v660 = vadd.f32 %v479, %v659
    %v661 = vpop.f32.mrb[0].mxu0
    %662 = vmatprep.mubr.f32.mxu0 0.0
    %663 = vmatmul.mubr.f32.gmra.mrb[0].mxu0 %v521
    %v664 = vpop.f32.mrb[0].mxu0
    %v665 = vadd.f32 %v479, %v664
    %v666 = vpop.f32.mrb[0].mxu0
    %667 = vmatprep.mubr.f32.mxu0 0.0
    %668 = vmatmul.mubr.f32.gmra.mrb[0].mxu0 %v524
    %v669 = vpop.f32.mrb[0].mxu0
    %v670 = vadd.f32 %v479, %v669
    %v671 = vpop.f32.mrb[0].mxu0
    %672 = vmatprep.mubr.f32.mxu0 0.0
    %673 = vmatmul.mubr.f32.gmra.mrb[0].mxu0 %v527
    %v674 = vpop.f32.mrb[0].mxu0
    %v675 = vadd.f32 %v479, %v674
    %v676 = vpop.f32.mrb[0].mxu0
    %677 = vdwg.mxu0
    %v678 = vmax.f32 %v600, 0.0
    %v679 = vmax.f32 %v605, 0.0
    %v680 = vmax.f32 %v610, 0.0
    %v681 = vmax.f32 %v615, 0.0
    %v682 = vmax.f32 %v620, 0.0
    %v683 = vmax.f32 %v625, 0.0
    %v684 = vmax.f32 %v630, 0.0
    %v685 = vmax.f32 %v635, 0.0
    %v686 = vmax.f32 %v640, 0.0
    %v687 = vmax.f32 %v645, 0.0
    %v688 = vmax.f32 %v650, 0.0
    %v689 = vmax.f32 %v655, 0.0
    %v690 = vmax.f32 %v660, 0.0
    %v691 = vmax.f32 %v665, 0.0
    %v692 = vmax.f32 %v670, 0.0
    %v693 = vmax.f32 %v675, 0.0
    %v694 = vrot.slane %v678, 7
    %v695 = vrot.slane %v679, 7
    %v696 = vrot.slane %v680, 7
    %v697 = vrot.slane %v681, 7
    %v698 = vrot.slane %v682, 7
    %v699 = vrot.slane %v683, 7
    %v700 = vrot.slane %v684, 7
    %v701 = vrot.slane %v685, 7
    %v702 = vrot.slane %v686, 7
    %v703 = vrot.slane %v687, 7
    %v704 = vrot.slane %v688, 7
    %v705 = vrot.slane %v689, 7
    %v706 = vrot.slane %v690, 7
    %v707 = vrot.slane %v691, 7
    %v708 = vrot.slane %v692, 7
    %v709 = vrot.slane %v693, 7
    %v710 = vsel %vm166, %v708, %v709
    %v711 = vsel %vm166, %v707, %v708
    %v712 = vsel %vm166, %v706, %v707
    %v713 = vsel %vm166, %v705, %v706
    %v714 = vsel %vm166, %v704, %v705
    %v715 = vsel %vm166, %v703, %v704
    %v716 = vsel %vm166, %v702, %v703
    %v717 = vsel %vm166, %v701, %v702
    %v718 = vsel %vm166, %v700, %v701
    %v719 = vsel %vm166, %v699, %v700
    %v720 = vsel %vm166, %v698, %v699
    %v721 = vsel %vm166, %v697, %v698
    %v722 = vsel %vm166, %v696, %v697
    %v723 = vsel %vm166, %v695, %v696
    %v724 = vsel %vm166, %v694, %v695
    %v725 = vsel %vm166, %v709, %v694
    %726 = vset.pattern.permute.xlu0 0
    %727 = vperm.xlu0 %726, %v116
    %v728 = vpop.permute.xlu0 %727
    %730 = vset.pattern.permute.xlu0 0
    %731 = vperm.xlu0 %730, %v117
    %v732 = vpop.permute.xlu0 %731
    %734 = vset.pattern.permute.xlu0 0
    %735 = vperm.xlu0 %734, %v118
    %v736 = vpop.permute.xlu0 %735
    %738 = vset.pattern.permute.xlu0 0
    %739 = vperm.xlu0 %738, %v119
    %v740 = vpop.permute.xlu0 %739
    %742 = vset.pattern.permute.xlu0 0
    %743 = vperm.xlu0 %742, %v120
    %v744 = vpop.permute.xlu0 %743
    %746 = vset.pattern.permute.xlu0 0
    %747 = vperm.xlu0 %746, %v121
    %v748 = vpop.permute.xlu0 %747
    %750 = vset.pattern.permute.xlu0 0
    %751 = vperm.xlu0 %750, %v122
    %v752 = vpop.permute.xlu0 %751
    %754 = vset.pattern.permute.xlu0 0
    %755 = vperm.xlu0 %754, %v123
    %v756 = vpop.permute.xlu0 %755
    %758 = vset.pattern.permute.xlu0 0
    %759 = vperm.xlu0 %758, %v124
    %v760 = vpop.permute.xlu0 %759
    %762 = vset.pattern.permute.xlu0 0
    %763 = vperm.xlu0 %762, %v125
    %v764 = vpop.permute.xlu0 %763
    %766 = vset.pattern.permute.xlu0 0
    %767 = vperm.xlu0 %766, %v126
    %v768 = vpop.permute.xlu0 %767
    %770 = vset.pattern.permute.xlu0 0
    %771 = vperm.xlu0 %770, %v127
    %v772 = vpop.permute.xlu0 %771
    %774 = vset.pattern.permute.xlu0 0
    %775 = vperm.xlu0 %774, %v128
    %v776 = vpop.permute.xlu0 %775
    %778 = vset.pattern.permute.xlu0 0
    %779 = vperm.xlu0 %778, %v129
    %v780 = vpop.permute.xlu0 %779
    %782 = vset.pattern.permute.xlu0 0
    %783 = vperm.xlu0 %782, %v130
    %v784 = vpop.permute.xlu0 %783
    %786 = vset.pattern.permute.xlu0 0
    %787 = vperm.xlu0 %786, %v131
    %v788 = vpop.permute.xlu0 %787
    %v790 = vmul.f32 %v725, %v728
    %v791 = vmul.f32 %v724, %v732
    %v792 = vmul.f32 %v723, %v736
    %v793 = vmul.f32 %v722, %v740
    %v794 = vmul.f32 %v721, %v744
    %v795 = vmul.f32 %v720, %v748
    %v796 = vmul.f32 %v719, %v752
    %v797 = vmul.f32 %v718, %v756
    %v798 = vmul.f32 %v717, %v760
    %v799 = vmul.f32 %v716, %v764
    %v800 = vmul.f32 %v715, %v768
    %v801 = vmul.f32 %v714, %v772
    %v802 = vmul.f32 %v713, %v776
    %v803 = vmul.f32 %v712, %v780
    %v804 = vmul.f32 %v711, %v784
    %v805 = vmul.f32 %v710, %v788
    %v806 = vrot.slane %v678, 1
    %v807 = vrot.slane %v679, 1
    %v808 = vrot.slane %v680, 1
    %v809 = vrot.slane %v681, 1
    %v810 = vrot.slane %v682, 1
    %v811 = vrot.slane %v683, 1
    %v812 = vrot.slane %v684, 1
    %v813 = vrot.slane %v685, 1
    %v814 = vrot.slane %v686, 1
    %v815 = vrot.slane %v687, 1
    %v816 = vrot.slane %v688, 1
    %v817 = vrot.slane %v689, 1
    %v818 = vrot.slane %v690, 1
    %v819 = vrot.slane %v691, 1
    %v820 = vrot.slane %v692, 1
    %v821 = vrot.slane %v693, 1
    %v822 = vsel %vm215, %v820, %v821
    %v823 = vsel %vm215, %v819, %v820
    %v824 = vsel %vm215, %v818, %v819
    %v825 = vsel %vm215, %v817, %v818
    %v826 = vsel %vm215, %v816, %v817
    %v827 = vsel %vm215, %v815, %v816
    %v828 = vsel %vm215, %v814, %v815
    %v829 = vsel %vm215, %v813, %v814
    %v830 = vsel %vm215, %v812, %v813
    %v831 = vsel %vm215, %v811, %v812
    %v832 = vsel %vm215, %v810, %v811
    %v833 = vsel %vm215, %v809, %v810
    %v834 = vsel %vm215, %v808, %v809
    %v835 = vsel %vm215, %v807, %v808
    %v836 = vsel %vm215, %v806, %v807
    %v837 = vsel %vm215, %v821, %v806
    %838 = vset.pattern.permute.xlu0 7
    %839 = vperm.xlu0 %838, %v116
    %v840 = vpop.permute.xlu0 %839
    %842 = vset.pattern.permute.xlu0 7
    %843 = vperm.xlu0 %842, %v117
    %v844 = vpop.permute.xlu0 %843
    %846 = vset.pattern.permute.xlu0 7
    %847 = vperm.xlu0 %846, %v118
    %v848 = vpop.permute.xlu0 %847
    %850 = vset.pattern.permute.xlu0 7
    %851 = vperm.xlu0 %850, %v119
    %v852 = vpop.permute.xlu0 %851
    %854 = vset.pattern.permute.xlu0 7
    %855 = vperm.xlu0 %854, %v120
    %v856 = vpop.permute.xlu0 %855
    %858 = vset.pattern.permute.xlu0 7
    %859 = vperm.xlu0 %858, %v121
    %v860 = vpop.permute.xlu0 %859
    %862 = vset.pattern.permute.xlu0 7
    %863 = vperm.xlu0 %862, %v122
    %v864 = vpop.permute.xlu0 %863
    %866 = vset.pattern.permute.xlu0 7
    %867 = vperm.xlu0 %866, %v123
    %v868 = vpop.permute.xlu0 %867
    %870 = vset.pattern.permute.xlu0 7
    %871 = vperm.xlu0 %870, %v124
    %v872 = vpop.permute.xlu0 %871
    %874 = vset.pattern.permute.xlu0 7
    %875 = vperm.xlu0 %874, %v125
    %v876 = vpop.permute.xlu0 %875
    %878 = vset.pattern.permute.xlu0 7
    %879 = vperm.xlu0 %878, %v126
    %v880 = vpop.permute.xlu0 %879
    %882 = vset.pattern.permute.xlu0 7
    %883 = vperm.xlu0 %882, %v127
    %v884 = vpop.permute.xlu0 %883
    %886 = vset.pattern.permute.xlu0 7
    %887 = vperm.xlu0 %886, %v128
    %v888 = vpop.permute.xlu0 %887
    %890 = vset.pattern.permute.xlu0 7
    %891 = vperm.xlu0 %890, %v129
    %v892 = vpop.permute.xlu0 %891
    %894 = vset.pattern.permute.xlu0 7
    %895 = vperm.xlu0 %894, %v130
    %v896 = vpop.permute.xlu0 %895
    %898 = vset.pattern.permute.xlu0 7
    %899 = vperm.xlu0 %898, %v131
    %v900 = vpop.permute.xlu0 %899
    %v902 = vmul.f32 %v836, %v840
    %v903 = vmul.f32 %v835, %v844
    %v904 = vmul.f32 %v834, %v848
    %v905 = vmul.f32 %v833, %v852
    %v906 = vmul.f32 %v832, %v856
    %v907 = vmul.f32 %v831, %v860
    %v908 = vmul.f32 %v830, %v864
    %v909 = vmul.f32 %v829, %v868
    %v910 = vmul.f32 %v828, %v872
    %v911 = vmul.f32 %v827, %v876
    %v912 = vmul.f32 %v826, %v880
    %v913 = vmul.f32 %v825, %v884
    %v914 = vmul.f32 %v824, %v888
    %v915 = vmul.f32 %v823, %v892
    %v916 = vmul.f32 %v822, %v896
    %v917 = vmul.f32 %v837, %v900
    %934 = vrot.lane.b32.xlu0 %v678, 36
    %v935 = vpop.permute.xlu0 %934
    %936 = vrot.lane.b32.xlu0 %v679, 36
    %v937 = vpop.permute.xlu0 %936
    %938 = vrot.lane.b32.xlu0 %v680, 36
    %v939 = vpop.permute.xlu0 %938
    %940 = vrot.lane.b32.xlu0 %v681, 36
    %v941 = vpop.permute.xlu0 %940
    %942 = vrot.lane.b32.xlu0 %v682, 36
    %v943 = vpop.permute.xlu0 %942
    %944 = vrot.lane.b32.xlu0 %v683, 36
    %v945 = vpop.permute.xlu0 %944
    %946 = vrot.lane.b32.xlu0 %v684, 36
    %v947 = vpop.permute.xlu0 %946
    %948 = vrot.lane.b32.xlu0 %v685, 36
    %v949 = vpop.permute.xlu0 %948
    %950 = vrot.lane.b32.xlu0 %v686, 36
    %v951 = vpop.permute.xlu0 %950
    %952 = vrot.lane.b32.xlu0 %v687, 36
    %v953 = vpop.permute.xlu0 %952
    %954 = vrot.lane.b32.xlu0 %v688, 36
    %v955 = vpop.permute.xlu0 %954
    %956 = vrot.lane.b32.xlu0 %v689, 36
    %v957 = vpop.permute.xlu0 %956
    %958 = vrot.lane.b32.xlu0 %v690, 36
    %v959 = vpop.permute.xlu0 %958
    %960 = vrot.lane.b32.xlu0 %v691, 36
    %v961 = vpop.permute.xlu0 %960
    %962 = vrot.lane.b32.xlu0 %v692, 36
    %v963 = vpop.permute.xlu0 %962
    %964 = vrot.lane.b32.xlu0 %v693, 36
    %v965 = vpop.permute.xlu0 %964
    %998 = vrot.lane.b32.xlu0 %v902, 72
    %v999 = vpop.permute.xlu0 %998
    %1000 = vrot.lane.b32.xlu0 %v903, 72
    %v1001 = vpop.permute.xlu0 %1000
    %1002 = vrot.lane.b32.xlu0 %v904, 72
    %v1003 = vpop.permute.xlu0 %1002
    %1004 = vrot.lane.b32.xlu0 %v905, 72
    %v1005 = vpop.permute.xlu0 %1004
    %1006 = vrot.lane.b32.xlu0 %v906, 72
    %v1007 = vpop.permute.xlu0 %1006
    %1008 = vrot.lane.b32.xlu0 %v907, 72
    %v1009 = vpop.permute.xlu0 %1008
    %1010 = vrot.lane.b32.xlu0 %v908, 72
    %v1011 = vpop.permute.xlu0 %1010
    %1012 = vrot.lane.b32.xlu0 %v909, 72
    %v1013 = vpop.permute.xlu0 %1012
    %1014 = vrot.lane.b32.xlu0 %v910, 72
    %v1015 = vpop.permute.xlu0 %1014
    %1016 = vrot.lane.b32.xlu0 %v911, 72
    %v1017 = vpop.permute.xlu0 %1016
    %1018 = vrot.lane.b32.xlu0 %v912, 72
    %v1019 = vpop.permute.xlu0 %1018
    %1020 = vrot.lane.b32.xlu0 %v913, 72
    %v1021 = vpop.permute.xlu0 %1020
    %1022 = vrot.lane.b32.xlu0 %v914, 72
    %v1023 = vpop.permute.xlu0 %1022
    %1024 = vrot.lane.b32.xlu0 %v915, 72
    %v1025 = vpop.permute.xlu0 %1024
    %1026 = vrot.lane.b32.xlu0 %v916, 72
    %v1027 = vpop.permute.xlu0 %1026
    %1028 = vrot.lane.b32.xlu0 %v917, 72
    %v1029 = vpop.permute.xlu0 %1028
    %vm1046 = vcmask 293888
    %v1047 = vsel %vm1046, %v790, %v935
    %v1048 = vsel %vm1046, %v791, %v937
    %v1049 = vsel %vm1046, %v792, %v939
    %v1050 = vsel %vm1046, %v793, %v941
    %v1051 = vsel %vm1046, %v794, %v943
    %v1052 = vsel %vm1046, %v795, %v945
    %v1053 = vsel %vm1046, %v796, %v947
    %v1054 = vsel %vm1046, %v797, %v949
    %v1055 = vsel %vm1046, %v798, %v951
    %v1056 = vsel %vm1046, %v799, %v953
    %v1057 = vsel %vm1046, %v800, %v955
    %v1058 = vsel %vm1046, %v801, %v957
    %v1059 = vsel %vm1046, %v802, %v959
    %v1060 = vsel %vm1046, %v803, %v961
    %v1061 = vsel %vm1046, %v804, %v963
    %v1062 = vsel %vm1046, %v805, %v965
    %vm1063 = vcmask 588800
    %v1064 = vsel %vm1063, %v1047, %v999
    %v1065 = vsel %vm1063, %v1048, %v1001
    %v1066 = vsel %vm1063, %v1049, %v1003
    %v1067 = vsel %vm1063, %v1050, %v1005
    %v1068 = vsel %vm1063, %v1051, %v1007
    %v1069 = vsel %vm1063, %v1052, %v1009
    %v1070 = vsel %vm1063, %v1053, %v1011
    %v1071 = vsel %vm1063, %v1054, %v1013
    %v1072 = vsel %vm1063, %v1055, %v1015
    %v1073 = vsel %vm1063, %v1056, %v1017
    %v1074 = vsel %vm1063, %v1057, %v1019
    %v1075 = vsel %vm1063, %v1058, %v1021
    %v1076 = vsel %vm1063, %v1059, %v1023
    %v1077 = vsel %vm1063, %v1060, %v1025
    %v1078 = vsel %vm1063, %v1061, %v1027
    %v1079 = vsel %vm1063, %v1062, %v1029
    %v1080 = vld [vmem:[%s8] sm:$0xff]
    %v1081 = vld [vmem:[%s8 + $0x8] sm:$0xff]
    %v1082 = vld [vmem:[%s8 + $0x10] sm:$0xff]
    %v1083 = vld [vmem:[%s8 + $0x18] sm:$0xff]
    %v1084 = vld [vmem:[%s8 + $0x20] sm:$0xff]
    %v1085 = vld [vmem:[%s8 + $0x28] sm:$0xff]
    %v1086 = vld [vmem:[%s8 + $0x30] sm:$0xff]
    %v1087 = vld [vmem:[%s8 + $0x38] sm:$0xff]
    %v1088 = vld [vmem:[%s8 + $0x40] sm:$0xff]
    %v1089 = vld [vmem:[%s8 + $0x48] sm:$0xff]
    %v1090 = vld [vmem:[%s8 + $0x50] sm:$0xff]
    %v1091 = vld [vmem:[%s8 + $0x58] sm:$0xff]
    %v1092 = vld [vmem:[%s8 + $0x60] sm:$0xff]
    %v1093 = vld [vmem:[%s8 + $0x68] sm:$0xf]
    %v1094 = vld [vmem:[%s8 + $0x6c] sm:$0x1]
    %v1095 = vlaneseq
    %v1096 = vshrl.u32 %v1095, 7
    %v1097 = vsub.s32 0, %v1096
    %v1098 = vrot.slane %v1094, %v1097
    %vm1099 = vcmask 883712
    %v1101 = vsel %vm1099, %v1064, 0
    %v1104 = vsel %vm1099, %v1065, 0
    %v1107 = vsel %vm1099, %v1066, 0
    %v1110 = vsel %vm1099, %v1067, 0
    %v1113 = vsel %vm1099, %v1068, 0
    %v1116 = vsel %vm1099, %v1069, 0
    %v1119 = vsel %vm1099, %v1070, 0
    %v1122 = vsel %vm1099, %v1071, 0
    %v1125 = vsel %vm1099, %v1072, 0
    %v1128 = vsel %vm1099, %v1073, 0
    %v1131 = vsel %vm1099, %v1074, 0
    %v1134 = vsel %vm1099, %v1075, 0
    %v1137 = vsel %vm1099, %v1076, 0
    %v1140 = vsel %vm1099, %v1077, 0
    %v1143 = vsel %vm1099, %v1078, 0
    %v1146 = vsel %vm1099, %v1079, 0
    %vm1148 = vcmask 1043456
    %v1150 = vsel %vm1148, %v1093, 0
    %1152 = vmatprep.subr.mxu0 0.0
    %1153 = vmatpush1.msra.mxu0 %v1080
    %1154 = vmatprep.subr.mxu0 0.0
    %1155 = vmatpush1.msra.mxu0 %v1081
    %1156 = vmatprep.subr.mxu0 0.0
    %1157 = vmatpush1.msra.mxu0 %v1082
    %1158 = vmatprep.subr.mxu0 0.0
    %1159 = vmatpush1.msra.mxu0 %v1083
    %1160 = vmatprep.subr.mxu0 0.0
    %1161 = vmatpush1.msra.mxu0 %v1084
    %1162 = vmatprep.subr.mxu0 0.0
    %1163 = vmatpush1.msra.mxu0 %v1085
    %1164 = vmatprep.subr.mxu0 0.0
    %1165 = vmatpush1.msra.mxu0 %v1086
    %1166 = vmatprep.subr.mxu0 0.0
    %1167 = vmatpush1.msra.mxu0 %v1087
    %1168 = vmatprep.subr.mxu0 0.0
    %1169 = vmatpush1.msra.mxu0 %v1088
    %1170 = vmatprep.subr.mxu0 0.0
    %1171 = vmatpush1.msra.mxu0 %v1089
    %1172 = vmatprep.subr.mxu0 0.0
    %1173 = vmatpush1.msra.mxu0 %v1090
    %1174 = vmatprep.subr.mxu0 0.0
    %1175 = vmatpush1.msra.mxu0 %v1091
    %1176 = vmatprep.subr.mxu0 0.0
    %1177 = vmatpush1.msra.mxu0 %v1092
    %1178 = vmatprep.subr.mxu0 0.0
    %1179 = vmatpush1.msra.mxu0 %v1150
    %1180 = vmatprep.subr.mxu0 0.0
    %1181 = vmatpush1.msra.mxu0 0.0
    %1182 = vmatprep.subr.mxu0 0.0
    %1183 = vmatpush1.msra.mxu0 0.0
    %1184 = vmatprep.subr.mxu0 0.0
    %1185 = vmatpush1.msra.mxu0 0.0
    %1186 = vmatprep.subr.mxu0 0.0
    %1187 = vmatpush1.msra.mxu0 0.0
    %1188 = vmatprep.subr.mxu0 0.0
    %1189 = vmatpush1.msra.mxu0 0.0
    %1190 = vmatprep.subr.mxu0 0.0
    %1191 = vmatpush1.msra.mxu0 0.0
    %1192 = vmatprep.subr.mxu0 0.0
    %1193 = vmatpush1.msra.mxu0 0.0
    %1194 = vmatprep.subr.mxu0 0.0
    %1195 = vmatpush1.msra.mxu0 0.0
    %1196 = vmatprep.subr.mxu0 0.0
    %1197 = vmatpush1.msra.mxu0 0.0
    %1198 = vmatprep.subr.mxu0 0.0
    %1199 = vmatpush1.msra.mxu0 0.0
    %1200 = vmatprep.subr.mxu0 0.0
    %1201 = vmatpush1.msra.mxu0 0.0
    %1202 = vmatprep.subr.mxu0 0.0
    %1203 = vmatpush1.msra.mxu0 0.0
    %1204 = vmatprep.subr.mxu0 0.0
    %1205 = vmatpush1.msra.mxu0 0.0
    %1206 = vmatprep.subr.mxu0 0.0
    %1207 = vmatpush1.msra.mxu0 0.0
    %1208 = vmatprep.subr.mxu0 0.0
    %1209 = vmatpush1.msra.mxu0 0.0
    %1210 = vmatprep.subr.mxu0 0.0
    %1211 = vmatpush1.msra.mxu0 0.0
    %1212 = vmatprep.subr.mxu0 0.0
    %1213 = vmatpush1.msra.mxu0 0.0
    %1214 = vmatprep.subr.mxu0 0.0
    %1215 = vmatpush1.msra.mxu0 0.0
    %1216 = vmatprep.mubr.f32.mxu0 0.0
    %1217 = vmatmul.mubr.f32.gmra.mrb[0].mxu0 %v1101
    %v1218 = vpop.f32.mrb[0].mxu0
    %v1219 = vadd.f32 %v1098, %v1218
    %v1220 = vpop.f32.mrb[0].mxu0
    %1221 = vmatprep.mubr.f32.mxu0 0.0
    %1222 = vmatmul.mubr.f32.gmra.mrb[0].mxu0 %v1104
    %v1223 = vpop.f32.mrb[0].mxu0
    %v1224 = vadd.f32 %v1098, %v1223
    %v1225 = vpop.f32.mrb[0].mxu0
    %1226 = vmatprep.mubr.f32.mxu0 0.0
    %1227 = vmatmul.mubr.f32.gmra.mrb[0].mxu0 %v1107
    %v1228 = vpop.f32.mrb[0].mxu0
    %v1229 = vadd.f32 %v1098, %v1228
    %v1230 = vpop.f32.mrb[0].mxu0
    %1231 = vmatprep.mubr.f32.mxu0 0.0
    %1232 = vmatmul.mubr.f32.gmra.mrb[0].mxu0 %v1110
    %v1233 = vpop.f32.mrb[0].mxu0
    %v1234 = vadd.f32 %v1098, %v1233
    %v1235 = vpop.f32.mrb[0].mxu0
    %1236 = vmatprep.mubr.f32.mxu0 0.0
    %1237 = vmatmul.mubr.f32.gmra.mrb[0].mxu0 %v1113
    %v1238 = vpop.f32.mrb[0].mxu0
    %v1239 = vadd.f32 %v1098, %v1238
    %v1240 = vpop.f32.mrb[0].mxu0
    %1241 = vmatprep.mubr.f32.mxu0 0.0
    %1242 = vmatmul.mubr.f32.gmra.mrb[0].mxu0 %v1116
    %v1243 = vpop.f32.mrb[0].mxu0
    %v1244 = vadd.f32 %v1098, %v1243
    %v1245 = vpop.f32.mrb[0].mxu0
    %1246 = vmatprep.mubr.f32.mxu0 0.0
    %1247 = vmatmul.mubr.f32.gmra.mrb[0].mxu0 %v1119
    %v1248 = vpop.f32.mrb[0].mxu0
    %v1249 = vadd.f32 %v1098, %v1248
    %v1250 = vpop.f32.mrb[0].mxu0
    %1251 = vmatprep.mubr.f32.mxu0 0.0
    %1252 = vmatmul.mubr.f32.gmra.mrb[0].mxu0 %v1122
    %v1253 = vpop.f32.mrb[0].mxu0
    %v1254 = vadd.f32 %v1098, %v1253
    %v1255 = vpop.f32.mrb[0].mxu0
    %1256 = vmatprep.mubr.f32.mxu0 0.0
    %1257 = vmatmul.mubr.f32.gmra.mrb[0].mxu0 %v1125
    %v1258 = vpop.f32.mrb[0].mxu0
    %v1259 = vadd.f32 %v1098, %v1258
    %v1260 = vpop.f32.mrb[0].mxu0
    %1261 = vmatprep.mubr.f32.mxu0 0.0
    %1262 = vmatmul.mubr.f32.gmra.mrb[0].mxu0 %v1128
    %v1263 = vpop.f32.mrb[0].mxu0
    %v1264 = vadd.f32 %v1098, %v1263
    %v1265 = vpop.f32.mrb[0].mxu0
    %1266 = vmatprep.mubr.f32.mxu0 0.0
    %1267 = vmatmul.mubr.f32.gmra.mrb[0].mxu0 %v1131
    %v1268 = vpop.f32.mrb[0].mxu0
    %v1269 = vadd.f32 %v1098, %v1268
    %v1270 = vpop.f32.mrb[0].mxu0
    %1271 = vmatprep.mubr.f32.mxu0 0.0
    %1272 = vmatmul.mubr.f32.gmra.mrb[0].mxu0 %v1134
    %v1273 = vpop.f32.mrb[0].mxu0
    %v1274 = vadd.f32 %v1098, %v1273
    %v1275 = vpop.f32.mrb[0].mxu0
    %1276 = vmatprep.mubr.f32.mxu0 0.0
    %1277 = vmatmul.mubr.f32.gmra.mrb[0].mxu0 %v1137
    %v1278 = vpop.f32.mrb[0].mxu0
    %v1279 = vadd.f32 %v1098, %v1278
    %v1280 = vpop.f32.mrb[0].mxu0
    %1281 = vmatprep.mubr.f32.mxu0 0.0
    %1282 = vmatmul.mubr.f32.gmra.mrb[0].mxu0 %v1140
    %v1283 = vpop.f32.mrb[0].mxu0
    %v1284 = vadd.f32 %v1098, %v1283
    %v1285 = vpop.f32.mrb[0].mxu0
    %1286 = vmatprep.mubr.f32.mxu0 0.0
    %1287 = vmatmul.mubr.f32.gmra.mrb[0].mxu0 %v1143
    %v1288 = vpop.f32.mrb[0].mxu0
    %v1289 = vadd.f32 %v1098, %v1288
    %v1290 = vpop.f32.mrb[0].mxu0
    %1291 = vmatprep.mubr.f32.mxu0 0.0
    %1292 = vmatmul.mubr.f32.gmra.mrb[0].mxu0 %v1146
    %v1293 = vpop.f32.mrb[0].mxu0
    %v1294 = vadd.f32 %v1098, %v1293
    %v1295 = vpop.f32.mrb[0].mxu0
    %1296 = vdwg.mxu0
    %v1297 = vmax.f32 %v1219, 0.0
    %v1298 = vmax.f32 %v1224, 0.0
    %v1299 = vmax.f32 %v1229, 0.0
    %v1300 = vmax.f32 %v1234, 0.0
    %v1301 = vmax.f32 %v1239, 0.0
    %v1302 = vmax.f32 %v1244, 0.0
    %v1303 = vmax.f32 %v1249, 0.0
    %v1304 = vmax.f32 %v1254, 0.0
    %v1305 = vmax.f32 %v1259, 0.0
    %v1306 = vmax.f32 %v1264, 0.0
    %v1307 = vmax.f32 %v1269, 0.0
    %v1308 = vmax.f32 %v1274, 0.0
    %v1309 = vmax.f32 %v1279, 0.0
    %v1310 = vmax.f32 %v1284, 0.0
    %v1311 = vmax.f32 %v1289, 0.0
    %v1312 = vmax.f32 %v1294, 0.0
    %v1313 = vrot.slane %v1297, 7
    %v1314 = vrot.slane %v1298, 7
    %v1315 = vrot.slane %v1299, 7
    %v1316 = vrot.slane %v1300, 7
    %v1317 = vrot.slane %v1301, 7
    %v1318 = vrot.slane %v1302, 7
    %v1319 = vrot.slane %v1303, 7
    %v1320 = vrot.slane %v1304, 7
    %v1321 = vrot.slane %v1305, 7
    %v1322 = vrot.slane %v1306, 7
    %v1323 = vrot.slane %v1307, 7
    %v1324 = vrot.slane %v1308, 7
    %v1325 = vrot.slane %v1309, 7
    %v1326 = vrot.slane %v1310, 7
    %v1327 = vrot.slane %v1311, 7
    %v1328 = vrot.slane %v1312, 7
    %v1329 = vsel %vm166, %v1327, %v1328
    %v1330 = vsel %vm166, %v1326, %v1327
    %v1331 = vsel %vm166, %v1325, %v1326
    %v1332 = vsel %vm166, %v1324, %v1325
    %v1333 = vsel %vm166, %v1323, %v1324
    %v1334 = vsel %vm166, %v1322, %v1323
    %v1335 = vsel %vm166, %v1321, %v1322
    %v1336 = vsel %vm166, %v1320, %v1321
    %v1337 = vsel %vm166, %v1319, %v1320
    %v1338 = vsel %vm166, %v1318, %v1319
    %v1339 = vsel %vm166, %v1317, %v1318
    %v1340 = vsel %vm166, %v1316, %v1317
    %v1341 = vsel %vm166, %v1315, %v1316
    %v1342 = vsel %vm166, %v1314, %v1315
    %v1343 = vsel %vm166, %v1313, %v1314
    %v1344 = vsel %vm166, %v1328, %v1313
    %v1345 = vmul.f32 %v1344, %v728
    %v1346 = vmul.f32 %v1343, %v732
    %v1347 = vmul.f32 %v1342, %v736
    %v1348 = vmul.f32 %v1341, %v740
    %v1349 = vmul.f32 %v1340, %v744
    %v1350 = vmul.f32 %v1339, %v748
    %v1351 = vmul.f32 %v1338, %v752
    %v1352 = vmul.f32 %v1337, %v756
    %v1353 = vmul.f32 %v1336, %v760
    %v1354 = vmul.f32 %v1335, %v764
    %v1355 = vmul.f32 %v1334, %v768
    %v1356 = vmul.f32 %v1333, %v772
    %v1357 = vmul.f32 %v1332, %v776
    %v1358 = vmul.f32 %v1331, %v780
    %v1359 = vmul.f32 %v1330, %v784
    %v1360 = vmul.f32 %v1329, %v788
    %v1361 = vrot.slane %v1297, 1
    %v1362 = vrot.slane %v1298, 1
    %v1363 = vrot.slane %v1299, 1
    %v1364 = vrot.slane %v1300, 1
    %v1365 = vrot.slane %v1301, 1
    %v1366 = vrot.slane %v1302, 1
    %v1367 = vrot.slane %v1303, 1
    %v1368 = vrot.slane %v1304, 1
    %v1369 = vrot.slane %v1305, 1
    %v1370 = vrot.slane %v1306, 1
    %v1371 = vrot.slane %v1307, 1
    %v1372 = vrot.slane %v1308, 1
    %v1373 = vrot.slane %v1309, 1
    %v1374 = vrot.slane %v1310, 1
    %v1375 = vrot.slane %v1311, 1
    %v1376 = vrot.slane %v1312, 1
    %v1377 = vsel %vm215, %v1375, %v1376
    %v1378 = vsel %vm215, %v1374, %v1375
    %v1379 = vsel %vm215, %v1373, %v1374
    %v1380 = vsel %vm215, %v1372, %v1373
    %v1381 = vsel %vm215, %v1371, %v1372
    %v1382 = vsel %vm215, %v1370, %v1371
    %v1383 = vsel %vm215, %v1369, %v1370
    %v1384 = vsel %vm215, %v1368, %v1369
    %v1385 = vsel %vm215, %v1367, %v1368
    %v1386 = vsel %vm215, %v1366, %v1367
    %v1387 = vsel %vm215, %v1365, %v1366
    %v1388 = vsel %vm215, %v1364, %v1365
    %v1389 = vsel %vm215, %v1363, %v1364
    %v1390 = vsel %vm215, %v1362, %v1363
    %v1391 = vsel %vm215, %v1361, %v1362
    %v1392 = vsel %vm215, %v1376, %v1361
    %v1393 = vmul.f32 %v1391, %v840
    %v1394 = vmul.f32 %v1390, %v844
    %v1395 = vmul.f32 %v1389, %v848
    %v1396 = vmul.f32 %v1388, %v852
    %v1397 = vmul.f32 %v1387, %v856
    %v1398 = vmul.f32 %v1386, %v860
    %v1399 = vmul.f32 %v1385, %v864
    %v1400 = vmul.f32 %v1384, %v868
    %v1401 = vmul.f32 %v1383, %v872
    %v1402 = vmul.f32 %v1382, %v876
    %v1403 = vmul.f32 %v1381, %v880
    %v1404 = vmul.f32 %v1380, %v884
    %v1405 = vmul.f32 %v1379, %v888
    %v1406 = vmul.f32 %v1378, %v892
    %v1407 = vmul.f32 %v1377, %v896
    %v1408 = vmul.f32 %v1392, %v900
    %1425 = vrot.lane.b32.xlu0 %v1297, 36
    %v1426 = vpop.permute.xlu0 %1425
    %1427 = vrot.lane.b32.xlu0 %v1298, 36
    %v1428 = vpop.permute.xlu0 %1427
    %1429 = vrot.lane.b32.xlu0 %v1299, 36
    %v1430 = vpop.permute.xlu0 %1429
    %1431 = vrot.lane.b32.xlu0 %v1300, 36
    %v1432 = vpop.permute.xlu0 %1431
    %1433 = vrot.lane.b32.xlu0 %v1301, 36
    %v1434 = vpop.permute.xlu0 %1433
    %1435 = vrot.lane.b32.xlu0 %v1302, 36
    %v1436 = vpop.permute.xlu0 %1435
    %1437 = vrot.lane.b32.xlu0 %v1303, 36
    %v1438 = vpop.permute.xlu0 %1437
    %1439 = vrot.lane.b32.xlu0 %v1304, 36
    %v1440 = vpop.permute.xlu0 %1439
    %1441 = vrot.lane.b32.xlu0 %v1305, 36
    %v1442 = vpop.permute.xlu0 %1441
    %1443 = vrot.lane.b32.xlu0 %v1306, 36
    %v1444 = vpop.permute.xlu0 %1443
    %1445 = vrot.lane.b32.xlu0 %v1307, 36
    %v1446 = vpop.permute.xlu0 %1445
    %1447 = vrot.lane.b32.xlu0 %v1308, 36
    %v1448 = vpop.permute.xlu0 %1447
    %1449 = vrot.lane.b32.xlu0 %v1309, 36
    %v1450 = vpop.permute.xlu0 %1449
    %1451 = vrot.lane.b32.xlu0 %v1310, 36
    %v1452 = vpop.permute.xlu0 %1451
    %1453 = vrot.lane.b32.xlu0 %v1311, 36
    %v1454 = vpop.permute.xlu0 %1453
    %1455 = vrot.lane.b32.xlu0 %v1312, 36
    %v1456 = vpop.permute.xlu0 %1455
    %1489 = vrot.lane.b32.xlu0 %v1393, 72
    %v1490 = vpop.permute.xlu0 %1489
    %1491 = vrot.lane.b32.xlu0 %v1394, 72
    %v1492 = vpop.permute.xlu0 %1491
    %1493 = vrot.lane.b32.xlu0 %v1395, 72
    %v1494 = vpop.permute.xlu0 %1493
    %1495 = vrot.lane.b32.xlu0 %v1396, 72
    %v1496 = vpop.permute.xlu0 %1495
    %1497 = vrot.lane.b32.xlu0 %v1397, 72
    %v1498 = vpop.permute.xlu0 %1497
    %1499 = vrot.lane.b32.xlu0 %v1398, 72
    %v1500 = vpop.permute.xlu0 %1499
    %1501 = vrot.lane.b32.xlu0 %v1399, 72
    %v1502 = vpop.permute.xlu0 %1501
    %1503 = vrot.lane.b32.xlu0 %v1400, 72
    %v1504 = vpop.permute.xlu0 %1503
    %1505 = vrot.lane.b32.xlu0 %v1401, 72
    %v1506 = vpop.permute.xlu0 %1505
    %1507 = vrot.lane.b32.xlu0 %v1402, 72
    %v1508 = vpop.permute.xlu0 %1507
    %1509 = vrot.lane.b32.xlu0 %v1403, 72
    %v1510 = vpop.permute.xlu0 %1509
    %1511 = vrot.lane.b32.xlu0 %v1404, 72
    %v1512 = vpop.permute.xlu0 %1511
    %1513 = vrot.lane.b32.xlu0 %v1405, 72
    %v1514 = vpop.permute.xlu0 %1513
    %1515 = vrot.lane.b32.xlu0 %v1406, 72
    %v1516 = vpop.permute.xlu0 %1515
    %1517 = vrot.lane.b32.xlu0 %v1407, 72
    %v1518 = vpop.permute.xlu0 %1517
    %1519 = vrot.lane.b32.xlu0 %v1408, 72
    %v1520 = vpop.permute.xlu0 %1519
    %v1537 = vsel %vm1046, %v1345, %v1426
    %v1538 = vsel %vm1046, %v1346, %v1428
    %v1539 = vsel %vm1046, %v1347, %v1430
    %v1540 = vsel %vm1046, %v1348, %v1432
    %v1541 = vsel %vm1046, %v1349, %v1434
    %v1542 = vsel %vm1046, %v1350, %v1436
    %v1543 = vsel %vm1046, %v1351, %v1438
    %v1544 = vsel %vm1046, %v1352, %v1440
    %v1545 = vsel %vm1046, %v1353, %v1442
    %v1546 = vsel %vm1046, %v1354, %v1444
    %v1547 = vsel %vm1046, %v1355, %v1446
    %v1548 = vsel %vm1046, %v1356, %v1448
    %v1549 = vsel %vm1046, %v1357, %v1450
    %v1550 = vsel %vm1046, %v1358, %v1452
    %v1551 = vsel %vm1046, %v1359, %v1454
    %v1552 = vsel %vm1046, %v1360, %v1456
    %v1553 = vsel %vm1063, %v1537, %v1490
    %v1554 = vsel %vm1063, %v1538, %v1492
    %v1555 = vsel %vm1063, %v1539, %v1494
    %v1556 = vsel %vm1063, %v1540, %v1496
    %v1557 = vsel %vm1063, %v1541, %v1498
    %v1558 = vsel %vm1063, %v1542, %v1500
    %v1559 = vsel %vm1063, %v1543, %v1502
    %v1560 = vsel %vm1063, %v1544, %v1504
    %v1561 = vsel %vm1063, %v1545, %v1506
    %v1562 = vsel %vm1063, %v1546, %v1508
    %v1563 = vsel %vm1063, %v1547, %v1510
    %v1564 = vsel %vm1063, %v1548, %v1512
    %v1565 = vsel %vm1063, %v1549, %v1514
    %v1566 = vsel %vm1063, %v1550, %v1516
    %v1567 = vsel %vm1063, %v1551, %v1518
    %v1568 = vsel %vm1063, %v1552, %v1520
    %v1569 = vld [vmem:[%s9] sm:$0xff]
    %v1570 = vld [vmem:[%s9 + $0x8] sm:$0xff]
    %v1571 = vld [vmem:[%s9 + $0x10] sm:$0xff]
    %v1572 = vld [vmem:[%s9 + $0x18] sm:$0xff]
    %v1573 = vld [vmem:[%s9 + $0x20] sm:$0xff]
    %v1574 = vld [vmem:[%s9 + $0x28] sm:$0xff]
    %v1575 = vld [vmem:[%s9 + $0x30] sm:$0xff]
    %v1576 = vld [vmem:[%s9 + $0x38] sm:$0xff]
    %v1577 = vld [vmem:[%s9 + $0x40] sm:$0xff]
    %v1578 = vld [vmem:[%s9 + $0x48] sm:$0xff]
    %v1579 = vld [vmem:[%s9 + $0x50] sm:$0xff]
    %v1580 = vld [vmem:[%s9 + $0x58] sm:$0xff]
    %v1581 = vld [vmem:[%s9 + $0x60] sm:$0xff]
    %v1582 = vld [vmem:[%s9 + $0x68] sm:$0xf]
    %v1583 = vld [vmem:[%s9 + $0x6c] sm:$0x1]
    %v1584 = vlaneseq
    %v1585 = vshrl.u32 %v1584, 7
    %v1586 = vsub.s32 0, %v1585
    %v1587 = vrot.slane %v1583, %v1586
    %v1589 = vsel %vm1099, %v1553, 0
    %v1592 = vsel %vm1099, %v1554, 0
    %v1595 = vsel %vm1099, %v1555, 0
    %v1598 = vsel %vm1099, %v1556, 0
    %v1601 = vsel %vm1099, %v1557, 0
    %v1604 = vsel %vm1099, %v1558, 0
    %v1607 = vsel %vm1099, %v1559, 0
    %v1610 = vsel %vm1099, %v1560, 0
    %v1613 = vsel %vm1099, %v1561, 0
    %v1616 = vsel %vm1099, %v1562, 0
    %v1619 = vsel %vm1099, %v1563, 0
    %v1622 = vsel %vm1099, %v1564, 0
    %v1625 = vsel %vm1099, %v1565, 0
    %v1628 = vsel %vm1099, %v1566, 0
    %v1631 = vsel %vm1099, %v1567, 0
    %v1634 = vsel %vm1099, %v1568, 0
    %v1637 = vsel %vm1148, %v1582, 0
    %1639 = vmatprep.subr.mxu0 0.0
    %1640 = vmatpush1.msra.mxu0 %v1569
    %1641 = vmatprep.subr.mxu0 0.0
    %1642 = vmatpush1.msra.mxu0 %v1570
    %1643 = vmatprep.subr.mxu0 0.0
    %1644 = vmatpush1.msra.mxu0 %v1571
    %1645 = vmatprep.subr.mxu0 0.0
    %1646 = vmatpush1.msra.mxu0 %v1572
    %1647 = vmatprep.subr.mxu0 0.0
    %1648 = vmatpush1.msra.mxu0 %v1573
    %1649 = vmatprep.subr.mxu0 0.0
    %1650 = vmatpush1.msra.mxu0 %v1574
    %1651 = vmatprep.subr.mxu0 0.0
    %1652 = vmatpush1.msra.mxu0 %v1575
    %1653 = vmatprep.subr.mxu0 0.0
    %1654 = vmatpush1.msra.mxu0 %v1576
    %1655 = vmatprep.subr.mxu0 0.0
    %1656 = vmatpush1.msra.mxu0 %v1577
    %1657 = vmatprep.subr.mxu0 0.0
    %1658 = vmatpush1.msra.mxu0 %v1578
    %1659 = vmatprep.subr.mxu0 0.0
    %1660 = vmatpush1.msra.mxu0 %v1579
    %1661 = vmatprep.subr.mxu0 0.0
    %1662 = vmatpush1.msra.mxu0 %v1580
    %1663 = vmatprep.subr.mxu0 0.0
    %1664 = vmatpush1.msra.mxu0 %v1581
    %1665 = vmatprep.subr.mxu0 0.0
    %1666 = vmatpush1.msra.mxu0 %v1637
    %1667 = vmatprep.subr.mxu0 0.0
    %1668 = vmatpush1.msra.mxu0 0.0
    %1669 = vmatprep.subr.mxu0 0.0
    %1670 = vmatpush1.msra.mxu0 0.0
    %1671 = vmatprep.subr.mxu0 0.0
    %1672 = vmatpush1.msra.mxu0 0.0
    %1673 = vmatprep.subr.mxu0 0.0
    %1674 = vmatpush1.msra.mxu0 0.0
    %1675 = vmatprep.subr.mxu0 0.0
    %1676 = vmatpush1.msra.mxu0 0.0
    %1677 = vmatprep.subr.mxu0 0.0
    %1678 = vmatpush1.msra.mxu0 0.0
    %1679 = vmatprep.subr.mxu0 0.0
    %1680 = vmatpush1.msra.mxu0 0.0
    %1681 = vmatprep.subr.mxu0 0.0
    %1682 = vmatpush1.msra.mxu0 0.0
    %1683 = vmatprep.subr.mxu0 0.0
    %1684 = vmatpush1.msra.mxu0 0.0
    %1685 = vmatprep.subr.mxu0 0.0
    %1686 = vmatpush1.msra.mxu0 0.0
    %1687 = vmatprep.subr.mxu0 0.0
    %1688 = vmatpush1.msra.mxu0 0.0
    %1689 = vmatprep.subr.mxu0 0.0
    %1690 = vmatpush1.msra.mxu0 0.0
    %1691 = vmatprep.subr.mxu0 0.0
    %1692 = vmatpush1.msra.mxu0 0.0
    %1693 = vmatprep.subr.mxu0 0.0
    %1694 = vmatpush1.msra.mxu0 0.0
    %1695 = vmatprep.subr.mxu0 0.0
    %1696 = vmatpush1.msra.mxu0 0.0
    %1697 = vmatprep.subr.mxu0 0.0
    %1698 = vmatpush1.msra.mxu0 0.0
    %1699 = vmatprep.subr.mxu0 0.0
    %1700 = vmatpush1.msra.mxu0 0.0
    %1701 = vmatprep.subr.mxu0 0.0
    %1702 = vmatpush1.msra.mxu0 0.0
    %1703 = vmatprep.mubr.f32.mxu0 0.0
    %1704 = vmatmul.mubr.f32.gmra.mrb[0].mxu0 %v1589
    %v1705 = vpop.f32.mrb[0].mxu0
    %v1706 = vadd.f32 %v1587, %v1705
    %v1707 = vpop.f32.mrb[0].mxu0
    %1708 = vmatprep.mubr.f32.mxu0 0.0
    %1709 = vmatmul.mubr.f32.gmra.mrb[0].mxu0 %v1592
    %v1710 = vpop.f32.mrb[0].mxu0
    %v1711 = vadd.f32 %v1587, %v1710
    %v1712 = vpop.f32.mrb[0].mxu0
    %1713 = vmatprep.mubr.f32.mxu0 0.0
    %1714 = vmatmul.mubr.f32.gmra.mrb[0].mxu0 %v1595
    %v1715 = vpop.f32.mrb[0].mxu0
    %v1716 = vadd.f32 %v1587, %v1715
    %v1717 = vpop.f32.mrb[0].mxu0
    %1718 = vmatprep.mubr.f32.mxu0 0.0
    %1719 = vmatmul.mubr.f32.gmra.mrb[0].mxu0 %v1598
    %v1720 = vpop.f32.mrb[0].mxu0
    %v1721 = vadd.f32 %v1587, %v1720
    %v1722 = vpop.f32.mrb[0].mxu0
    %1723 = vmatprep.mubr.f32.mxu0 0.0
    %1724 = vmatmul.mubr.f32.gmra.mrb[0].mxu0 %v1601
    %v1725 = vpop.f32.mrb[0].mxu0
    %v1726 = vadd.f32 %v1587, %v1725
    %v1727 = vpop.f32.mrb[0].mxu0
    %1728 = vmatprep.mubr.f32.mxu0 0.0
    %1729 = vmatmul.mubr.f32.gmra.mrb[0].mxu0 %v1604
    %v1730 = vpop.f32.mrb[0].mxu0
    %v1731 = vadd.f32 %v1587, %v1730
    %v1732 = vpop.f32.mrb[0].mxu0
    %1733 = vmatprep.mubr.f32.mxu0 0.0
    %1734 = vmatmul.mubr.f32.gmra.mrb[0].mxu0 %v1607
    %v1735 = vpop.f32.mrb[0].mxu0
    %v1736 = vadd.f32 %v1587, %v1735
    %v1737 = vpop.f32.mrb[0].mxu0
    %1738 = vmatprep.mubr.f32.mxu0 0.0
    %1739 = vmatmul.mubr.f32.gmra.mrb[0].mxu0 %v1610
    %v1740 = vpop.f32.mrb[0].mxu0
    %v1741 = vadd.f32 %v1587, %v1740
    %v1742 = vpop.f32.mrb[0].mxu0
    %1743 = vmatprep.mubr.f32.mxu0 0.0
    %1744 = vmatmul.mubr.f32.gmra.mrb[0].mxu0 %v1613
    %v1745 = vpop.f32.mrb[0].mxu0
    %v1746 = vadd.f32 %v1587, %v1745
    %v1747 = vpop.f32.mrb[0].mxu0
    %1748 = vmatprep.mubr.f32.mxu0 0.0
    %1749 = vmatmul.mubr.f32.gmra.mrb[0].mxu0 %v1616
    %v1750 = vpop.f32.mrb[0].mxu0
    %v1751 = vadd.f32 %v1587, %v1750
    %v1752 = vpop.f32.mrb[0].mxu0
    %1753 = vmatprep.mubr.f32.mxu0 0.0
    %1754 = vmatmul.mubr.f32.gmra.mrb[0].mxu0 %v1619
    %v1755 = vpop.f32.mrb[0].mxu0
    %v1756 = vadd.f32 %v1587, %v1755
    %v1757 = vpop.f32.mrb[0].mxu0
    %1758 = vmatprep.mubr.f32.mxu0 0.0
    %1759 = vmatmul.mubr.f32.gmra.mrb[0].mxu0 %v1622
    %v1760 = vpop.f32.mrb[0].mxu0
    %v1761 = vadd.f32 %v1587, %v1760
    %v1762 = vpop.f32.mrb[0].mxu0
    %1763 = vmatprep.mubr.f32.mxu0 0.0
    %1764 = vmatmul.mubr.f32.gmra.mrb[0].mxu0 %v1625
    %v1765 = vpop.f32.mrb[0].mxu0
    %v1766 = vadd.f32 %v1587, %v1765
    %v1767 = vpop.f32.mrb[0].mxu0
    %1768 = vmatprep.mubr.f32.mxu0 0.0
    %1769 = vmatmul.mubr.f32.gmra.mrb[0].mxu0 %v1628
    %v1770 = vpop.f32.mrb[0].mxu0
    %v1771 = vadd.f32 %v1587, %v1770
    %v1772 = vpop.f32.mrb[0].mxu0
    %1773 = vmatprep.mubr.f32.mxu0 0.0
    %1774 = vmatmul.mubr.f32.gmra.mrb[0].mxu0 %v1631
    %v1775 = vpop.f32.mrb[0].mxu0
    %v1776 = vadd.f32 %v1587, %v1775
    %v1777 = vpop.f32.mrb[0].mxu0
    %1778 = vmatprep.mubr.f32.mxu0 0.0
    %1779 = vmatmul.mubr.f32.gmra.mrb[0].mxu0 %v1634
    %v1780 = vpop.f32.mrb[0].mxu0
    %v1781 = vadd.f32 %v1587, %v1780
    %v1782 = vpop.f32.mrb[0].mxu0
    %1783 = vdwg.mxu0
    %v1784 = vmax.f32 %v1706, 0.0
    %v1785 = vmax.f32 %v1711, 0.0
    %v1786 = vmax.f32 %v1716, 0.0
    %v1787 = vmax.f32 %v1721, 0.0
    %v1788 = vmax.f32 %v1726, 0.0
    %v1789 = vmax.f32 %v1731, 0.0
    %v1790 = vmax.f32 %v1736, 0.0
    %v1791 = vmax.f32 %v1741, 0.0
    %v1792 = vmax.f32 %v1746, 0.0
    %v1793 = vmax.f32 %v1751, 0.0
    %v1794 = vmax.f32 %v1756, 0.0
    %v1795 = vmax.f32 %v1761, 0.0
    %v1796 = vmax.f32 %v1766, 0.0
    %v1797 = vmax.f32 %v1771, 0.0
    %v1798 = vmax.f32 %v1776, 0.0
    %v1799 = vmax.f32 %v1781, 0.0
    %v1800 = vrot.slane %v1784, 7
    %v1801 = vrot.slane %v1785, 7
    %v1802 = vrot.slane %v1786, 7
    %v1803 = vrot.slane %v1787, 7
    %v1804 = vrot.slane %v1788, 7
    %v1805 = vrot.slane %v1789, 7
    %v1806 = vrot.slane %v1790, 7
    %v1807 = vrot.slane %v1791, 7
    %v1808 = vrot.slane %v1792, 7
    %v1809 = vrot.slane %v1793, 7
    %v1810 = vrot.slane %v1794, 7
    %v1811 = vrot.slane %v1795, 7
    %v1812 = vrot.slane %v1796, 7
    %v1813 = vrot.slane %v1797, 7
    %v1814 = vrot.slane %v1798, 7
    %v1815 = vrot.slane %v1799, 7
    %v1816 = vsel %vm166, %v1814, %v1815
    %v1817 = vsel %vm166, %v1813, %v1814
    %v1818 = vsel %vm166, %v1812, %v1813
    %v1819 = vsel %vm166, %v1811, %v1812
    %v1820 = vsel %vm166, %v1810, %v1811
    %v1821 = vsel %vm166, %v1809, %v1810
    %v1822 = vsel %vm166, %v1808, %v1809
    %v1823 = vsel %vm166, %v1807, %v1808
    %v1824 = vsel %vm166, %v1806, %v1807
    %v1825 = vsel %vm166, %v1805, %v1806
    %v1826 = vsel %vm166, %v1804, %v1805
    %v1827 = vsel %vm166, %v1803, %v1804
    %v1828 = vsel %vm166, %v1802, %v1803
    %v1829 = vsel %vm166, %v1801, %v1802
    %v1830 = vsel %vm166, %v1800, %v1801
    %v1831 = vsel %vm166, %v1815, %v1800
    %v1832 = vmul.f32 %v1831, %v728
    %v1833 = vmul.f32 %v1830, %v732
    %v1834 = vmul.f32 %v1829, %v736
    %v1835 = vmul.f32 %v1828, %v740
    %v1836 = vmul.f32 %v1827, %v744
    %v1837 = vmul.f32 %v1826, %v748
    %v1838 = vmul.f32 %v1825, %v752
    %v1839 = vmul.f32 %v1824, %v756
    %v1840 = vmul.f32 %v1823, %v760
    %v1841 = vmul.f32 %v1822, %v764
    %v1842 = vmul.f32 %v1821, %v768
    %v1843 = vmul.f32 %v1820, %v772
    %v1844 = vmul.f32 %v1819, %v776
    %v1845 = vmul.f32 %v1818, %v780
    %v1846 = vmul.f32 %v1817, %v784
    %v1847 = vmul.f32 %v1816, %v788
    %v1848 = vrot.slane %v1784, 1
    %v1849 = vrot.slane %v1785, 1
    %v1850 = vrot.slane %v1786, 1
    %v1851 = vrot.slane %v1787, 1
    %v1852 = vrot.slane %v1788, 1
    %v1853 = vrot.slane %v1789, 1
    %v1854 = vrot.slane %v1790, 1
    %v1855 = vrot.slane %v1791, 1
    %v1856 = vrot.slane %v1792, 1
    %v1857 = vrot.slane %v1793, 1
    %v1858 = vrot.slane %v1794, 1
    %v1859 = vrot.slane %v1795, 1
    %v1860 = vrot.slane %v1796, 1
    %v1861 = vrot.slane %v1797, 1
    %v1862 = vrot.slane %v1798, 1
    %v1863 = vrot.slane %v1799, 1
    %v1864 = vsel %vm215, %v1862, %v1863
    %v1865 = vsel %vm215, %v1861, %v1862
    %v1866 = vsel %vm215, %v1860, %v1861
    %v1867 = vsel %vm215, %v1859, %v1860
    %v1868 = vsel %vm215, %v1858, %v1859
    %v1869 = vsel %vm215, %v1857, %v1858
    %v1870 = vsel %vm215, %v1856, %v1857
    %v1871 = vsel %vm215, %v1855, %v1856
    %v1872 = vsel %vm215, %v1854, %v1855
    %v1873 = vsel %vm215, %v1853, %v1854
    %v1874 = vsel %vm215, %v1852, %v1853
    %v1875 = vsel %vm215, %v1851, %v1852
    %v1876 = vsel %vm215, %v1850, %v1851
    %v1877 = vsel %vm215, %v1849, %v1850
    %v1878 = vsel %vm215, %v1848, %v1849
    %v1879 = vsel %vm215, %v1863, %v1848
    %v1880 = vmul.f32 %v1878, %v840
    %v1881 = vmul.f32 %v1877, %v844
    %v1882 = vmul.f32 %v1876, %v848
    %v1883 = vmul.f32 %v1875, %v852
    %v1884 = vmul.f32 %v1874, %v856
    %v1885 = vmul.f32 %v1873, %v860
    %v1886 = vmul.f32 %v1872, %v864
    %v1887 = vmul.f32 %v1871, %v868
    %v1888 = vmul.f32 %v1870, %v872
    %v1889 = vmul.f32 %v1869, %v876
    %v1890 = vmul.f32 %v1868, %v880
    %v1891 = vmul.f32 %v1867, %v884
    %v1892 = vmul.f32 %v1866, %v888
    %v1893 = vmul.f32 %v1865, %v892
    %v1894 = vmul.f32 %v1864, %v896
    %v1895 = vmul.f32 %v1879, %v900
    %1912 = vrot.lane.b32.xlu0 %v1784, 36
    %v1913 = vpop.permute.xlu0 %1912
    %1914 = vrot.lane.b32.xlu0 %v1785, 36
    %v1915 = vpop.permute.xlu0 %1914
    %1916 = vrot.lane.b32.xlu0 %v1786, 36
    %v1917 = vpop.permute.xlu0 %1916
    %1918 = vrot.lane.b32.xlu0 %v1787, 36
    %v1919 = vpop.permute.xlu0 %1918
    %1920 = vrot.lane.b32.xlu0 %v1788, 36
    %v1921 = vpop.permute.xlu0 %1920
    %1922 = vrot.lane.b32.xlu0 %v1789, 36
    %v1923 = vpop.permute.xlu0 %1922
    %1924 = vrot.lane.b32.xlu0 %v1790, 36
    %v1925 = vpop.permute.xlu0 %1924
    %1926 = vrot.lane.b32.xlu0 %v1791, 36
    %v1927 = vpop.permute.xlu0 %1926
    %1928 = vrot.lane.b32.xlu0 %v1792, 36
    %v1929 = vpop.permute.xlu0 %1928
    %1930 = vrot.lane.b32.xlu0 %v1793, 36
    %v1931 = vpop.permute.xlu0 %1930
    %1932 = vrot.lane.b32.xlu0 %v1794, 36
    %v1933 = vpop.permute.xlu0 %1932
    %1934 = vrot.lane.b32.xlu0 %v1795, 36
    %v1935 = vpop.permute.xlu0 %1934
    %1936 = vrot.lane.b32.xlu0 %v1796, 36
    %v1937 = vpop.permute.xlu0 %1936
    %1938 = vrot.lane.b32.xlu0 %v1797, 36
    %v1939 = vpop.permute.xlu0 %1938
    %1940 = vrot.lane.b32.xlu0 %v1798, 36
    %v1941 = vpop.permute.xlu0 %1940
    %1942 = vrot.lane.b32.xlu0 %v1799, 36
    %v1943 = vpop.permute.xlu0 %1942
    %1976 = vrot.lane.b32.xlu0 %v1880, 72
    %v1977 = vpop.permute.xlu0 %1976
    %1978 = vrot.lane.b32.xlu0 %v1881, 72
    %v1979 = vpop.permute.xlu0 %1978
    %1980 = vrot.lane.b32.xlu0 %v1882, 72
    %v1981 = vpop.permute.xlu0 %1980
    %1982 = vrot.lane.b32.xlu0 %v1883, 72
    %v1983 = vpop.permute.xlu0 %1982
    %1984 = vrot.lane.b32.xlu0 %v1884, 72
    %v1985 = vpop.permute.xlu0 %1984
    %1986 = vrot.lane.b32.xlu0 %v1885, 72
    %v1987 = vpop.permute.xlu0 %1986
    %1988 = vrot.lane.b32.xlu0 %v1886, 72
    %v1989 = vpop.permute.xlu0 %1988
    %1990 = vrot.lane.b32.xlu0 %v1887, 72
    %v1991 = vpop.permute.xlu0 %1990
    %1992 = vrot.lane.b32.xlu0 %v1888, 72
    %v1993 = vpop.permute.xlu0 %1992
    %1994 = vrot.lane.b32.xlu0 %v1889, 72
    %v1995 = vpop.permute.xlu0 %1994
    %1996 = vrot.lane.b32.xlu0 %v1890, 72
    %v1997 = vpop.permute.xlu0 %1996
    %1998 = vrot.lane.b32.xlu0 %v1891, 72
    %v1999 = vpop.permute.xlu0 %1998
    %2000 = vrot.lane.b32.xlu0 %v1892, 72
    %v2001 = vpop.permute.xlu0 %2000
    %2002 = vrot.lane.b32.xlu0 %v1893, 72
    %v2003 = vpop.permute.xlu0 %2002
    %2004 = vrot.lane.b32.xlu0 %v1894, 72
    %v2005 = vpop.permute.xlu0 %2004
    %2006 = vrot.lane.b32.xlu0 %v1895, 72
    %v2007 = vpop.permute.xlu0 %2006
    %v2024 = vsel %vm1046, %v1832, %v1913
    %v2025 = vsel %vm1046, %v1833, %v1915
    %v2026 = vsel %vm1046, %v1834, %v1917
    %v2027 = vsel %vm1046, %v1835, %v1919
    %v2028 = vsel %vm1046, %v1836, %v1921
    %v2029 = vsel %vm1046, %v1837, %v1923
    %v2030 = vsel %vm1046, %v1838, %v1925
    %v2031 = vsel %vm1046, %v1839, %v1927
    %v2032 = vsel %vm1046, %v1840, %v1929
    %v2033 = vsel %vm1046, %v1841, %v1931
    %v2034 = vsel %vm1046, %v1842, %v1933
    %v2035 = vsel %vm1046, %v1843, %v1935
    %v2036 = vsel %vm1046, %v1844, %v1937
    %v2037 = vsel %vm1046, %v1845, %v1939
    %v2038 = vsel %vm1046, %v1846, %v1941
    %v2039 = vsel %vm1046, %v1847, %v1943
    %v2040 = vsel %vm1063, %v2024, %v1977
    %v2041 = vsel %vm1063, %v2025, %v1979
    %v2042 = vsel %vm1063, %v2026, %v1981
    %v2043 = vsel %vm1063, %v2027, %v1983
    %v2044 = vsel %vm1063, %v2028, %v1985
    %v2045 = vsel %vm1063, %v2029, %v1987
    %v2046 = vsel %vm1063, %v2030, %v1989
    %v2047 = vsel %vm1063, %v2031, %v1991
    %v2048 = vsel %vm1063, %v2032, %v1993
    %v2049 = vsel %vm1063, %v2033, %v1995
    %v2050 = vsel %vm1063, %v2034, %v1997
    %v2051 = vsel %vm1063, %v2035, %v1999
    %v2052 = vsel %vm1063, %v2036, %v2001
    %v2053 = vsel %vm1063, %v2037, %v2003
    %v2054 = vsel %vm1063, %v2038, %v2005
    %v2055 = vsel %vm1063, %v2039, %v2007
    %v2056 = vld [vmem:[%s10] sm:$0xff]
    %v2057 = vld [vmem:[%s10 + $0x8] sm:$0xff]
    %v2058 = vld [vmem:[%s10 + $0x10] sm:$0xff]
    %v2059 = vld [vmem:[%s10 + $0x18] sm:$0xff]
    %v2060 = vld [vmem:[%s10 + $0x20] sm:$0xff]
    %v2061 = vld [vmem:[%s10 + $0x28] sm:$0xff]
    %v2062 = vld [vmem:[%s10 + $0x30] sm:$0xff]
    %v2063 = vld [vmem:[%s10 + $0x38] sm:$0xff]
    %v2064 = vld [vmem:[%s10 + $0x40] sm:$0xff]
    %v2065 = vld [vmem:[%s10 + $0x48] sm:$0xff]
    %v2066 = vld [vmem:[%s10 + $0x50] sm:$0xff]
    %v2067 = vld [vmem:[%s10 + $0x58] sm:$0xff]
    %v2068 = vld [vmem:[%s10 + $0x60] sm:$0xff]
    %v2069 = vld [vmem:[%s10 + $0x68] sm:$0xf]
    %v2070 = vld [vmem:[%s10 + $0x6c] sm:$0x1]
    %v2071 = vlaneseq
    %v2072 = vshrl.u32 %v2071, 7
    %v2073 = vsub.s32 0, %v2072
    %v2074 = vrot.slane %v2070, %v2073
    %v2076 = vsel %vm1099, %v2040, 0
    %v2079 = vsel %vm1099, %v2041, 0
    %v2082 = vsel %vm1099, %v2042, 0
    %v2085 = vsel %vm1099, %v2043, 0
    %v2088 = vsel %vm1099, %v2044, 0
    %v2091 = vsel %vm1099, %v2045, 0
    %v2094 = vsel %vm1099, %v2046, 0
    %v2097 = vsel %vm1099, %v2047, 0
    %v2100 = vsel %vm1099, %v2048, 0
    %v2103 = vsel %vm1099, %v2049, 0
    %v2106 = vsel %vm1099, %v2050, 0
    %v2109 = vsel %vm1099, %v2051, 0
    %v2112 = vsel %vm1099, %v2052, 0
    %v2115 = vsel %vm1099, %v2053, 0
    %v2118 = vsel %vm1099, %v2054, 0
    %v2121 = vsel %vm1099, %v2055, 0
    %v2124 = vsel %vm1148, %v2069, 0
    %2126 = vmatprep.subr.mxu0 0.0
    %2127 = vmatpush1.msra.mxu0 %v2056
    %2128 = vmatprep.subr.mxu0 0.0
    %2129 = vmatpush1.msra.mxu0 %v2057
    %2130 = vmatprep.subr.mxu0 0.0
    %2131 = vmatpush1.msra.mxu0 %v2058
    %2132 = vmatprep.subr.mxu0 0.0
    %2133 = vmatpush1.msra.mxu0 %v2059
    %2134 = vmatprep.subr.mxu0 0.0
    %2135 = vmatpush1.msra.mxu0 %v2060
    %2136 = vmatprep.subr.mxu0 0.0
    %2137 = vmatpush1.msra.mxu0 %v2061
    %2138 = vmatprep.subr.mxu0 0.0
    %2139 = vmatpush1.msra.mxu0 %v2062
    %2140 = vmatprep.subr.mxu0 0.0
    %2141 = vmatpush1.msra.mxu0 %v2063
    %2142 = vmatprep.subr.mxu0 0.0
    %2143 = vmatpush1.msra.mxu0 %v2064
    %2144 = vmatprep.subr.mxu0 0.0
    %2145 = vmatpush1.msra.mxu0 %v2065
    %2146 = vmatprep.subr.mxu0 0.0
    %2147 = vmatpush1.msra.mxu0 %v2066
    %2148 = vmatprep.subr.mxu0 0.0
    %2149 = vmatpush1.msra.mxu0 %v2067
    %2150 = vmatprep.subr.mxu0 0.0
    %2151 = vmatpush1.msra.mxu0 %v2068
    %2152 = vmatprep.subr.mxu0 0.0
    %2153 = vmatpush1.msra.mxu0 %v2124
    %2154 = vmatprep.subr.mxu0 0.0
    %2155 = vmatpush1.msra.mxu0 0.0
    %2156 = vmatprep.subr.mxu0 0.0
    %2157 = vmatpush1.msra.mxu0 0.0
    %2158 = vmatprep.subr.mxu0 0.0
    %2159 = vmatpush1.msra.mxu0 0.0
    %2160 = vmatprep.subr.mxu0 0.0
    %2161 = vmatpush1.msra.mxu0 0.0
    %2162 = vmatprep.subr.mxu0 0.0
    %2163 = vmatpush1.msra.mxu0 0.0
    %2164 = vmatprep.subr.mxu0 0.0
    %2165 = vmatpush1.msra.mxu0 0.0
    %2166 = vmatprep.subr.mxu0 0.0
    %2167 = vmatpush1.msra.mxu0 0.0
    %2168 = vmatprep.subr.mxu0 0.0
    %2169 = vmatpush1.msra.mxu0 0.0
    %2170 = vmatprep.subr.mxu0 0.0
    %2171 = vmatpush1.msra.mxu0 0.0
    %2172 = vmatprep.subr.mxu0 0.0
    %2173 = vmatpush1.msra.mxu0 0.0
    %2174 = vmatprep.subr.mxu0 0.0
    %2175 = vmatpush1.msra.mxu0 0.0
    %2176 = vmatprep.subr.mxu0 0.0
    %2177 = vmatpush1.msra.mxu0 0.0
    %2178 = vmatprep.subr.mxu0 0.0
    %2179 = vmatpush1.msra.mxu0 0.0
    %2180 = vmatprep.subr.mxu0 0.0
    %2181 = vmatpush1.msra.mxu0 0.0
    %2182 = vmatprep.subr.mxu0 0.0
    %2183 = vmatpush1.msra.mxu0 0.0
    %2184 = vmatprep.subr.mxu0 0.0
    %2185 = vmatpush1.msra.mxu0 0.0
    %2186 = vmatprep.subr.mxu0 0.0
    %2187 = vmatpush1.msra.mxu0 0.0
    %2188 = vmatprep.subr.mxu0 0.0
    %2189 = vmatpush1.msra.mxu0 0.0
    %2190 = vmatprep.mubr.f32.mxu0 0.0
    %2191 = vmatmul.mubr.f32.gmra.mrb[0].mxu0 %v2076
    %v2192 = vpop.f32.mrb[0].mxu0
    %v2193 = vadd.f32 %v2074, %v2192
    %v2194 = vpop.f32.mrb[0].mxu0
    %2195 = vmatprep.mubr.f32.mxu0 0.0
    %2196 = vmatmul.mubr.f32.gmra.mrb[0].mxu0 %v2079
    %v2197 = vpop.f32.mrb[0].mxu0
    %v2198 = vadd.f32 %v2074, %v2197
    %v2199 = vpop.f32.mrb[0].mxu0
    %2200 = vmatprep.mubr.f32.mxu0 0.0
    %2201 = vmatmul.mubr.f32.gmra.mrb[0].mxu0 %v2082
    %v2202 = vpop.f32.mrb[0].mxu0
    %v2203 = vadd.f32 %v2074, %v2202
    %v2204 = vpop.f32.mrb[0].mxu0
    %2205 = vmatprep.mubr.f32.mxu0 0.0
    %2206 = vmatmul.mubr.f32.gmra.mrb[0].mxu0 %v2085
    %v2207 = vpop.f32.mrb[0].mxu0
    %v2208 = vadd.f32 %v2074, %v2207
    %v2209 = vpop.f32.mrb[0].mxu0
    %2210 = vmatprep.mubr.f32.mxu0 0.0
    %2211 = vmatmul.mubr.f32.gmra.mrb[0].mxu0 %v2088
    %v2212 = vpop.f32.mrb[0].mxu0
    %v2213 = vadd.f32 %v2074, %v2212
    %v2214 = vpop.f32.mrb[0].mxu0
    %2215 = vmatprep.mubr.f32.mxu0 0.0
    %2216 = vmatmul.mubr.f32.gmra.mrb[0].mxu0 %v2091
    %v2217 = vpop.f32.mrb[0].mxu0
    %v2218 = vadd.f32 %v2074, %v2217
    %v2219 = vpop.f32.mrb[0].mxu0
    %2220 = vmatprep.mubr.f32.mxu0 0.0
    %2221 = vmatmul.mubr.f32.gmra.mrb[0].mxu0 %v2094
    %v2222 = vpop.f32.mrb[0].mxu0
    %v2223 = vadd.f32 %v2074, %v2222
    %v2224 = vpop.f32.mrb[0].mxu0
    %2225 = vmatprep.mubr.f32.mxu0 0.0
    %2226 = vmatmul.mubr.f32.gmra.mrb[0].mxu0 %v2097
    %v2227 = vpop.f32.mrb[0].mxu0
    %v2228 = vadd.f32 %v2074, %v2227
    %v2229 = vpop.f32.mrb[0].mxu0
    %2230 = vmatprep.mubr.f32.mxu0 0.0
    %2231 = vmatmul.mubr.f32.gmra.mrb[0].mxu0 %v2100
    %v2232 = vpop.f32.mrb[0].mxu0
    %v2233 = vadd.f32 %v2074, %v2232
    %v2234 = vpop.f32.mrb[0].mxu0
    %2235 = vmatprep.mubr.f32.mxu0 0.0
    %2236 = vmatmul.mubr.f32.gmra.mrb[0].mxu0 %v2103
    %v2237 = vpop.f32.mrb[0].mxu0
    %v2238 = vadd.f32 %v2074, %v2237
    %v2239 = vpop.f32.mrb[0].mxu0
    %2240 = vmatprep.mubr.f32.mxu0 0.0
    %2241 = vmatmul.mubr.f32.gmra.mrb[0].mxu0 %v2106
    %v2242 = vpop.f32.mrb[0].mxu0
    %v2243 = vadd.f32 %v2074, %v2242
    %v2244 = vpop.f32.mrb[0].mxu0
    %2245 = vmatprep.mubr.f32.mxu0 0.0
    %2246 = vmatmul.mubr.f32.gmra.mrb[0].mxu0 %v2109
    %v2247 = vpop.f32.mrb[0].mxu0
    %v2248 = vadd.f32 %v2074, %v2247
    %v2249 = vpop.f32.mrb[0].mxu0
    %2250 = vmatprep.mubr.f32.mxu0 0.0
    %2251 = vmatmul.mubr.f32.gmra.mrb[0].mxu0 %v2112
    %v2252 = vpop.f32.mrb[0].mxu0
    %v2253 = vadd.f32 %v2074, %v2252
    %v2254 = vpop.f32.mrb[0].mxu0
    %2255 = vmatprep.mubr.f32.mxu0 0.0
    %2256 = vmatmul.mubr.f32.gmra.mrb[0].mxu0 %v2115
    %v2257 = vpop.f32.mrb[0].mxu0
    %v2258 = vadd.f32 %v2074, %v2257
    %v2259 = vpop.f32.mrb[0].mxu0
    %2260 = vmatprep.mubr.f32.mxu0 0.0
    %2261 = vmatmul.mubr.f32.gmra.mrb[0].mxu0 %v2118
    %v2262 = vpop.f32.mrb[0].mxu0
    %v2263 = vadd.f32 %v2074, %v2262
    %v2264 = vpop.f32.mrb[0].mxu0
    %2265 = vmatprep.mubr.f32.mxu0 0.0
    %2266 = vmatmul.mubr.f32.gmra.mrb[0].mxu0 %v2121
    %v2267 = vpop.f32.mrb[0].mxu0
    %v2268 = vadd.f32 %v2074, %v2267
    %v2269 = vpop.f32.mrb[0].mxu0
    %2270 = vdwg.mxu0
    %v2271 = vmax.f32 %v2193, 0.0
    %v2272 = vmax.f32 %v2198, 0.0
    %v2273 = vmax.f32 %v2203, 0.0
    %v2274 = vmax.f32 %v2208, 0.0
    %v2275 = vmax.f32 %v2213, 0.0
    %v2276 = vmax.f32 %v2218, 0.0
    %v2277 = vmax.f32 %v2223, 0.0
    %v2278 = vmax.f32 %v2228, 0.0
    %v2279 = vmax.f32 %v2233, 0.0
    %v2280 = vmax.f32 %v2238, 0.0
    %v2281 = vmax.f32 %v2243, 0.0
    %v2282 = vmax.f32 %v2248, 0.0
    %v2283 = vmax.f32 %v2253, 0.0
    %v2284 = vmax.f32 %v2258, 0.0
    %v2285 = vmax.f32 %v2263, 0.0
    %v2286 = vmax.f32 %v2268, 0.0
    %2303 = vrot.lane.b32.xlu0 %v2271, 4
    %v2304 = vpop.permute.xlu0 %2303
    %2305 = vrot.lane.b32.xlu0 %v2272, 4
    %v2306 = vpop.permute.xlu0 %2305
    %2307 = vrot.lane.b32.xlu0 %v2273, 4
    %v2308 = vpop.permute.xlu0 %2307
    %2309 = vrot.lane.b32.xlu0 %v2274, 4
    %v2310 = vpop.permute.xlu0 %2309
    %2311 = vrot.lane.b32.xlu0 %v2275, 4
    %v2312 = vpop.permute.xlu0 %2311
    %2313 = vrot.lane.b32.xlu0 %v2276, 4
    %v2314 = vpop.permute.xlu0 %2313
    %2315 = vrot.lane.b32.xlu0 %v2277, 4
    %v2316 = vpop.permute.xlu0 %2315
    %2317 = vrot.lane.b32.xlu0 %v2278, 4
    %v2318 = vpop.permute.xlu0 %2317
    %2319 = vrot.lane.b32.xlu0 %v2279, 4
    %v2320 = vpop.permute.xlu0 %2319
    %2321 = vrot.lane.b32.xlu0 %v2280, 4
    %v2322 = vpop.permute.xlu0 %2321
    %2323 = vrot.lane.b32.xlu0 %v2281, 4
    %v2324 = vpop.permute.xlu0 %2323
    %2325 = vrot.lane.b32.xlu0 %v2282, 4
    %v2326 = vpop.permute.xlu0 %2325
    %2327 = vrot.lane.b32.xlu0 %v2283, 4
    %v2328 = vpop.permute.xlu0 %2327
    %2329 = vrot.lane.b32.xlu0 %v2284, 4
    %v2330 = vpop.permute.xlu0 %2329
    %2331 = vrot.lane.b32.xlu0 %v2285, 4
    %v2332 = vpop.permute.xlu0 %2331
    %2333 = vrot.lane.b32.xlu0 %v2286, 4
    %v2334 = vpop.permute.xlu0 %2333
    %2351 = vrot.lane.b32.xlu0 %v2271, 8
    %v2352 = vpop.permute.xlu0 %2351
    %2353 = vrot.lane.b32.xlu0 %v2272, 8
    %v2354 = vpop.permute.xlu0 %2353
    %2355 = vrot.lane.b32.xlu0 %v2273, 8
    %v2356 = vpop.permute.xlu0 %2355
    %2357 = vrot.lane.b32.xlu0 %v2274, 8
    %v2358 = vpop.permute.xlu0 %2357
    %2359 = vrot.lane.b32.xlu0 %v2275, 8
    %v2360 = vpop.permute.xlu0 %2359
    %2361 = vrot.lane.b32.xlu0 %v2276, 8
    %v2362 = vpop.permute.xlu0 %2361
    %2363 = vrot.lane.b32.xlu0 %v2277, 8
    %v2364 = vpop.permute.xlu0 %2363
    %2365 = vrot.lane.b32.xlu0 %v2278, 8
    %v2366 = vpop.permute.xlu0 %2365
    %2367 = vrot.lane.b32.xlu0 %v2279, 8
    %v2368 = vpop.permute.xlu0 %2367
    %2369 = vrot.lane.b32.xlu0 %v2280, 8
    %v2370 = vpop.permute.xlu0 %2369
    %2371 = vrot.lane.b32.xlu0 %v2281, 8
    %v2372 = vpop.permute.xlu0 %2371
    %2373 = vrot.lane.b32.xlu0 %v2282, 8
    %v2374 = vpop.permute.xlu0 %2373
    %2375 = vrot.lane.b32.xlu0 %v2283, 8
    %v2376 = vpop.permute.xlu0 %2375
    %2377 = vrot.lane.b32.xlu0 %v2284, 8
    %v2378 = vpop.permute.xlu0 %2377
    %2379 = vrot.lane.b32.xlu0 %v2285, 8
    %v2380 = vpop.permute.xlu0 %2379
    %2381 = vrot.lane.b32.xlu0 %v2286, 8
    %v2382 = vpop.permute.xlu0 %2381
    %2399 = vrot.lane.b32.xlu0 %v2271, 12
    %v2400 = vpop.permute.xlu0 %2399
    %2401 = vrot.lane.b32.xlu0 %v2272, 12
    %v2402 = vpop.permute.xlu0 %2401
    %2403 = vrot.lane.b32.xlu0 %v2273, 12
    %v2404 = vpop.permute.xlu0 %2403
    %2405 = vrot.lane.b32.xlu0 %v2274, 12
    %v2406 = vpop.permute.xlu0 %2405
    %2407 = vrot.lane.b32.xlu0 %v2275, 12
    %v2408 = vpop.permute.xlu0 %2407
    %2409 = vrot.lane.b32.xlu0 %v2276, 12
    %v2410 = vpop.permute.xlu0 %2409
    %2411 = vrot.lane.b32.xlu0 %v2277, 12
    %v2412 = vpop.permute.xlu0 %2411
    %2413 = vrot.lane.b32.xlu0 %v2278, 12
    %v2414 = vpop.permute.xlu0 %2413
    %2415 = vrot.lane.b32.xlu0 %v2279, 12
    %v2416 = vpop.permute.xlu0 %2415
    %2417 = vrot.lane.b32.xlu0 %v2280, 12
    %v2418 = vpop.permute.xlu0 %2417
    %2419 = vrot.lane.b32.xlu0 %v2281, 12
    %v2420 = vpop.permute.xlu0 %2419
    %2421 = vrot.lane.b32.xlu0 %v2282, 12
    %v2422 = vpop.permute.xlu0 %2421
    %2423 = vrot.lane.b32.xlu0 %v2283, 12
    %v2424 = vpop.permute.xlu0 %2423
    %2425 = vrot.lane.b32.xlu0 %v2284, 12
    %v2426 = vpop.permute.xlu0 %2425
    %2427 = vrot.lane.b32.xlu0 %v2285, 12
    %v2428 = vpop.permute.xlu0 %2427
    %2429 = vrot.lane.b32.xlu0 %v2286, 12
    %v2430 = vpop.permute.xlu0 %2429
    %2447 = vrot.lane.b32.xlu0 %v2271, 16
    %v2448 = vpop.permute.xlu0 %2447
    %2449 = vrot.lane.b32.xlu0 %v2272, 16
    %v2450 = vpop.permute.xlu0 %2449
    %2451 = vrot.lane.b32.xlu0 %v2273, 16
    %v2452 = vpop.permute.xlu0 %2451
    %2453 = vrot.lane.b32.xlu0 %v2274, 16
    %v2454 = vpop.permute.xlu0 %2453
    %2455 = vrot.lane.b32.xlu0 %v2275, 16
    %v2456 = vpop.permute.xlu0 %2455
    %2457 = vrot.lane.b32.xlu0 %v2276, 16
    %v2458 = vpop.permute.xlu0 %2457
    %2459 = vrot.lane.b32.xlu0 %v2277, 16
    %v2460 = vpop.permute.xlu0 %2459
    %2461 = vrot.lane.b32.xlu0 %v2278, 16
    %v2462 = vpop.permute.xlu0 %2461
    %2463 = vrot.lane.b32.xlu0 %v2279, 16
    %v2464 = vpop.permute.xlu0 %2463
    %2465 = vrot.lane.b32.xlu0 %v2280, 16
    %v2466 = vpop.permute.xlu0 %2465
    %2467 = vrot.lane.b32.xlu0 %v2281, 16
    %v2468 = vpop.permute.xlu0 %2467
    %2469 = vrot.lane.b32.xlu0 %v2282, 16
    %v2470 = vpop.permute.xlu0 %2469
    %2471 = vrot.lane.b32.xlu0 %v2283, 16
    %v2472 = vpop.permute.xlu0 %2471
    %2473 = vrot.lane.b32.xlu0 %v2284, 16
    %v2474 = vpop.permute.xlu0 %2473
    %2475 = vrot.lane.b32.xlu0 %v2285, 16
    %v2476 = vpop.permute.xlu0 %2475
    %2477 = vrot.lane.b32.xlu0 %v2286, 16
    %v2478 = vpop.permute.xlu0 %2477
    %2495 = vrot.lane.b32.xlu0 %v2271, 20
    %v2496 = vpop.permute.xlu0 %2495
    %2497 = vrot.lane.b32.xlu0 %v2272, 20
    %v2498 = vpop.permute.xlu0 %2497
    %2499 = vrot.lane.b32.xlu0 %v2273, 20
    %v2500 = vpop.permute.xlu0 %2499
    %2501 = vrot.lane.b32.xlu0 %v2274, 20
    %v2502 = vpop.permute.xlu0 %2501
    %2503 = vrot.lane.b32.xlu0 %v2275, 20
    %v2504 = vpop.permute.xlu0 %2503
    %2505 = vrot.lane.b32.xlu0 %v2276, 20
    %v2506 = vpop.permute.xlu0 %2505
    %2507 = vrot.lane.b32.xlu0 %v2277, 20
    %v2508 = vpop.permute.xlu0 %2507
    %2509 = vrot.lane.b32.xlu0 %v2278, 20
    %v2510 = vpop.permute.xlu0 %2509
    %2511 = vrot.lane.b32.xlu0 %v2279, 20
    %v2512 = vpop.permute.xlu0 %2511
    %2513 = vrot.lane.b32.xlu0 %v2280, 20
    %v2514 = vpop.permute.xlu0 %2513
    %2515 = vrot.lane.b32.xlu0 %v2281, 20
    %v2516 = vpop.permute.xlu0 %2515
    %2517 = vrot.lane.b32.xlu0 %v2282, 20
    %v2518 = vpop.permute.xlu0 %2517
    %2519 = vrot.lane.b32.xlu0 %v2283, 20
    %v2520 = vpop.permute.xlu0 %2519
    %2521 = vrot.lane.b32.xlu0 %v2284, 20
    %v2522 = vpop.permute.xlu0 %2521
    %2523 = vrot.lane.b32.xlu0 %v2285, 20
    %v2524 = vpop.permute.xlu0 %2523
    %2525 = vrot.lane.b32.xlu0 %v2286, 20
    %v2526 = vpop.permute.xlu0 %2525
    %2543 = vrot.lane.b32.xlu0 %v2271, 24
    %v2544 = vpop.permute.xlu0 %2543
    %2545 = vrot.lane.b32.xlu0 %v2272, 24
    %v2546 = vpop.permute.xlu0 %2545
    %2547 = vrot.lane.b32.xlu0 %v2273, 24
    %v2548 = vpop.permute.xlu0 %2547
    %2549 = vrot.lane.b32.xlu0 %v2274, 24
    %v2550 = vpop.permute.xlu0 %2549
    %2551 = vrot.lane.b32.xlu0 %v2275, 24
    %v2552 = vpop.permute.xlu0 %2551
    %2553 = vrot.lane.b32.xlu0 %v2276, 24
    %v2554 = vpop.permute.xlu0 %2553
    %2555 = vrot.lane.b32.xlu0 %v2277, 24
    %v2556 = vpop.permute.xlu0 %2555
    %2557 = vrot.lane.b32.xlu0 %v2278, 24
    %v2558 = vpop.permute.xlu0 %2557
    %2559 = vrot.lane.b32.xlu0 %v2279, 24
    %v2560 = vpop.permute.xlu0 %2559
    %2561 = vrot.lane.b32.xlu0 %v2280, 24
    %v2562 = vpop.permute.xlu0 %2561
    %2563 = vrot.lane.b32.xlu0 %v2281, 24
    %v2564 = vpop.permute.xlu0 %2563
    %2565 = vrot.lane.b32.xlu0 %v2282, 24
    %v2566 = vpop.permute.xlu0 %2565
    %2567 = vrot.lane.b32.xlu0 %v2283, 24
    %v2568 = vpop.permute.xlu0 %2567
    %2569 = vrot.lane.b32.xlu0 %v2284, 24
    %v2570 = vpop.permute.xlu0 %2569
    %2571 = vrot.lane.b32.xlu0 %v2285, 24
    %v2572 = vpop.permute.xlu0 %2571
    %2573 = vrot.lane.b32.xlu0 %v2286, 24
    %v2574 = vpop.permute.xlu0 %2573
    %2591 = vrot.lane.b32.xlu0 %v2271, 28
    %v2592 = vpop.permute.xlu0 %2591
    %2593 = vrot.lane.b32.xlu0 %v2272, 28
    %v2594 = vpop.permute.xlu0 %2593
    %2595 = vrot.lane.b32.xlu0 %v2273, 28
    %v2596 = vpop.permute.xlu0 %2595
    %2597 = vrot.lane.b32.xlu0 %v2274, 28
    %v2598 = vpop.permute.xlu0 %2597
    %2599 = vrot.lane.b32.xlu0 %v2275, 28
    %v2600 = vpop.permute.xlu0 %2599
    %2601 = vrot.lane.b32.xlu0 %v2276, 28
    %v2602 = vpop.permute.xlu0 %2601
    %2603 = vrot.lane.b32.xlu0 %v2277, 28
    %v2604 = vpop.permute.xlu0 %2603
    %2605 = vrot.lane.b32.xlu0 %v2278, 28
    %v2606 = vpop.permute.xlu0 %2605
    %2607 = vrot.lane.b32.xlu0 %v2279, 28
    %v2608 = vpop.permute.xlu0 %2607
    %2609 = vrot.lane.b32.xlu0 %v2280, 28
    %v2610 = vpop.permute.xlu0 %2609
    %2611 = vrot.lane.b32.xlu0 %v2281, 28
    %v2612 = vpop.permute.xlu0 %2611
    %2613 = vrot.lane.b32.xlu0 %v2282, 28
    %v2614 = vpop.permute.xlu0 %2613
    %2615 = vrot.lane.b32.xlu0 %v2283, 28
    %v2616 = vpop.permute.xlu0 %2615
    %2617 = vrot.lane.b32.xlu0 %v2284, 28
    %v2618 = vpop.permute.xlu0 %2617
    %2619 = vrot.lane.b32.xlu0 %v2285, 28
    %v2620 = vpop.permute.xlu0 %2619
    %2621 = vrot.lane.b32.xlu0 %v2286, 28
    %v2622 = vpop.permute.xlu0 %2621
    %vm2639 = vcmask 31744
    %v2640 = vsel %vm2639, %v2271, %v2304
    %v2641 = vsel %vm2639, %v2272, %v2306
    %v2642 = vsel %vm2639, %v2273, %v2308
    %v2643 = vsel %vm2639, %v2274, %v2310
    %v2644 = vsel %vm2639, %v2275, %v2312
    %v2645 = vsel %vm2639, %v2276, %v2314
    %v2646 = vsel %vm2639, %v2277, %v2316
    %v2647 = vsel %vm2639, %v2278, %v2318
    %v2648 = vsel %vm2639, %v2279, %v2320
    %v2649 = vsel %vm2639, %v2280, %v2322
    %v2650 = vsel %vm2639, %v2281, %v2324
    %v2651 = vsel %vm2639, %v2282, %v2326
    %v2652 = vsel %vm2639, %v2283, %v2328
    %v2653 = vsel %vm2639, %v2284, %v2330
    %v2654 = vsel %vm2639, %v2285, %v2332
    %v2655 = vsel %vm2639, %v2286, %v2334
    %vm2656 = vcmask 64512
    %v2657 = vsel %vm2656, %v2640, %v2352
    %v2658 = vsel %vm2656, %v2641, %v2354
    %v2659 = vsel %vm2656, %v2642, %v2356
    %v2660 = vsel %vm2656, %v2643, %v2358
    %v2661 = vsel %vm2656, %v2644, %v2360
    %v2662 = vsel %vm2656, %v2645, %v2362
    %v2663 = vsel %vm2656, %v2646, %v2364
    %v2664 = vsel %vm2656, %v2647, %v2366
    %v2665 = vsel %vm2656, %v2648, %v2368
    %v2666 = vsel %vm2656, %v2649, %v2370
    %v2667 = vsel %vm2656, %v2650, %v2372
    %v2668 = vsel %vm2656, %v2651, %v2374
    %v2669 = vsel %vm2656, %v2652, %v2376
    %v2670 = vsel %vm2656, %v2653, %v2378
    %v2671 = vsel %vm2656, %v2654, %v2380
    %v2672 = vsel %vm2656, %v2655, %v2382
    %vm2673 = vcmask 97280
    %v2674 = vsel %vm2673, %v2657, %v2400
    %v2675 = vsel %vm2673, %v2658, %v2402
    %v2676 = vsel %vm2673, %v2659, %v2404
    %v2677 = vsel %vm2673, %v2660, %v2406
    %v2678 = vsel %vm2673, %v2661, %v2408
    %v2679 = vsel %vm2673, %v2662, %v2410
    %v2680 = vsel %vm2673, %v2663, %v2412
    %v2681 = vsel %vm2673, %v2664, %v2414
    %v2682 = vsel %vm2673, %v2665, %v2416
    %v2683 = vsel %vm2673, %v2666, %v2418
    %v2684 = vsel %vm2673, %v2667, %v2420
    %v2685 = vsel %vm2673, %v2668, %v2422
    %v2686 = vsel %vm2673, %v2669, %v2424
    %v2687 = vsel %vm2673, %v2670, %v2426
    %v2688 = vsel %vm2673, %v2671, %v2428
    %v2689 = vsel %vm2673, %v2672, %v2430
    %vm2690 = vcmask 130048
    %v2691 = vsel %vm2690, %v2674, %v2448
    %v2692 = vsel %vm2690, %v2675, %v2450
    %v2693 = vsel %vm2690, %v2676, %v2452
    %v2694 = vsel %vm2690, %v2677, %v2454
    %v2695 = vsel %vm2690, %v2678, %v2456
    %v2696 = vsel %vm2690, %v2679, %v2458
    %v2697 = vsel %vm2690, %v2680, %v2460
    %v2698 = vsel %vm2690, %v2681, %v2462
    %v2699 = vsel %vm2690, %v2682, %v2464
    %v2700 = vsel %vm2690, %v2683, %v2466
    %v2701 = vsel %vm2690, %v2684, %v2468
    %v2702 = vsel %vm2690, %v2685, %v2470
    %v2703 = vsel %vm2690, %v2686, %v2472
    %v2704 = vsel %vm2690, %v2687, %v2474
    %v2705 = vsel %vm2690, %v2688, %v2476
    %v2706 = vsel %vm2690, %v2689, %v2478
    %vm2707 = vcmask 162816
    %v2708 = vsel %vm2707, %v2691, %v2496
    %v2709 = vsel %vm2707, %v2692, %v2498
    %v2710 = vsel %vm2707, %v2693, %v2500
    %v2711 = vsel %vm2707, %v2694, %v2502
    %v2712 = vsel %vm2707, %v2695, %v2504
    %v2713 = vsel %vm2707, %v2696, %v2506
    %v2714 = vsel %vm2707, %v2697, %v2508
    %v2715 = vsel %vm2707, %v2698, %v2510
    %v2716 = vsel %vm2707, %v2699, %v2512
    %v2717 = vsel %vm2707, %v2700, %v2514
    %v2718 = vsel %vm2707, %v2701, %v2516
    %v2719 = vsel %vm2707, %v2702, %v2518
    %v2720 = vsel %vm2707, %v2703, %v2520
    %v2721 = vsel %vm2707, %v2704, %v2522
    %v2722 = vsel %vm2707, %v2705, %v2524
    %v2723 = vsel %vm2707, %v2706, %v2526
    %vm2724 = vcmask 195584
    %v2725 = vsel %vm2724, %v2708, %v2544
    %v2726 = vsel %vm2724, %v2709, %v2546
    %v2727 = vsel %vm2724, %v2710, %v2548
    %v2728 = vsel %vm2724, %v2711, %v2550
    %v2729 = vsel %vm2724, %v2712, %v2552
    %v2730 = vsel %vm2724, %v2713, %v2554
    %v2731 = vsel %vm2724, %v2714, %v2556
    %v2732 = vsel %vm2724, %v2715, %v2558
    %v2733 = vsel %vm2724, %v2716, %v2560
    %v2734 = vsel %vm2724, %v2717, %v2562
    %v2735 = vsel %vm2724, %v2718, %v2564
    %v2736 = vsel %vm2724, %v2719, %v2566
    %v2737 = vsel %vm2724, %v2720, %v2568
    %v2738 = vsel %vm2724, %v2721, %v2570
    %v2739 = vsel %vm2724, %v2722, %v2572
    %v2740 = vsel %vm2724, %v2723, %v2574
    %vm2741 = vcmask 228352
    %v2742 = vsel %vm2741, %v2725, %v2592
    %v2743 = vsel %vm2741, %v2726, %v2594
    %v2744 = vsel %vm2741, %v2727, %v2596
    %v2745 = vsel %vm2741, %v2728, %v2598
    %v2746 = vsel %vm2741, %v2729, %v2600
    %v2747 = vsel %vm2741, %v2730, %v2602
    %v2748 = vsel %vm2741, %v2731, %v2604
    %v2749 = vsel %vm2741, %v2732, %v2606
    %v2750 = vsel %vm2741, %v2733, %v2608
    %v2751 = vsel %vm2741, %v2734, %v2610
    %v2752 = vsel %vm2741, %v2735, %v2612
    %v2753 = vsel %vm2741, %v2736, %v2614
    %v2754 = vsel %vm2741, %v2737, %v2616
    %v2755 = vsel %vm2741, %v2738, %v2618
    %v2756 = vsel %vm2741, %v2739, %v2620
    %v2757 = vsel %vm2741, %v2740, %v2622
    %v2758 = vmul.f32 %v2742, %v62
    %v2759 = vmul.f32 %v2743, %v63
    %v2760 = vmul.f32 %v2744, %v64
    %v2761 = vmul.f32 %v2745, %v65
    %v2762 = vmul.f32 %v2746, %v66
    %v2763 = vmul.f32 %v2747, %v67
    %v2764 = vmul.f32 %v2748, %v68
    %v2765 = vmul.f32 %v2749, %v69
    %v2766 = vmul.f32 %v2750, %v70
    %v2767 = vmul.f32 %v2751, %v71
    %v2768 = vmul.f32 %v2752, %v72
    %v2769 = vmul.f32 %v2753, %v73
    %v2770 = vmul.f32 %v2754, %v74
    %v2771 = vmul.f32 %v2755, %v75
    %v2772 = vmul.f32 %v2756, %v76
    %v2773 = vmul.f32 %v2757, %v77
    %2774 = vmatprep.subr.mxu0 0.0
    %2775 = vmatpush1.msra.mxu0 %v2758
    %2776 = vmatprep.subr.mxu0 0.0
    %2777 = vmatpush1.msra.mxu0 %v2759
    %2778 = vmatprep.subr.mxu0 0.0
    %2779 = vmatpush1.msra.mxu0 %v2760
    %2780 = vmatprep.subr.mxu0 0.0
    %2781 = vmatpush1.msra.mxu0 %v2761
    %2782 = vmatprep.subr.mxu0 0.0
    %2783 = vmatpush1.msra.mxu0 %v2762
    %2784 = vmatprep.subr.mxu0 0.0
    %2785 = vmatpush1.msra.mxu0 %v2763
    %2786 = vmatprep.subr.mxu0 0.0
    %2787 = vmatpush1.msra.mxu0 %v2764
    %2788 = vmatprep.subr.mxu0 0.0
    %2789 = vmatpush1.msra.mxu0 %v2765
    %2790 = vmatprep.subr.mxu0 0.0
    %2791 = vmatpush1.msra.mxu0 %v2766
    %2792 = vmatprep.subr.mxu0 0.0
    %2793 = vmatpush1.msra.mxu0 %v2767
    %2794 = vmatprep.subr.mxu0 0.0
    %2795 = vmatpush1.msra.mxu0 %v2768
    %2796 = vmatprep.subr.mxu0 0.0
    %2797 = vmatpush1.msra.mxu0 %v2769
    %2798 = vmatprep.subr.mxu0 0.0
    %2799 = vmatpush1.msra.mxu0 %v2770
    %2800 = vmatprep.subr.mxu0 0.0
    %2801 = vmatpush1.msra.mxu0 %v2771
    %2802 = vmatprep.subr.mxu0 0.0
    %2803 = vmatpush1.msra.mxu0 %v2772
    %2804 = vmatprep.subr.mxu0 0.0
    %2805 = vmatpush1.msra.mxu0 %v2773
    %2806 = vmatprep.subr.mxu0 0.0
    %2807 = vmatpush1.msra.mxu0 0.0
    %2808 = vmatprep.subr.mxu0 0.0
    %2809 = vmatpush1.msra.mxu0 0.0
    %2810 = vmatprep.subr.mxu0 0.0
    %2811 = vmatpush1.msra.mxu0 0.0
    %2812 = vmatprep.subr.mxu0 0.0
    %2813 = vmatpush1.msra.mxu0 0.0
    %2814 = vmatprep.subr.mxu0 0.0
    %2815 = vmatpush1.msra.mxu0 0.0
    %2816 = vmatprep.subr.mxu0 0.0
    %2817 = vmatpush1.msra.mxu0 0.0
    %2818 = vmatprep.subr.mxu0 0.0
    %2819 = vmatpush1.msra.mxu0 0.0
    %2820 = vmatprep.subr.mxu0 0.0
    %2821 = vmatpush1.msra.mxu0 0.0
    %2822 = vmatprep.subr.mxu0 0.0
    %2823 = vmatpush1.msra.mxu0 0.0
    %2824 = vmatprep.subr.mxu0 0.0
    %2825 = vmatpush1.msra.mxu0 0.0
    %2826 = vmatprep.subr.mxu0 0.0
    %2827 = vmatpush1.msra.mxu0 0.0
    %2828 = vmatprep.subr.mxu0 0.0
    %2829 = vmatpush1.msra.mxu0 0.0
    %2830 = vmatprep.subr.mxu0 0.0
    %2831 = vmatpush1.msra.mxu0 0.0
    %2832 = vmatprep.subr.mxu0 0.0
    %2833 = vmatpush1.msra.mxu0 0.0
    %2834 = vmatprep.subr.mxu0 0.0
    %2835 = vmatpush1.msra.mxu0 0.0
    %2836 = vmatprep.subr.mxu0 0.0
    %2837 = vmatpush1.msra.mxu0 0.0
    %2838 = vmatprep.mubr.f32.mxu0 0.0
    %2839 = vmatmul.mubr.f32.gmra.mrb[0].mxu0 %v94
    %v2840 = vpop.f32.mrb[0].mxu0
    %v2841 = vadd.f32 0.0, %v2840
    %v2842 = vpop.f32.mrb[0].mxu0
    %2843 = vmatprep.mubr.f32.mxu0 0.0
    %2844 = vmatmul.mubr.f32.gmra.mrb[0].mxu0 %v95
    %v2845 = vpop.f32.mrb[0].mxu0
    %v2846 = vadd.f32 0.0, %v2845
    %v2847 = vpop.f32.mrb[0].mxu0
    %2848 = vdwg.mxu0
    %v2849 = vld [vmem:[%s11] sm:$0xff]
    %v2850 = vld [vmem:[%s11 + $0x8] sm:$0xff]
    %v2851 = vld [vmem:[%s11 + $0x10] sm:$0xff]
    %v2852 = vld [vmem:[%s11 + $0x18] sm:$0xff]
    %v2853 = vld [vmem:[%s11 + $0x20] sm:$0x1]
    %v2854 = vlaneseq
    %v2855 = vshrl.u32 %v2854, 7
    %v2856 = vsub.s32 0, %v2855
    %v2857 = vrot.slane %v2853, %v2856
    %vm2858 = vcmask 261120
    %v2860 = vsel %vm2858, %v2841, 0
    %v2863 = vsel %vm2858, %v2846, 0
    %2865 = vmatprep.subr.mxu0 0.0
    %2866 = vmatpush1.msra.mxu0 %v2849
    %2867 = vmatprep.subr.mxu0 0.0
    %2868 = vmatpush1.msra.mxu0 %v2850
    %2869 = vmatprep.subr.mxu0 0.0
    %2870 = vmatpush1.msra.mxu0 %v2851
    %2871 = vmatprep.subr.mxu0 0.0
    %2872 = vmatpush1.msra.mxu0 %v2852
    %2873 = vmatprep.subr.mxu0 0.0
    %2874 = vmatpush1.msra.mxu0 0.0
    %2875 = vmatprep.subr.mxu0 0.0
    %2876 = vmatpush1.msra.mxu0 0.0
    %2877 = vmatprep.subr.mxu0 0.0
    %2878 = vmatpush1.msra.mxu0 0.0
    %2879 = vmatprep.subr.mxu0 0.0
    %2880 = vmatpush1.msra.mxu0 0.0
    %2881 = vmatprep.subr.mxu0 0.0
    %2882 = vmatpush1.msra.mxu0 0.0
    %2883 = vmatprep.subr.mxu0 0.0
    %2884 = vmatpush1.msra.mxu0 0.0
    %2885 = vmatprep.subr.mxu0 0.0
    %2886 = vmatpush1.msra.mxu0 0.0
    %2887 = vmatprep.subr.mxu0 0.0
    %2888 = vmatpush1.msra.mxu0 0.0
    %2889 = vmatprep.subr.mxu0 0.0
    %2890 = vmatpush1.msra.mxu0 0.0
    %2891 = vmatprep.subr.mxu0 0.0
    %2892 = vmatpush1.msra.mxu0 0.0
    %2893 = vmatprep.subr.mxu0 0.0
    %2894 = vmatpush1.msra.mxu0 0.0
    %2895 = vmatprep.subr.mxu0 0.0
    %2896 = vmatpush1.msra.mxu0 0.0
    %2897 = vmatprep.subr.mxu0 0.0
    %2898 = vmatpush1.msra.mxu0 0.0
    %2899 = vmatprep.subr.mxu0 0.0
    %2900 = vmatpush1.msra.mxu0 0.0
    %2901 = vmatprep.subr.mxu0 0.0
    %2902 = vmatpush1.msra.mxu0 0.0
    %2903 = vmatprep.subr.mxu0 0.0
    %2904 = vmatpush1.msra.mxu0 0.0
    %2905 = vmatprep.subr.mxu0 0.0
    %2906 = vmatpush1.msra.mxu0 0.0
    %2907 = vmatprep.subr.mxu0 0.0
    %2908 = vmatpush1.msra.mxu0 0.0
    %2909 = vmatprep.subr.mxu0 0.0
    %2910 = vmatpush1.msra.mxu0 0.0
    %2911 = vmatprep.subr.mxu0 0.0
    %2912 = vmatpush1.msra.mxu0 0.0
    %2913 = vmatprep.subr.mxu0 0.0
    %2914 = vmatpush1.msra.mxu0 0.0
    %2915 = vmatprep.subr.mxu0 0.0
    %2916 = vmatpush1.msra.mxu0 0.0
    %2917 = vmatprep.subr.mxu0 0.0
    %2918 = vmatpush1.msra.mxu0 0.0
    %2919 = vmatprep.subr.mxu0 0.0
    %2920 = vmatpush1.msra.mxu0 0.0
    %2921 = vmatprep.subr.mxu0 0.0
    %2922 = vmatpush1.msra.mxu0 0.0
    %2923 = vmatprep.subr.mxu0 0.0
    %2924 = vmatpush1.msra.mxu0 0.0
    %2925 = vmatprep.subr.mxu0 0.0
    %2926 = vmatpush1.msra.mxu0 0.0
    %2927 = vmatprep.subr.mxu0 0.0
    %2928 = vmatpush1.msra.mxu0 0.0
    %2929 = vmatprep.mubr.f32.mxu0 0.0
    %2930 = vmatmul.mubr.f32.gmra.mrb[0].mxu0 %v2860
    %v2931 = vpop.f32.mrb[0].mxu0
    %v2932 = vadd.f32 %v2857, %v2931
    %v2933 = vpop.f32.mrb[0].mxu0
    %2934 = vmatprep.mubr.f32.mxu0 0.0
    %2935 = vmatmul.mubr.f32.gmra.mrb[0].mxu0 %v2863
    %v2936 = vpop.f32.mrb[0].mxu0
    %v2937 = vadd.f32 %v2857, %v2936
    %v2938 = vpop.f32.mrb[0].mxu0
    %2939 = vdwg.mxu0
    %2940 = vst.msk [vmem:[#allocation2] sm:$0xff] %vm2858, %v2932
    %2941 = vst.msk [vmem:[#allocation2 + $0x8] sm:$0xff] %vm2858, %v2937
    %v2942 = vld [vmem:[%s1] sm:$0xff]
    %v2943 = vld [vmem:[%s1 + $0x8] sm:$0xff]
    %v2944 = vmul.f32 %v2932, 0.5
    %v2945 = vmul.f32 %v2937, 0.5
    %v2946 = vmul.f32 %v2944, 1.442695
    %v2947 = vpow.pop %v2946
    %v2948 = vmul.f32 %v2945, 1.442695
    %v2949 = vpow.pop %v2948
    %2952 = vrot.lane.b32.xlu0 %v2947, 112
    %v2953 = vpop.permute.xlu0 %2952
    %2954 = vrot.lane.b32.xlu0 %v2949, 112
    %v2955 = vpop.permute.xlu0 %2954
    %v2958 = vmul.f32 %v2942, %v2953
    %v2959 = vmul.f32 %v2943, %v2955
    %v2960 = vadd.f32 %v2932, %v2958
    %v2961 = vadd.f32 %v2937, %v2959
    %v2963 = vsel %vm2690, %v96, 0
    %v2966 = vsel %vm2690, %v97, 0
    %v2969 = vsel %vm2690, %v98, 0
    %v2972 = vsel %vm2690, %v99, 0
    %v2975 = vsel %vm2690, %v100, 0
    %v2978 = vsel %vm2690, %v101, 0
    %v2981 = vsel %vm2690, %v102, 0
    %v2984 = vsel %vm2690, %v103, 0
    %v2987 = vsel %vm2690, %v104, 0
    %v2990 = vsel %vm2690, %v105, 0
    %v2993 = vsel %vm2690, %v106, 0
    %v2996 = vsel %vm2690, %v107, 0
    %v2999 = vsel %vm2690, %v108, 0
    %v3002 = vsel %vm2690, %v109, 0
    %v3005 = vsel %vm2690, %v110, 0
    %v3008 = vsel %vm2690, %v111, 0
    %3010 = vmatprep.subr.mxu0 0.0
    %3011 = vmatpush1.msra.mxu0 %v2960
    %3012 = vmatprep.subr.mxu0 0.0
    %3013 = vmatpush1.msra.mxu0 %v2961
    %3014 = vmatprep.subr.mxu0 0.0
    %3015 = vmatpush1.msra.mxu0 0.0
    %3016 = vmatprep.subr.mxu0 0.0
    %3017 = vmatpush1.msra.mxu0 0.0
    %3018 = vmatprep.subr.mxu0 0.0
    %3019 = vmatpush1.msra.mxu0 0.0
    %3020 = vmatprep.subr.mxu0 0.0
    %3021 = vmatpush1.msra.mxu0 0.0
    %3022 = vmatprep.subr.mxu0 0.0
    %3023 = vmatpush1.msra.mxu0 0.0
    %3024 = vmatprep.subr.mxu0 0.0
    %3025 = vmatpush1.msra.mxu0 0.0
    %3026 = vmatprep.subr.mxu0 0.0
    %3027 = vmatpush1.msra.mxu0 0.0
    %3028 = vmatprep.subr.mxu0 0.0
    %3029 = vmatpush1.msra.mxu0 0.0
    %3030 = vmatprep.subr.mxu0 0.0
    %3031 = vmatpush1.msra.mxu0 0.0
    %3032 = vmatprep.subr.mxu0 0.0
    %3033 = vmatpush1.msra.mxu0 0.0
    %3034 = vmatprep.subr.mxu0 0.0
    %3035 = vmatpush1.msra.mxu0 0.0
    %3036 = vmatprep.subr.mxu0 0.0
    %3037 = vmatpush1.msra.mxu0 0.0
    %3038 = vmatprep.subr.mxu0 0.0
    %3039 = vmatpush1.msra.mxu0 0.0
    %3040 = vmatprep.subr.mxu0 0.0
    %3041 = vmatpush1.msra.mxu0 0.0
    %3042 = vmatprep.subr.mxu0 0.0
    %3043 = vmatpush1.msra.mxu0 0.0
    %3044 = vmatprep.subr.mxu0 0.0
    %3045 = vmatpush1.msra.mxu0 0.0
    %3046 = vmatprep.subr.mxu0 0.0
    %3047 = vmatpush1.msra.mxu0 0.0
    %3048 = vmatprep.subr.mxu0 0.0
    %3049 = vmatpush1.msra.mxu0 0.0
    %3050 = vmatprep.subr.mxu0 0.0
    %3051 = vmatpush1.msra.mxu0 0.0
    %3052 = vmatprep.subr.mxu0 0.0
    %3053 = vmatpush1.msra.mxu0 0.0
    %3054 = vmatprep.subr.mxu0 0.0
    %3055 = vmatpush1.msra.mxu0 0.0
    %3056 = vmatprep.subr.mxu0 0.0
    %3057 = vmatpush1.msra.mxu0 0.0
    %3058 = vmatprep.subr.mxu0 0.0
    %3059 = vmatpush1.msra.mxu0 0.0
    %3060 = vmatprep.subr.mxu0 0.0
    %3061 = vmatpush1.msra.mxu0 0.0
    %3062 = vmatprep.subr.mxu0 0.0
    %3063 = vmatpush1.msra.mxu0 0.0
    %3064 = vmatprep.subr.mxu0 0.0
    %3065 = vmatpush1.msra.mxu0 0.0
    %3066 = vmatprep.subr.mxu0 0.0
    %3067 = vmatpush1.msra.mxu0 0.0
    %3068 = vmatprep.subr.mxu0 0.0
    %3069 = vmatpush1.msra.mxu0 0.0
    %3070 = vmatprep.subr.mxu0 0.0
    %3071 = vmatpush1.msra.mxu0 0.0
    %3072 = vmatprep.subr.mxu0 0.0
    %3073 = vmatpush1.msra.mxu0 0.0
    %3074 = vmatprep.mubr.f32.mxu0 0.0
    %3075 = vmatmul.mubr.f32.gmra.mrb[0].mxu0 %v2963
    %v3076 = vpop.f32.mrb[0].mxu0
    %v3077 = vadd.f32 0.0, %v3076
    %v3078 = vpop.f32.mrb[0].mxu0
    %3079 = vmatprep.mubr.f32.mxu0 0.0
    %3080 = vmatmul.mubr.f32.gmra.mrb[0].mxu0 %v2966
    %v3081 = vpop.f32.mrb[0].mxu0
    %v3082 = vadd.f32 0.0, %v3081
    %v3083 = vpop.f32.mrb[0].mxu0
    %3084 = vmatprep.mubr.f32.mxu0 0.0
    %3085 = vmatmul.mubr.f32.gmra.mrb[0].mxu0 %v2969
    %v3086 = vpop.f32.mrb[0].mxu0
    %v3087 = vadd.f32 0.0, %v3086
    %v3088 = vpop.f32.mrb[0].mxu0
    %3089 = vmatprep.mubr.f32.mxu0 0.0
    %3090 = vmatmul.mubr.f32.gmra.mrb[0].mxu0 %v2972
    %v3091 = vpop.f32.mrb[0].mxu0
    %v3092 = vadd.f32 0.0, %v3091
    %v3093 = vpop.f32.mrb[0].mxu0
    %3094 = vmatprep.mubr.f32.mxu0 0.0
    %3095 = vmatmul.mubr.f32.gmra.mrb[0].mxu0 %v2975
    %v3096 = vpop.f32.mrb[0].mxu0
    %v3097 = vadd.f32 0.0, %v3096
    %v3098 = vpop.f32.mrb[0].mxu0
    %3099 = vmatprep.mubr.f32.mxu0 0.0
    %3100 = vmatmul.mubr.f32.gmra.mrb[0].mxu0 %v2978
    %v3101 = vpop.f32.mrb[0].mxu0
    %v3102 = vadd.f32 0.0, %v3101
    %v3103 = vpop.f32.mrb[0].mxu0
    %3104 = vmatprep.mubr.f32.mxu0 0.0
    %3105 = vmatmul.mubr.f32.gmra.mrb[0].mxu0 %v2981
    %v3106 = vpop.f32.mrb[0].mxu0
    %v3107 = vadd.f32 0.0, %v3106
    %v3108 = vpop.f32.mrb[0].mxu0
    %3109 = vmatprep.mubr.f32.mxu0 0.0
    %3110 = vmatmul.mubr.f32.gmra.mrb[0].mxu0 %v2984
    %v3111 = vpop.f32.mrb[0].mxu0
    %v3112 = vadd.f32 0.0, %v3111
    %v3113 = vpop.f32.mrb[0].mxu0
    %3114 = vmatprep.mubr.f32.mxu0 0.0
    %3115 = vmatmul.mubr.f32.gmra.mrb[0].mxu0 %v2987
    %v3116 = vpop.f32.mrb[0].mxu0
    %v3117 = vadd.f32 0.0, %v3116
    %v3118 = vpop.f32.mrb[0].mxu0
    %3119 = vmatprep.mubr.f32.mxu0 0.0
    %3120 = vmatmul.mubr.f32.gmra.mrb[0].mxu0 %v2990
    %v3121 = vpop.f32.mrb[0].mxu0
    %v3122 = vadd.f32 0.0, %v3121
    %v3123 = vpop.f32.mrb[0].mxu0
    %3124 = vmatprep.mubr.f32.mxu0 0.0
    %3125 = vmatmul.mubr.f32.gmra.mrb[0].mxu0 %v2993
    %v3126 = vpop.f32.mrb[0].mxu0
    %v3127 = vadd.f32 0.0, %v3126
    %v3128 = vpop.f32.mrb[0].mxu0
    %3129 = vmatprep.mubr.f32.mxu0 0.0
    %3130 = vmatmul.mubr.f32.gmra.mrb[0].mxu0 %v2996
    %v3131 = vpop.f32.mrb[0].mxu0
    %v3132 = vadd.f32 0.0, %v3131
    %v3133 = vpop.f32.mrb[0].mxu0
    %3134 = vmatprep.mubr.f32.mxu0 0.0
    %3135 = vmatmul.mubr.f32.gmra.mrb[0].mxu0 %v2999
    %v3136 = vpop.f32.mrb[0].mxu0
    %v3137 = vadd.f32 0.0, %v3136
    %v3138 = vpop.f32.mrb[0].mxu0
    %3139 = vmatprep.mubr.f32.mxu0 0.0
    %3140 = vmatmul.mubr.f32.gmra.mrb[0].mxu0 %v3002
    %v3141 = vpop.f32.mrb[0].mxu0
    %v3142 = vadd.f32 0.0, %v3141
    %v3143 = vpop.f32.mrb[0].mxu0
    %3144 = vmatprep.mubr.f32.mxu0 0.0
    %3145 = vmatmul.mubr.f32.gmra.mrb[0].mxu0 %v3005
    %v3146 = vpop.f32.mrb[0].mxu0
    %v3147 = vadd.f32 0.0, %v3146
    %v3148 = vpop.f32.mrb[0].mxu0
    %3149 = vmatprep.mubr.f32.mxu0 0.0
    %3150 = vmatmul.mubr.f32.gmra.mrb[0].mxu0 %v3008
    %v3151 = vpop.f32.mrb[0].mxu0
    %v3152 = vadd.f32 0.0, %v3151
    %v3153 = vpop.f32.mrb[0].mxu0
    %3154 = vdwg.mxu0
    %v3155 = vld [vmem:[%s12] sm:$0xff]
    %v3156 = vld [vmem:[%s12 + $0x8] sm:$0xff]
    %v3158 = vsel %vm2690, %v3077, 0
    %v3161 = vsel %vm2690, %v3082, 0
    %v3164 = vsel %vm2690, %v3087, 0
    %v3167 = vsel %vm2690, %v3092, 0
    %v3170 = vsel %vm2690, %v3097, 0
    %v3173 = vsel %vm2690, %v3102, 0
    %v3176 = vsel %vm2690, %v3107, 0
    %v3179 = vsel %vm2690, %v3112, 0
    %v3182 = vsel %vm2690, %v3117, 0
    %v3185 = vsel %vm2690, %v3122, 0
    %v3188 = vsel %vm2690, %v3127, 0
    %v3191 = vsel %vm2690, %v3132, 0
    %v3194 = vsel %vm2690, %v3137, 0
    %v3197 = vsel %vm2690, %v3142, 0
    %v3200 = vsel %vm2690, %v3147, 0
    %v3203 = vsel %vm2690, %v3152, 0
    %3205 = vmatprep.subr.mxu0 0.0
    %3206 = vmatpush1.msra.mxu0 %v3155
    %3207 = vmatprep.subr.mxu0 0.0
    %3208 = vmatpush1.msra.mxu0 %v3156
    %3209 = vmatprep.subr.mxu0 0.0
    %3210 = vmatpush1.msra.mxu0 0.0
    %3211 = vmatprep.subr.mxu0 0.0
    %3212 = vmatpush1.msra.mxu0 0.0
    %3213 = vmatprep.subr.mxu0 0.0
    %3214 = vmatpush1.msra.mxu0 0.0
    %3215 = vmatprep.subr.mxu0 0.0
    %3216 = vmatpush1.msra.mxu0 0.0
    %3217 = vmatprep.subr.mxu0 0.0
    %3218 = vmatpush1.msra.mxu0 0.0
    %3219 = vmatprep.subr.mxu0 0.0
    %3220 = vmatpush1.msra.mxu0 0.0
    %3221 = vmatprep.subr.mxu0 0.0
    %3222 = vmatpush1.msra.mxu0 0.0
    %3223 = vmatprep.subr.mxu0 0.0
    %3224 = vmatpush1.msra.mxu0 0.0
    %3225 = vmatprep.subr.mxu0 0.0
    %3226 = vmatpush1.msra.mxu0 0.0
    %3227 = vmatprep.subr.mxu0 0.0
    %3228 = vmatpush1.msra.mxu0 0.0
    %3229 = vmatprep.subr.mxu0 0.0
    %3230 = vmatpush1.msra.mxu0 0.0
    %3231 = vmatprep.subr.mxu0 0.0
    %3232 = vmatpush1.msra.mxu0 0.0
    %3233 = vmatprep.subr.mxu0 0.0
    %3234 = vmatpush1.msra.mxu0 0.0
    %3235 = vmatprep.subr.mxu0 0.0
    %3236 = vmatpush1.msra.mxu0 0.0
    %3237 = vmatprep.subr.mxu0 0.0
    %3238 = vmatpush1.msra.mxu0 0.0
    %3239 = vmatprep.subr.mxu0 0.0
    %3240 = vmatpush1.msra.mxu0 0.0
    %3241 = vmatprep.subr.mxu0 0.0
    %3242 = vmatpush1.msra.mxu0 0.0
    %3243 = vmatprep.subr.mxu0 0.0
    %3244 = vmatpush1.msra.mxu0 0.0
    %3245 = vmatprep.subr.mxu0 0.0
    %3246 = vmatpush1.msra.mxu0 0.0
    %3247 = vmatprep.subr.mxu0 0.0
    %3248 = vmatpush1.msra.mxu0 0.0
    %3249 = vmatprep.subr.mxu0 0.0
    %3250 = vmatpush1.msra.mxu0 0.0
    %3251 = vmatprep.subr.mxu0 0.0
    %3252 = vmatpush1.msra.mxu0 0.0
    %3253 = vmatprep.subr.mxu0 0.0
    %3254 = vmatpush1.msra.mxu0 0.0
    %3255 = vmatprep.subr.mxu0 0.0
    %3256 = vmatpush1.msra.mxu0 0.0
    %3257 = vmatprep.subr.mxu0 0.0
    %3258 = vmatpush1.msra.mxu0 0.0
    %3259 = vmatprep.subr.mxu0 0.0
    %3260 = vmatpush1.msra.mxu0 0.0
    %3261 = vmatprep.subr.mxu0 0.0
    %3262 = vmatpush1.msra.mxu0 0.0
    %3263 = vmatprep.subr.mxu0 0.0
    %3264 = vmatpush1.msra.mxu0 0.0
    %3265 = vmatprep.subr.mxu0 0.0
    %3266 = vmatpush1.msra.mxu0 0.0
    %3267 = vmatprep.subr.mxu0 0.0
    %3268 = vmatpush1.msra.mxu0 0.0
    %3269 = vmatprep.mubr.f32.mxu0 0.0
    %3270 = vmatmul.mubr.f32.gmra.mrb[0].mxu0 %v3158
    %v3271 = vpop.f32.mrb[0].mxu0
    %v3272 = vadd.f32 0.0, %v3271
    %v3273 = vpop.f32.mrb[0].mxu0
    %3274 = vmatprep.mubr.f32.mxu0 0.0
    %3275 = vmatmul.mubr.f32.gmra.mrb[0].mxu0 %v3161
    %v3276 = vpop.f32.mrb[0].mxu0
    %v3277 = vadd.f32 0.0, %v3276
    %v3278 = vpop.f32.mrb[0].mxu0
    %3279 = vmatprep.mubr.f32.mxu0 0.0
    %3280 = vmatmul.mubr.f32.gmra.mrb[0].mxu0 %v3164
    %v3281 = vpop.f32.mrb[0].mxu0
    %v3282 = vadd.f32 0.0, %v3281
    %v3283 = vpop.f32.mrb[0].mxu0
    %3284 = vmatprep.mubr.f32.mxu0 0.0
    %3285 = vmatmul.mubr.f32.gmra.mrb[0].mxu0 %v3167
    %v3286 = vpop.f32.mrb[0].mxu0
    %v3287 = vadd.f32 0.0, %v3286
    %v3288 = vpop.f32.mrb[0].mxu0
    %3289 = vmatprep.mubr.f32.mxu0 0.0
    %3290 = vmatmul.mubr.f32.gmra.mrb[0].mxu0 %v3170
    %v3291 = vpop.f32.mrb[0].mxu0
    %v3292 = vadd.f32 0.0, %v3291
    %v3293 = vpop.f32.mrb[0].mxu0
    %3294 = vmatprep.mubr.f32.mxu0 0.0
    %3295 = vmatmul.mubr.f32.gmra.mrb[0].mxu0 %v3173
    %v3296 = vpop.f32.mrb[0].mxu0
    %v3297 = vadd.f32 0.0, %v3296
    %v3298 = vpop.f32.mrb[0].mxu0
    %3299 = vmatprep.mubr.f32.mxu0 0.0
    %3300 = vmatmul.mubr.f32.gmra.mrb[0].mxu0 %v3176
    %v3301 = vpop.f32.mrb[0].mxu0
    %v3302 = vadd.f32 0.0, %v3301
    %v3303 = vpop.f32.mrb[0].mxu0
    %3304 = vmatprep.mubr.f32.mxu0 0.0
    %3305 = vmatmul.mubr.f32.gmra.mrb[0].mxu0 %v3179
    %v3306 = vpop.f32.mrb[0].mxu0
    %v3307 = vadd.f32 0.0, %v3306
    %v3308 = vpop.f32.mrb[0].mxu0
    %3309 = vmatprep.mubr.f32.mxu0 0.0
    %3310 = vmatmul.mubr.f32.gmra.mrb[0].mxu0 %v3182
    %v3311 = vpop.f32.mrb[0].mxu0
    %v3312 = vadd.f32 0.0, %v3311
    %v3313 = vpop.f32.mrb[0].mxu0
    %3314 = vmatprep.mubr.f32.mxu0 0.0
    %3315 = vmatmul.mubr.f32.gmra.mrb[0].mxu0 %v3185
    %v3316 = vpop.f32.mrb[0].mxu0
    %v3317 = vadd.f32 0.0, %v3316
    %v3318 = vpop.f32.mrb[0].mxu0
    %3319 = vmatprep.mubr.f32.mxu0 0.0
    %3320 = vmatmul.mubr.f32.gmra.mrb[0].mxu0 %v3188
    %v3321 = vpop.f32.mrb[0].mxu0
    %v3322 = vadd.f32 0.0, %v3321
    %v3323 = vpop.f32.mrb[0].mxu0
    %3324 = vmatprep.mubr.f32.mxu0 0.0
    %3325 = vmatmul.mubr.f32.gmra.mrb[0].mxu0 %v3191
    %v3326 = vpop.f32.mrb[0].mxu0
    %v3327 = vadd.f32 0.0, %v3326
    %v3328 = vpop.f32.mrb[0].mxu0
    %3329 = vmatprep.mubr.f32.mxu0 0.0
    %3330 = vmatmul.mubr.f32.gmra.mrb[0].mxu0 %v3194
    %v3331 = vpop.f32.mrb[0].mxu0
    %v3332 = vadd.f32 0.0, %v3331
    %v3333 = vpop.f32.mrb[0].mxu0
    %3334 = vmatprep.mubr.f32.mxu0 0.0
    %3335 = vmatmul.mubr.f32.gmra.mrb[0].mxu0 %v3197
    %v3336 = vpop.f32.mrb[0].mxu0
    %v3337 = vadd.f32 0.0, %v3336
    %v3338 = vpop.f32.mrb[0].mxu0
    %3339 = vmatprep.mubr.f32.mxu0 0.0
    %3340 = vmatmul.mubr.f32.gmra.mrb[0].mxu0 %v3200
    %v3341 = vpop.f32.mrb[0].mxu0
    %v3342 = vadd.f32 0.0, %v3341
    %v3343 = vpop.f32.mrb[0].mxu0
    %3344 = vmatprep.mubr.f32.mxu0 0.0
    %3345 = vmatmul.mubr.f32.gmra.mrb[0].mxu0 %v3203
    %v3346 = vpop.f32.mrb[0].mxu0
    %v3347 = vadd.f32 0.0, %v3346
    %v3348 = vpop.f32.mrb[0].mxu0
    %3349 = vdwg.mxu0
    %v3350 = vmul.f32 %v3272, %v62
    %v3351 = vmul.f32 %v3277, %v63
    %v3352 = vmul.f32 %v3282, %v64
    %v3353 = vmul.f32 %v3287, %v65
    %v3354 = vmul.f32 %v3292, %v66
    %v3355 = vmul.f32 %v3297, %v67
    %v3356 = vmul.f32 %v3302, %v68
    %v3357 = vmul.f32 %v3307, %v69
    %v3358 = vmul.f32 %v3312, %v70
    %v3359 = vmul.f32 %v3317, %v71
    %v3360 = vmul.f32 %v3322, %v72
    %v3361 = vmul.f32 %v3327, %v73
    %v3362 = vmul.f32 %v3332, %v74
    %v3363 = vmul.f32 %v3337, %v75
    %v3364 = vmul.f32 %v3342, %v76
    %v3365 = vmul.f32 %v3347, %v77
    %v3366 = vld [vmem:[%s13] sm:$0xff]
    %v3367 = vld [vmem:[%s13 + $0x8] sm:$0xff]
    %v3368 = vld [vmem:[%s13 + $0x10] sm:$0xff]
    %v3369 = vld [vmem:[%s13 + $0x18] sm:$0xff]
    %v3370 = vld [vmem:[%s13 + $0x20] sm:$0xff]
    %v3371 = vld [vmem:[%s13 + $0x28] sm:$0xff]
    %v3372 = vld [vmem:[%s13 + $0x30] sm:$0xff]
    %v3373 = vld [vmem:[%s13 + $0x38] sm:$0xff]
    %v3374 = vld [vmem:[%s13 + $0x40] sm:$0xff]
    %v3375 = vld [vmem:[%s13 + $0x48] sm:$0xff]
    %v3376 = vld [vmem:[%s13 + $0x50] sm:$0xff]
    %v3377 = vld [vmem:[%s13 + $0x58] sm:$0xff]
    %v3378 = vld [vmem:[%s13 + $0x60] sm:$0xff]
    %v3379 = vld [vmem:[%s13 + $0x68] sm:$0xff]
    %v3380 = vld [vmem:[%s13 + $0x70] sm:$0xff]
    %v3381 = vld [vmem:[%s13 + $0x78] sm:$0xff]
    %v3383 = vsel %vm2858, %v3350, 0
    %v3386 = vsel %vm2858, %v3351, 0
    %v3389 = vsel %vm2858, %v3352, 0
    %v3392 = vsel %vm2858, %v3353, 0
    %v3395 = vsel %vm2858, %v3354, 0
    %v3398 = vsel %vm2858, %v3355, 0
    %v3401 = vsel %vm2858, %v3356, 0
    %v3404 = vsel %vm2858, %v3357, 0
    %v3407 = vsel %vm2858, %v3358, 0
    %v3410 = vsel %vm2858, %v3359, 0
    %v3413 = vsel %vm2858, %v3360, 0
    %v3416 = vsel %vm2858, %v3361, 0
    %v3419 = vsel %vm2858, %v3362, 0
    %v3422 = vsel %vm2858, %v3363, 0
    %v3425 = vsel %vm2858, %v3364, 0
    %v3428 = vsel %vm2858, %v3365, 0
    %3430 = vmatprep.subr.mxu0 0.0
    %3431 = vmatpush1.msra.mxu0 %v112
    %3432 = vmatprep.subr.mxu0 0.0
    %3433 = vmatpush1.msra.mxu0 %v113
    %3434 = vmatprep.subr.mxu0 0.0
    %3435 = vmatpush1.msra.mxu0 %v114
    %3436 = vmatprep.subr.mxu0 0.0
    %3437 = vmatpush1.msra.mxu0 %v115
    %3438 = vmatprep.subr.mxu0 0.0
    %3439 = vmatpush1.msra.mxu0 0.0
    %3440 = vmatprep.subr.mxu0 0.0
    %3441 = vmatpush1.msra.mxu0 0.0
    %3442 = vmatprep.subr.mxu0 0.0
    %3443 = vmatpush1.msra.mxu0 0.0
    %3444 = vmatprep.subr.mxu0 0.0
    %3445 = vmatpush1.msra.mxu0 0.0
    %3446 = vmatprep.subr.mxu0 0.0
    %3447 = vmatpush1.msra.mxu0 0.0
    %3448 = vmatprep.subr.mxu0 0.0
    %3449 = vmatpush1.msra.mxu0 0.0
    %3450 = vmatprep.subr.mxu0 0.0
    %3451 = vmatpush1.msra.mxu0 0.0
    %3452 = vmatprep.subr.mxu0 0.0
    %3453 = vmatpush1.msra.mxu0 0.0
    %3454 = vmatprep.subr.mxu0 0.0
    %3455 = vmatpush1.msra.mxu0 0.0
    %3456 = vmatprep.subr.mxu0 0.0
    %3457 = vmatpush1.msra.mxu0 0.0
    %3458 = vmatprep.subr.mxu0 0.0
    %3459 = vmatpush1.msra.mxu0 0.0
    %3460 = vmatprep.subr.mxu0 0.0
    %3461 = vmatpush1.msra.mxu0 0.0
    %3462 = vmatprep.subr.mxu0 0.0
    %3463 = vmatpush1.msra.mxu0 0.0
    %3464 = vmatprep.subr.mxu0 0.0
    %3465 = vmatpush1.msra.mxu0 0.0
    %3466 = vmatprep.subr.mxu0 0.0
    %3467 = vmatpush1.msra.mxu0 0.0
    %3468 = vmatprep.subr.mxu0 0.0
    %3469 = vmatpush1.msra.mxu0 0.0
    %3470 = vmatprep.subr.mxu0 0.0
    %3471 = vmatpush1.msra.mxu0 0.0
    %3472 = vmatprep.subr.mxu0 0.0
    %3473 = vmatpush1.msra.mxu0 0.0
    %3474 = vmatprep.subr.mxu0 0.0
    %3475 = vmatpush1.msra.mxu0 0.0
    %3476 = vmatprep.subr.mxu0 0.0
    %3477 = vmatpush1.msra.mxu0 0.0
    %3478 = vmatprep.subr.mxu0 0.0
    %3479 = vmatpush1.msra.mxu0 0.0
    %3480 = vmatprep.subr.mxu0 0.0
    %3481 = vmatpush1.msra.mxu0 0.0
    %3482 = vmatprep.subr.mxu0 0.0
    %3483 = vmatpush1.msra.mxu0 0.0
    %3484 = vmatprep.subr.mxu0 0.0
    %3485 = vmatpush1.msra.mxu0 0.0
    %3486 = vmatprep.subr.mxu0 0.0
    %3487 = vmatpush1.msra.mxu0 0.0
    %3488 = vmatprep.subr.mxu0 0.0
    %3489 = vmatpush1.msra.mxu0 0.0
    %3490 = vmatprep.subr.mxu0 0.0
    %3491 = vmatpush1.msra.mxu0 0.0
    %3492 = vmatprep.subr.mxu0 0.0
    %3493 = vmatpush1.msra.mxu0 0.0
    %3494 = vmatprep.mubr.f32.mxu0 0.0
    %3495 = vmatmul.mubr.f32.gmra.mrb[0].mxu0 %v3383
    %v3496 = vpop.f32.mrb[0].mxu0
    %v3497 = vadd.f32 %v3366, %v3496
    %v3498 = vpop.f32.mrb[0].mxu0
    %3499 = vmatprep.mubr.f32.mxu0 0.0
    %3500 = vmatmul.mubr.f32.gmra.mrb[0].mxu0 %v3386
    %v3501 = vpop.f32.mrb[0].mxu0
    %v3502 = vadd.f32 %v3367, %v3501
    %v3503 = vpop.f32.mrb[0].mxu0
    %3504 = vmatprep.mubr.f32.mxu0 0.0
    %3505 = vmatmul.mubr.f32.gmra.mrb[0].mxu0 %v3389
    %v3506 = vpop.f32.mrb[0].mxu0
    %v3507 = vadd.f32 %v3368, %v3506
    %v3508 = vpop.f32.mrb[0].mxu0
    %3509 = vmatprep.mubr.f32.mxu0 0.0
    %3510 = vmatmul.mubr.f32.gmra.mrb[0].mxu0 %v3392
    %v3511 = vpop.f32.mrb[0].mxu0
    %v3512 = vadd.f32 %v3369, %v3511
    %v3513 = vpop.f32.mrb[0].mxu0
    %3514 = vmatprep.mubr.f32.mxu0 0.0
    %3515 = vmatmul.mubr.f32.gmra.mrb[0].mxu0 %v3395
    %v3516 = vpop.f32.mrb[0].mxu0
    %v3517 = vadd.f32 %v3370, %v3516
    %v3518 = vpop.f32.mrb[0].mxu0
    %3519 = vmatprep.mubr.f32.mxu0 0.0
    %3520 = vmatmul.mubr.f32.gmra.mrb[0].mxu0 %v3398
    %v3521 = vpop.f32.mrb[0].mxu0
    %v3522 = vadd.f32 %v3371, %v3521
    %v3523 = vpop.f32.mrb[0].mxu0
    %3524 = vmatprep.mubr.f32.mxu0 0.0
    %3525 = vmatmul.mubr.f32.gmra.mrb[0].mxu0 %v3401
    %v3526 = vpop.f32.mrb[0].mxu0
    %v3527 = vadd.f32 %v3372, %v3526
    %v3528 = vpop.f32.mrb[0].mxu0
    %3529 = vmatprep.mubr.f32.mxu0 0.0
    %3530 = vmatmul.mubr.f32.gmra.mrb[0].mxu0 %v3404
    %v3531 = vpop.f32.mrb[0].mxu0
    %v3532 = vadd.f32 %v3373, %v3531
    %v3533 = vpop.f32.mrb[0].mxu0
    %3534 = vmatprep.mubr.f32.mxu0 0.0
    %3535 = vmatmul.mubr.f32.gmra.mrb[0].mxu0 %v3407
    %v3536 = vpop.f32.mrb[0].mxu0
    %v3537 = vadd.f32 %v3374, %v3536
    %v3538 = vpop.f32.mrb[0].mxu0
    %3539 = vmatprep.mubr.f32.mxu0 0.0
    %3540 = vmatmul.mubr.f32.gmra.mrb[0].mxu0 %v3410
    %v3541 = vpop.f32.mrb[0].mxu0
    %v3542 = vadd.f32 %v3375, %v3541
    %v3543 = vpop.f32.mrb[0].mxu0
    %3544 = vmatprep.mubr.f32.mxu0 0.0
    %3545 = vmatmul.mubr.f32.gmra.mrb[0].mxu0 %v3413
    %v3546 = vpop.f32.mrb[0].mxu0
    %v3547 = vadd.f32 %v3376, %v3546
    %v3548 = vpop.f32.mrb[0].mxu0
    %3549 = vmatprep.mubr.f32.mxu0 0.0
    %3550 = vmatmul.mubr.f32.gmra.mrb[0].mxu0 %v3416
    %v3551 = vpop.f32.mrb[0].mxu0
    %v3552 = vadd.f32 %v3377, %v3551
    %v3553 = vpop.f32.mrb[0].mxu0
    %3554 = vmatprep.mubr.f32.mxu0 0.0
    %3555 = vmatmul.mubr.f32.gmra.mrb[0].mxu0 %v3419
    %v3556 = vpop.f32.mrb[0].mxu0
    %v3557 = vadd.f32 %v3378, %v3556
    %v3558 = vpop.f32.mrb[0].mxu0
    %3559 = vmatprep.mubr.f32.mxu0 0.0
    %3560 = vmatmul.mubr.f32.gmra.mrb[0].mxu0 %v3422
    %v3561 = vpop.f32.mrb[0].mxu0
    %v3562 = vadd.f32 %v3379, %v3561
    %v3563 = vpop.f32.mrb[0].mxu0
    %3564 = vmatprep.mubr.f32.mxu0 0.0
    %3565 = vmatmul.mubr.f32.gmra.mrb[0].mxu0 %v3425
    %v3566 = vpop.f32.mrb[0].mxu0
    %v3567 = vadd.f32 %v3380, %v3566
    %v3568 = vpop.f32.mrb[0].mxu0
    %3569 = vmatprep.mubr.f32.mxu0 0.0
    %3570 = vmatmul.mubr.f32.gmra.mrb[0].mxu0 %v3428
    %v3571 = vpop.f32.mrb[0].mxu0
    %v3572 = vadd.f32 %v3381, %v3571
    %v3573 = vpop.f32.mrb[0].mxu0
    %3574 = vdwg.mxu0
    %v3575 = vmax.f32 %v3497, 0.0
    %v3576 = vmax.f32 %v3502, 0.0
    %v3577 = vmax.f32 %v3507, 0.0
    %v3578 = vmax.f32 %v3512, 0.0
    %v3579 = vmax.f32 %v3517, 0.0
    %v3580 = vmax.f32 %v3522, 0.0
    %v3581 = vmax.f32 %v3527, 0.0
    %v3582 = vmax.f32 %v3532, 0.0
    %v3583 = vmax.f32 %v3537, 0.0
    %v3584 = vmax.f32 %v3542, 0.0
    %v3585 = vmax.f32 %v3547, 0.0
    %v3586 = vmax.f32 %v3552, 0.0
    %v3587 = vmax.f32 %v3557, 0.0
    %v3588 = vmax.f32 %v3562, 0.0
    %v3589 = vmax.f32 %v3567, 0.0
    %v3590 = vmax.f32 %v3572, 0.0
    %v3591 = vrot.slane %v3575, 7
    %v3592 = vrot.slane %v3576, 7
    %v3593 = vrot.slane %v3577, 7
    %v3594 = vrot.slane %v3578, 7
    %v3595 = vrot.slane %v3579, 7
    %v3596 = vrot.slane %v3580, 7
    %v3597 = vrot.slane %v3581, 7
    %v3598 = vrot.slane %v3582, 7
    %v3599 = vrot.slane %v3583, 7
    %v3600 = vrot.slane %v3584, 7
    %v3601 = vrot.slane %v3585, 7
    %v3602 = vrot.slane %v3586, 7
    %v3603 = vrot.slane %v3587, 7
    %v3604 = vrot.slane %v3588, 7
    %v3605 = vrot.slane %v3589, 7
    %v3606 = vrot.slane %v3590, 7
    %v3607 = vsel %vm166, %v3605, %v3606
    %v3608 = vsel %vm166, %v3604, %v3605
    %v3609 = vsel %vm166, %v3603, %v3604
    %v3610 = vsel %vm166, %v3602, %v3603
    %v3611 = vsel %vm166, %v3601, %v3602
    %v3612 = vsel %vm166, %v3600, %v3601
    %v3613 = vsel %vm166, %v3599, %v3600
    %v3614 = vsel %vm166, %v3598, %v3599
    %v3615 = vsel %vm166, %v3597, %v3598
    %v3616 = vsel %vm166, %v3596, %v3597
    %v3617 = vsel %vm166, %v3595, %v3596
    %v3618 = vsel %vm166, %v3594, %v3595
    %v3619 = vsel %vm166, %v3593, %v3594
    %v3620 = vsel %vm166, %v3592, %v3593
    %v3621 = vsel %vm166, %v3591, %v3592
    %v3622 = vsel %vm166, %v3606, %v3591
    %v3623 = vmul.f32 %v3622, %v728
    %v3624 = vmul.f32 %v3621, %v732
    %v3625 = vmul.f32 %v3620, %v736
    %v3626 = vmul.f32 %v3619, %v740
    %v3627 = vmul.f32 %v3618, %v744
    %v3628 = vmul.f32 %v3617, %v748
    %v3629 = vmul.f32 %v3616, %v752
    %v3630 = vmul.f32 %v3615, %v756
    %v3631 = vmul.f32 %v3614, %v760
    %v3632 = vmul.f32 %v3613, %v764
    %v3633 = vmul.f32 %v3612, %v768
    %v3634 = vmul.f32 %v3611, %v772
    %v3635 = vmul.f32 %v3610, %v776
    %v3636 = vmul.f32 %v3609, %v780
    %v3637 = vmul.f32 %v3608, %v784
    %v3638 = vmul.f32 %v3607, %v788
    %v3639 = vrot.slane %v3575, 1
    %v3640 = vrot.slane %v3576, 1
    %v3641 = vrot.slane %v3577, 1
    %v3642 = vrot.slane %v3578, 1
    %v3643 = vrot.slane %v3579, 1
    %v3644 = vrot.slane %v3580, 1
    %v3645 = vrot.slane %v3581, 1
    %v3646 = vrot.slane %v3582, 1
    %v3647 = vrot.slane %v3583, 1
    %v3648 = vrot.slane %v3584, 1
    %v3649 = vrot.slane %v3585, 1
    %v3650 = vrot.slane %v3586, 1
    %v3651 = vrot.slane %v3587, 1
    %v3652 = vrot.slane %v3588, 1
    %v3653 = vrot.slane %v3589, 1
    %v3654 = vrot.slane %v3590, 1
    %v3655 = vsel %vm215, %v3653, %v3654
    %v3656 = vsel %vm215, %v3652, %v3653
    %v3657 = vsel %vm215, %v3651, %v3652
    %v3658 = vsel %vm215, %v3650, %v3651
    %v3659 = vsel %vm215, %v3649, %v3650
    %v3660 = vsel %vm215, %v3648, %v3649
    %v3661 = vsel %vm215, %v3647, %v3648
    %v3662 = vsel %vm215, %v3646, %v3647
    %v3663 = vsel %vm215, %v3645, %v3646
    %v3664 = vsel %vm215, %v3644, %v3645
    %v3665 = vsel %vm215, %v3643, %v3644
    %v3666 = vsel %vm215, %v3642, %v3643
    %v3667 = vsel %vm215, %v3641, %v3642
    %v3668 = vsel %vm215, %v3640, %v3641
    %v3669 = vsel %vm215, %v3639, %v3640
    %v3670 = vsel %vm215, %v3654, %v3639
    %v3671 = vmul.f32 %v3669, %v840
    %v3672 = vmul.f32 %v3668, %v844
    %v3673 = vmul.f32 %v3667, %v848
    %v3674 = vmul.f32 %v3666, %v852
    %v3675 = vmul.f32 %v3665, %v856
    %v3676 = vmul.f32 %v3664, %v860
    %v3677 = vmul.f32 %v3663, %v864
    %v3678 = vmul.f32 %v3662, %v868
    %v3679 = vmul.f32 %v3661, %v872
    %v3680 = vmul.f32 %v3660, %v876
    %v3681 = vmul.f32 %v3659, %v880
    %v3682 = vmul.f32 %v3658, %v884
    %v3683 = vmul.f32 %v3657, %v888
    %v3684 = vmul.f32 %v3656, %v892
    %v3685 = vmul.f32 %v3655, %v896
    %v3686 = vmul.f32 %v3670, %v900
    %3703 = vrot.lane.b32.xlu0 %v3575, 4
    %v3704 = vpop.permute.xlu0 %3703
    %3705 = vrot.lane.b32.xlu0 %v3576, 4
    %v3706 = vpop.permute.xlu0 %3705
    %3707 = vrot.lane.b32.xlu0 %v3577, 4
    %v3708 = vpop.permute.xlu0 %3707
    %3709 = vrot.lane.b32.xlu0 %v3578, 4
    %v3710 = vpop.permute.xlu0 %3709
    %3711 = vrot.lane.b32.xlu0 %v3579, 4
    %v3712 = vpop.permute.xlu0 %3711
    %3713 = vrot.lane.b32.xlu0 %v3580, 4
    %v3714 = vpop.permute.xlu0 %3713
    %3715 = vrot.lane.b32.xlu0 %v3581, 4
    %v3716 = vpop.permute.xlu0 %3715
    %3717 = vrot.lane.b32.xlu0 %v3582, 4
    %v3718 = vpop.permute.xlu0 %3717
    %3719 = vrot.lane.b32.xlu0 %v3583, 4
    %v3720 = vpop.permute.xlu0 %3719
    %3721 = vrot.lane.b32.xlu0 %v3584, 4
    %v3722 = vpop.permute.xlu0 %3721
    %3723 = vrot.lane.b32.xlu0 %v3585, 4
    %v3724 = vpop.permute.xlu0 %3723
    %3725 = vrot.lane.b32.xlu0 %v3586, 4
    %v3726 = vpop.permute.xlu0 %3725
    %3727 = vrot.lane.b32.xlu0 %v3587, 4
    %v3728 = vpop.permute.xlu0 %3727
    %3729 = vrot.lane.b32.xlu0 %v3588, 4
    %v3730 = vpop.permute.xlu0 %3729
    %3731 = vrot.lane.b32.xlu0 %v3589, 4
    %v3732 = vpop.permute.xlu0 %3731
    %3733 = vrot.lane.b32.xlu0 %v3590, 4
    %v3734 = vpop.permute.xlu0 %3733
    %3767 = vrot.lane.b32.xlu0 %v3671, 8
    %v3768 = vpop.permute.xlu0 %3767
    %3769 = vrot.lane.b32.xlu0 %v3672, 8
    %v3770 = vpop.permute.xlu0 %3769
    %3771 = vrot.lane.b32.xlu0 %v3673, 8
    %v3772 = vpop.permute.xlu0 %3771
    %3773 = vrot.lane.b32.xlu0 %v3674, 8
    %v3774 = vpop.permute.xlu0 %3773
    %3775 = vrot.lane.b32.xlu0 %v3675, 8
    %v3776 = vpop.permute.xlu0 %3775
    %3777 = vrot.lane.b32.xlu0 %v3676, 8
    %v3778 = vpop.permute.xlu0 %3777
    %3779 = vrot.lane.b32.xlu0 %v3677, 8
    %v3780 = vpop.permute.xlu0 %3779
    %3781 = vrot.lane.b32.xlu0 %v3678, 8
    %v3782 = vpop.permute.xlu0 %3781
    %3783 = vrot.lane.b32.xlu0 %v3679, 8
    %v3784 = vpop.permute.xlu0 %3783
    %3785 = vrot.lane.b32.xlu0 %v3680, 8
    %v3786 = vpop.permute.xlu0 %3785
    %3787 = vrot.lane.b32.xlu0 %v3681, 8
    %v3788 = vpop.permute.xlu0 %3787
    %3789 = vrot.lane.b32.xlu0 %v3682, 8
    %v3790 = vpop.permute.xlu0 %3789
    %3791 = vrot.lane.b32.xlu0 %v3683, 8
    %v3792 = vpop.permute.xlu0 %3791
    %3793 = vrot.lane.b32.xlu0 %v3684, 8
    %v3794 = vpop.permute.xlu0 %3793
    %3795 = vrot.lane.b32.xlu0 %v3685, 8
    %v3796 = vpop.permute.xlu0 %3795
    %3797 = vrot.lane.b32.xlu0 %v3686, 8
    %v3798 = vpop.permute.xlu0 %3797
    %v3815 = vsel %vm2639, %v3623, %v3704
    %v3816 = vsel %vm2639, %v3624, %v3706
    %v3817 = vsel %vm2639, %v3625, %v3708
    %v3818 = vsel %vm2639, %v3626, %v3710
    %v3819 = vsel %vm2639, %v3627, %v3712
    %v3820 = vsel %vm2639, %v3628, %v3714
    %v3821 = vsel %vm2639, %v3629, %v3716
    %v3822 = vsel %vm2639, %v3630, %v3718
    %v3823 = vsel %vm2639, %v3631, %v3720
    %v3824 = vsel %vm2639, %v3632, %v3722
    %v3825 = vsel %vm2639, %v3633, %v3724
    %v3826 = vsel %vm2639, %v3634, %v3726
    %v3827 = vsel %vm2639, %v3635, %v3728
    %v3828 = vsel %vm2639, %v3636, %v3730
    %v3829 = vsel %vm2639, %v3637, %v3732
    %v3830 = vsel %vm2639, %v3638, %v3734
    %v3831 = vsel %vm2656, %v3815, %v3768
    %v3832 = vsel %vm2656, %v3816, %v3770
    %v3833 = vsel %vm2656, %v3817, %v3772
    %v3834 = vsel %vm2656, %v3818, %v3774
    %v3835 = vsel %vm2656, %v3819, %v3776
    %v3836 = vsel %vm2656, %v3820, %v3778
    %v3837 = vsel %vm2656, %v3821, %v3780
    %v3838 = vsel %vm2656, %v3822, %v3782
    %v3839 = vsel %vm2656, %v3823, %v3784
    %v3840 = vsel %vm2656, %v3824, %v3786
    %v3841 = vsel %vm2656, %v3825, %v3788
    %v3842 = vsel %vm2656, %v3826, %v3790
    %v3843 = vsel %vm2656, %v3827, %v3792
    %v3844 = vsel %vm2656, %v3828, %v3794
    %v3845 = vsel %vm2656, %v3829, %v3796
    %v3846 = vsel %vm2656, %v3830, %v3798
    %v3847 = vld [vmem:[%s14] sm:$0xff]
    %v3848 = vld [vmem:[%s14 + $0x8] sm:$0xf]
    %v3849 = vld [vmem:[%s14 + $0xc] sm:$0x1]
    %v3850 = vlaneseq
    %v3851 = vshrl.u32 %v3850, 7
    %v3852 = vsub.s32 0, %v3851
    %v3853 = vrot.slane %v3849, %v3852
    %v3855 = vsel %vm2673, %v3831, 0
    %v3858 = vsel %vm2673, %v3832, 0
    %v3861 = vsel %vm2673, %v3833, 0
    %v3864 = vsel %vm2673, %v3834, 0
    %v3867 = vsel %vm2673, %v3835, 0
    %v3870 = vsel %vm2673, %v3836, 0
    %v3873 = vsel %vm2673, %v3837, 0
    %v3876 = vsel %vm2673, %v3838, 0
    %v3879 = vsel %vm2673, %v3839, 0
    %v3882 = vsel %vm2673, %v3840, 0
    %v3885 = vsel %vm2673, %v3841, 0
    %v3888 = vsel %vm2673, %v3842, 0
    %v3891 = vsel %vm2673, %v3843, 0
    %v3894 = vsel %vm2673, %v3844, 0
    %v3897 = vsel %vm2673, %v3845, 0
    %v3900 = vsel %vm2673, %v3846, 0
    %v3903 = vsel %vm1148, %v3848, 0
    %3905 = vmatprep.subr.mxu0 0.0
    %3906 = vmatpush1.msra.mxu0 %v3847
    %3907 = vmatprep.subr.mxu0 0.0
    %3908 = vmatpush1.msra.mxu0 %v3903
    %3909 = vmatprep.subr.mxu0 0.0
    %3910 = vmatpush1.msra.mxu0 0.0
    %3911 = vmatprep.subr.mxu0 0.0
    %3912 = vmatpush1.msra.mxu0 0.0
    %3913 = vmatprep.subr.mxu0 0.0
    %3914 = vmatpush1.msra.mxu0 0.0
    %3915 = vmatprep.subr.mxu0 0.0
    %3916 = vmatpush1.msra.mxu0 0.0
    %3917 = vmatprep.subr.mxu0 0.0
    %3918 = vmatpush1.msra.mxu0 0.0
    %3919 = vmatprep.subr.mxu0 0.0
    %3920 = vmatpush1.msra.mxu0 0.0
    %3921 = vmatprep.subr.mxu0 0.0
    %3922 = vmatpush1.msra.mxu0 0.0
    %3923 = vmatprep.subr.mxu0 0.0
    %3924 = vmatpush1.msra.mxu0 0.0
    %3925 = vmatprep.subr.mxu0 0.0
    %3926 = vmatpush1.msra.mxu0 0.0
    %3927 = vmatprep.subr.mxu0 0.0
    %3928 = vmatpush1.msra.mxu0 0.0
    %3929 = vmatprep.subr.mxu0 0.0
    %3930 = vmatpush1.msra.mxu0 0.0
    %3931 = vmatprep.subr.mxu0 0.0
    %3932 = vmatpush1.msra.mxu0 0.0
    %3933 = vmatprep.subr.mxu0 0.0
    %3934 = vmatpush1.msra.mxu0 0.0
    %3935 = vmatprep.subr.mxu0 0.0
    %3936 = vmatpush1.msra.mxu0 0.0
    %3937 = vmatprep.subr.mxu0 0.0
    %3938 = vmatpush1.msra.mxu0 0.0
    %3939 = vmatprep.subr.mxu0 0.0
    %3940 = vmatpush1.msra.mxu0 0.0
    %3941 = vmatprep.subr.mxu0 0.0
    %3942 = vmatpush1.msra.mxu0 0.0
    %3943 = vmatprep.subr.mxu0 0.0
    %3944 = vmatpush1.msra.mxu0 0.0
    %3945 = vmatprep.subr.mxu0 0.0
    %3946 = vmatpush1.msra.mxu0 0.0
    %3947 = vmatprep.subr.mxu0 0.0
    %3948 = vmatpush1.msra.mxu0 0.0
    %3949 = vmatprep.subr.mxu0 0.0
    %3950 = vmatpush1.msra.mxu0 0.0
    %3951 = vmatprep.subr.mxu0 0.0
    %3952 = vmatpush1.msra.mxu0 0.0
    %3953 = vmatprep.subr.mxu0 0.0
    %3954 = vmatpush1.msra.mxu0 0.0
    %3955 = vmatprep.subr.mxu0 0.0
    %3956 = vmatpush1.msra.mxu0 0.0
    %3957 = vmatprep.subr.mxu0 0.0
    %3958 = vmatpush1.msra.mxu0 0.0
    %3959 = vmatprep.subr.mxu0 0.0
    %3960 = vmatpush1.msra.mxu0 0.0
    %3961 = vmatprep.subr.mxu0 0.0
    %3962 = vmatpush1.msra.mxu0 0.0
    %3963 = vmatprep.subr.mxu0 0.0
    %3964 = vmatpush1.msra.mxu0 0.0
    %3965 = vmatprep.subr.mxu0 0.0
    %3966 = vmatpush1.msra.mxu0 0.0
    %3967 = vmatprep.subr.mxu0 0.0
    %3968 = vmatpush1.msra.mxu0 0.0
    %3969 = vmatprep.mubr.f32.mxu0 0.0
    %3970 = vmatmul.mubr.f32.gmra.mrb[0].mxu0 %v3855
    %v3971 = vpop.f32.mrb[0].mxu0
    %v3972 = vadd.f32 %v3853, %v3971
    %v3973 = vpop.f32.mrb[0].mxu0
    %3974 = vmatprep.mubr.f32.mxu0 0.0
    %3975 = vmatmul.mubr.f32.gmra.mrb[0].mxu0 %v3858
    %v3976 = vpop.f32.mrb[0].mxu0
    %v3977 = vadd.f32 %v3853, %v3976
    %v3978 = vpop.f32.mrb[0].mxu0
    %3979 = vmatprep.mubr.f32.mxu0 0.0
    %3980 = vmatmul.mubr.f32.gmra.mrb[0].mxu0 %v3861
    %v3981 = vpop.f32.mrb[0].mxu0
    %v3982 = vadd.f32 %v3853, %v3981
    %v3983 = vpop.f32.mrb[0].mxu0
    %3984 = vmatprep.mubr.f32.mxu0 0.0
    %3985 = vmatmul.mubr.f32.gmra.mrb[0].mxu0 %v3864
    %v3986 = vpop.f32.mrb[0].mxu0
    %v3987 = vadd.f32 %v3853, %v3986
    %v3988 = vpop.f32.mrb[0].mxu0
    %3989 = vmatprep.mubr.f32.mxu0 0.0
    %3990 = vmatmul.mubr.f32.gmra.mrb[0].mxu0 %v3867
    %v3991 = vpop.f32.mrb[0].mxu0
    %v3992 = vadd.f32 %v3853, %v3991
    %v3993 = vpop.f32.mrb[0].mxu0
    %3994 = vmatprep.mubr.f32.mxu0 0.0
    %3995 = vmatmul.mubr.f32.gmra.mrb[0].mxu0 %v3870
    %v3996 = vpop.f32.mrb[0].mxu0
    %v3997 = vadd.f32 %v3853, %v3996
    %v3998 = vpop.f32.mrb[0].mxu0
    %3999 = vmatprep.mubr.f32.mxu0 0.0
    %4000 = vmatmul.mubr.f32.gmra.mrb[0].mxu0 %v3873
    %v4001 = vpop.f32.mrb[0].mxu0
    %v4002 = vadd.f32 %v3853, %v4001
    %v4003 = vpop.f32.mrb[0].mxu0
    %4004 = vmatprep.mubr.f32.mxu0 0.0
    %4005 = vmatmul.mubr.f32.gmra.mrb[0].mxu0 %v3876
    %v4006 = vpop.f32.mrb[0].mxu0
    %v4007 = vadd.f32 %v3853, %v4006
    %v4008 = vpop.f32.mrb[0].mxu0
    %4009 = vmatprep.mubr.f32.mxu0 0.0
    %4010 = vmatmul.mubr.f32.gmra.mrb[0].mxu0 %v3879
    %v4011 = vpop.f32.mrb[0].mxu0
    %v4012 = vadd.f32 %v3853, %v4011
    %v4013 = vpop.f32.mrb[0].mxu0
    %4014 = vmatprep.mubr.f32.mxu0 0.0
    %4015 = vmatmul.mubr.f32.gmra.mrb[0].mxu0 %v3882
    %v4016 = vpop.f32.mrb[0].mxu0
    %v4017 = vadd.f32 %v3853, %v4016
    %v4018 = vpop.f32.mrb[0].mxu0
    %4019 = vmatprep.mubr.f32.mxu0 0.0
    %4020 = vmatmul.mubr.f32.gmra.mrb[0].mxu0 %v3885
    %v4021 = vpop.f32.mrb[0].mxu0
    %v4022 = vadd.f32 %v3853, %v4021
    %v4023 = vpop.f32.mrb[0].mxu0
    %4024 = vmatprep.mubr.f32.mxu0 0.0
    %4025 = vmatmul.mubr.f32.gmra.mrb[0].mxu0 %v3888
    %v4026 = vpop.f32.mrb[0].mxu0
    %v4027 = vadd.f32 %v3853, %v4026
    %v4028 = vpop.f32.mrb[0].mxu0
    %4029 = vmatprep.mubr.f32.mxu0 0.0
    %4030 = vmatmul.mubr.f32.gmra.mrb[0].mxu0 %v3891
    %v4031 = vpop.f32.mrb[0].mxu0
    %v4032 = vadd.f32 %v3853, %v4031
    %v4033 = vpop.f32.mrb[0].mxu0
    %4034 = vmatprep.mubr.f32.mxu0 0.0
    %4035 = vmatmul.mubr.f32.gmra.mrb[0].mxu0 %v3894
    %v4036 = vpop.f32.mrb[0].mxu0
    %v4037 = vadd.f32 %v3853, %v4036
    %v4038 = vpop.f32.mrb[0].mxu0
    %4039 = vmatprep.mubr.f32.mxu0 0.0
    %4040 = vmatmul.mubr.f32.gmra.mrb[0].mxu0 %v3897
    %v4041 = vpop.f32.mrb[0].mxu0
    %v4042 = vadd.f32 %v3853, %v4041
    %v4043 = vpop.f32.mrb[0].mxu0
    %4044 = vmatprep.mubr.f32.mxu0 0.0
    %4045 = vmatmul.mubr.f32.gmra.mrb[0].mxu0 %v3900
    %v4046 = vpop.f32.mrb[0].mxu0
    %v4047 = vadd.f32 %v3853, %v4046
    %v4048 = vpop.f32.mrb[0].mxu0
    %4049 = vdwg.mxu0
    %v4050 = vmax.f32 %v3972, 0.0
    %v4051 = vmax.f32 %v3977, 0.0
    %v4052 = vmax.f32 %v3982, 0.0
    %v4053 = vmax.f32 %v3987, 0.0
    %v4054 = vmax.f32 %v3992, 0.0
    %v4055 = vmax.f32 %v3997, 0.0
    %v4056 = vmax.f32 %v4002, 0.0
    %v4057 = vmax.f32 %v4007, 0.0
    %v4058 = vmax.f32 %v4012, 0.0
    %v4059 = vmax.f32 %v4017, 0.0
    %v4060 = vmax.f32 %v4022, 0.0
    %v4061 = vmax.f32 %v4027, 0.0
    %v4062 = vmax.f32 %v4032, 0.0
    %v4063 = vmax.f32 %v4037, 0.0
    %v4064 = vmax.f32 %v4042, 0.0
    %v4065 = vmax.f32 %v4047, 0.0
    %v4066 = vrot.slane %v4050, 7
    %v4067 = vrot.slane %v4051, 7
    %v4068 = vrot.slane %v4052, 7
    %v4069 = vrot.slane %v4053, 7
    %v4070 = vrot.slane %v4054, 7
    %v4071 = vrot.slane %v4055, 7
    %v4072 = vrot.slane %v4056, 7
    %v4073 = vrot.slane %v4057, 7
    %v4074 = vrot.slane %v4058, 7
    %v4075 = vrot.slane %v4059, 7
    %v4076 = vrot.slane %v4060, 7
    %v4077 = vrot.slane %v4061, 7
    %v4078 = vrot.slane %v4062, 7
    %v4079 = vrot.slane %v4063, 7
    %v4080 = vrot.slane %v4064, 7
    %v4081 = vrot.slane %v4065, 7
    %v4082 = vsel %vm166, %v4080, %v4081
    %v4083 = vsel %vm166, %v4079, %v4080
    %v4084 = vsel %vm166, %v4078, %v4079
    %v4085 = vsel %vm166, %v4077, %v4078
    %v4086 = vsel %vm166, %v4076, %v4077
    %v4087 = vsel %vm166, %v4075, %v4076
    %v4088 = vsel %vm166, %v4074, %v4075
    %v4089 = vsel %vm166, %v4073, %v4074
    %v4090 = vsel %vm166, %v4072, %v4073
    %v4091 = vsel %vm166, %v4071, %v4072
    %v4092 = vsel %vm166, %v4070, %v4071
    %v4093 = vsel %vm166, %v4069, %v4070
    %v4094 = vsel %vm166, %v4068, %v4069
    %v4095 = vsel %vm166, %v4067, %v4068
    %v4096 = vsel %vm166, %v4066, %v4067
    %v4097 = vsel %vm166, %v4081, %v4066
    %v4098 = vmul.f32 %v4097, %v728
    %v4099 = vmul.f32 %v4096, %v732
    %v4100 = vmul.f32 %v4095, %v736
    %v4101 = vmul.f32 %v4094, %v740
    %v4102 = vmul.f32 %v4093, %v744
    %v4103 = vmul.f32 %v4092, %v748
    %v4104 = vmul.f32 %v4091, %v752
    %v4105 = vmul.f32 %v4090, %v756
    %v4106 = vmul.f32 %v4089, %v760
    %v4107 = vmul.f32 %v4088, %v764
    %v4108 = vmul.f32 %v4087, %v768
    %v4109 = vmul.f32 %v4086, %v772
    %v4110 = vmul.f32 %v4085, %v776
    %v4111 = vmul.f32 %v4084, %v780
    %v4112 = vmul.f32 %v4083, %v784
    %v4113 = vmul.f32 %v4082, %v788
    %v4114 = vrot.slane %v4050, 1
    %v4115 = vrot.slane %v4051, 1
    %v4116 = vrot.slane %v4052, 1
    %v4117 = vrot.slane %v4053, 1
    %v4118 = vrot.slane %v4054, 1
    %v4119 = vrot.slane %v4055, 1
    %v4120 = vrot.slane %v4056, 1
    %v4121 = vrot.slane %v4057, 1
    %v4122 = vrot.slane %v4058, 1
    %v4123 = vrot.slane %v4059, 1
    %v4124 = vrot.slane %v4060, 1
    %v4125 = vrot.slane %v4061, 1
    %v4126 = vrot.slane %v4062, 1
    %v4127 = vrot.slane %v4063, 1
    %v4128 = vrot.slane %v4064, 1
    %v4129 = vrot.slane %v4065, 1
    %v4130 = vsel %vm215, %v4128, %v4129
    %v4131 = vsel %vm215, %v4127, %v4128
    %v4132 = vsel %vm215, %v4126, %v4127
    %v4133 = vsel %vm215, %v4125, %v4126
    %v4134 = vsel %vm215, %v4124, %v4125
    %v4135 = vsel %vm215, %v4123, %v4124
    %v4136 = vsel %vm215, %v4122, %v4123
    %v4137 = vsel %vm215, %v4121, %v4122
    %v4138 = vsel %vm215, %v4120, %v4121
    %v4139 = vsel %vm215, %v4119, %v4120
    %v4140 = vsel %vm215, %v4118, %v4119
    %v4141 = vsel %vm215, %v4117, %v4118
    %v4142 = vsel %vm215, %v4116, %v4117
    %v4143 = vsel %vm215, %v4115, %v4116
    %v4144 = vsel %vm215, %v4114, %v4115
    %v4145 = vsel %vm215, %v4129, %v4114
    %v4146 = vmul.f32 %v4144, %v840
    %v4147 = vmul.f32 %v4143, %v844
    %v4148 = vmul.f32 %v4142, %v848
    %v4149 = vmul.f32 %v4141, %v852
    %v4150 = vmul.f32 %v4140, %v856
    %v4151 = vmul.f32 %v4139, %v860
    %v4152 = vmul.f32 %v4138, %v864
    %v4153 = vmul.f32 %v4137, %v868
    %v4154 = vmul.f32 %v4136, %v872
    %v4155 = vmul.f32 %v4135, %v876
    %v4156 = vmul.f32 %v4134, %v880
    %v4157 = vmul.f32 %v4133, %v884
    %v4158 = vmul.f32 %v4132, %v888
    %v4159 = vmul.f32 %v4131, %v892
    %v4160 = vmul.f32 %v4130, %v896
    %v4161 = vmul.f32 %v4145, %v900
    %4178 = vrot.lane.b32.xlu0 %v4050, 36
    %v4179 = vpop.permute.xlu0 %4178
    %4180 = vrot.lane.b32.xlu0 %v4051, 36
    %v4181 = vpop.permute.xlu0 %4180
    %4182 = vrot.lane.b32.xlu0 %v4052, 36
    %v4183 = vpop.permute.xlu0 %4182
    %4184 = vrot.lane.b32.xlu0 %v4053, 36
    %v4185 = vpop.permute.xlu0 %4184
    %4186 = vrot.lane.b32.xlu0 %v4054, 36
    %v4187 = vpop.permute.xlu0 %4186
    %4188 = vrot.lane.b32.xlu0 %v4055, 36
    %v4189 = vpop.permute.xlu0 %4188
    %4190 = vrot.lane.b32.xlu0 %v4056, 36
    %v4191 = vpop.permute.xlu0 %4190
    %4192 = vrot.lane.b32.xlu0 %v4057, 36
    %v4193 = vpop.permute.xlu0 %4192
    %4194 = vrot.lane.b32.xlu0 %v4058, 36
    %v4195 = vpop.permute.xlu0 %4194
    %4196 = vrot.lane.b32.xlu0 %v4059, 36
    %v4197 = vpop.permute.xlu0 %4196
    %4198 = vrot.lane.b32.xlu0 %v4060, 36
    %v4199 = vpop.permute.xlu0 %4198
    %4200 = vrot.lane.b32.xlu0 %v4061, 36
    %v4201 = vpop.permute.xlu0 %4200
    %4202 = vrot.lane.b32.xlu0 %v4062, 36
    %v4203 = vpop.permute.xlu0 %4202
    %4204 = vrot.lane.b32.xlu0 %v4063, 36
    %v4205 = vpop.permute.xlu0 %4204
    %4206 = vrot.lane.b32.xlu0 %v4064, 36
    %v4207 = vpop.permute.xlu0 %4206
    %4208 = vrot.lane.b32.xlu0 %v4065, 36
    %v4209 = vpop.permute.xlu0 %4208
    %4242 = vrot.lane.b32.xlu0 %v4146, 72
    %v4243 = vpop.permute.xlu0 %4242
    %4244 = vrot.lane.b32.xlu0 %v4147, 72
    %v4245 = vpop.permute.xlu0 %4244
    %4246 = vrot.lane.b32.xlu0 %v4148, 72
    %v4247 = vpop.permute.xlu0 %4246
    %4248 = vrot.lane.b32.xlu0 %v4149, 72
    %v4249 = vpop.permute.xlu0 %4248
    %4250 = vrot.lane.b32.xlu0 %v4150, 72
    %v4251 = vpop.permute.xlu0 %4250
    %4252 = vrot.lane.b32.xlu0 %v4151, 72
    %v4253 = vpop.permute.xlu0 %4252
    %4254 = vrot.lane.b32.xlu0 %v4152, 72
    %v4255 = vpop.permute.xlu0 %4254
    %4256 = vrot.lane.b32.xlu0 %v4153, 72
    %v4257 = vpop.permute.xlu0 %4256
    %4258 = vrot.lane.b32.xlu0 %v4154, 72
    %v4259 = vpop.permute.xlu0 %4258
    %4260 = vrot.lane.b32.xlu0 %v4155, 72
    %v4261 = vpop.permute.xlu0 %4260
    %4262 = vrot.lane.b32.xlu0 %v4156, 72
    %v4263 = vpop.permute.xlu0 %4262
    %4264 = vrot.lane.b32.xlu0 %v4157, 72
    %v4265 = vpop.permute.xlu0 %4264
    %4266 = vrot.lane.b32.xlu0 %v4158, 72
    %v4267 = vpop.permute.xlu0 %4266
    %4268 = vrot.lane.b32.xlu0 %v4159, 72
    %v4269 = vpop.permute.xlu0 %4268
    %4270 = vrot.lane.b32.xlu0 %v4160, 72
    %v4271 = vpop.permute.xlu0 %4270
    %4272 = vrot.lane.b32.xlu0 %v4161, 72
    %v4273 = vpop.permute.xlu0 %4272
    %v4290 = vsel %vm1046, %v4098, %v4179
    %v4291 = vsel %vm1046, %v4099, %v4181
    %v4292 = vsel %vm1046, %v4100, %v4183
    %v4293 = vsel %vm1046, %v4101, %v4185
    %v4294 = vsel %vm1046, %v4102, %v4187
    %v4295 = vsel %vm1046, %v4103, %v4189
    %v4296 = vsel %vm1046, %v4104, %v4191
    %v4297 = vsel %vm1046, %v4105, %v4193
    %v4298 = vsel %vm1046, %v4106, %v4195
    %v4299 = vsel %vm1046, %v4107, %v4197
    %v4300 = vsel %vm1046, %v4108, %v4199
    %v4301 = vsel %vm1046, %v4109, %v4201
    %v4302 = vsel %vm1046, %v4110, %v4203
    %v4303 = vsel %vm1046, %v4111, %v4205
    %v4304 = vsel %vm1046, %v4112, %v4207
    %v4305 = vsel %vm1046, %v4113, %v4209
    %v4306 = vsel %vm1063, %v4290, %v4243
    %v4307 = vsel %vm1063, %v4291, %v4245
    %v4308 = vsel %vm1063, %v4292, %v4247
    %v4309 = vsel %vm1063, %v4293, %v4249
    %v4310 = vsel %vm1063, %v4294, %v4251
    %v4311 = vsel %vm1063, %v4295, %v4253
    %v4312 = vsel %vm1063, %v4296, %v4255
    %v4313 = vsel %vm1063, %v4297, %v4257
    %v4314 = vsel %vm1063, %v4298, %v4259
    %v4315 = vsel %vm1063, %v4299, %v4261
    %v4316 = vsel %vm1063, %v4300, %v4263
    %v4317 = vsel %vm1063, %v4301, %v4265
    %v4318 = vsel %vm1063, %v4302, %v4267
    %v4319 = vsel %vm1063, %v4303, %v4269
    %v4320 = vsel %vm1063, %v4304, %v4271
    %v4321 = vsel %vm1063, %v4305, %v4273
    %v4322 = vld [vmem:[%s15] sm:$0xff]
    %v4323 = vld [vmem:[%s15 + $0x8] sm:$0xff]
    %v4324 = vld [vmem:[%s15 + $0x10] sm:$0xff]
    %v4325 = vld [vmem:[%s15 + $0x18] sm:$0xff]
    %v4326 = vld [vmem:[%s15 + $0x20] sm:$0xff]
    %v4327 = vld [vmem:[%s15 + $0x28] sm:$0xff]
    %v4328 = vld [vmem:[%s15 + $0x30] sm:$0xff]
    %v4329 = vld [vmem:[%s15 + $0x38] sm:$0xff]
    %v4330 = vld [vmem:[%s15 + $0x40] sm:$0xff]
    %v4331 = vld [vmem:[%s15 + $0x48] sm:$0xff]
    %v4332 = vld [vmem:[%s15 + $0x50] sm:$0xff]
    %v4333 = vld [vmem:[%s15 + $0x58] sm:$0xff]
    %v4334 = vld [vmem:[%s15 + $0x60] sm:$0xff]
    %v4335 = vld [vmem:[%s15 + $0x68] sm:$0xf]
    %v4336 = vld [vmem:[%s15 + $0x6c] sm:$0x1]
    %v4337 = vlaneseq
    %v4338 = vshrl.u32 %v4337, 7
    %v4339 = vsub.s32 0, %v4338
    %v4340 = vrot.slane %v4336, %v4339
    %v4342 = vsel %vm1099, %v4306, 0
    %v4345 = vsel %vm1099, %v4307, 0
    %v4348 = vsel %vm1099, %v4308, 0
    %v4351 = vsel %vm1099, %v4309, 0
    %v4354 = vsel %vm1099, %v4310, 0
    %v4357 = vsel %vm1099, %v4311, 0
    %v4360 = vsel %vm1099, %v4312, 0
    %v4363 = vsel %vm1099, %v4313, 0
    %v4366 = vsel %vm1099, %v4314, 0
    %v4369 = vsel %vm1099, %v4315, 0
    %v4372 = vsel %vm1099, %v4316, 0
    %v4375 = vsel %vm1099, %v4317, 0
    %v4378 = vsel %vm1099, %v4318, 0
    %v4381 = vsel %vm1099, %v4319, 0
    %v4384 = vsel %vm1099, %v4320, 0
    %v4387 = vsel %vm1099, %v4321, 0
    %v4390 = vsel %vm1148, %v4335, 0
    %4392 = vmatprep.subr.mxu0 0.0
    %4393 = vmatpush1.msra.mxu0 %v4322
    %4394 = vmatprep.subr.mxu0 0.0
    %4395 = vmatpush1.msra.mxu0 %v4323
    %4396 = vmatprep.subr.mxu0 0.0
    %4397 = vmatpush1.msra.mxu0 %v4324
    %4398 = vmatprep.subr.mxu0 0.0
    %4399 = vmatpush1.msra.mxu0 %v4325
    %4400 = vmatprep.subr.mxu0 0.0
    %4401 = vmatpush1.msra.mxu0 %v4326
    %4402 = vmatprep.subr.mxu0 0.0
    %4403 = vmatpush1.msra.mxu0 %v4327
    %4404 = vmatprep.subr.mxu0 0.0
    %4405 = vmatpush1.msra.mxu0 %v4328
    %4406 = vmatprep.subr.mxu0 0.0
    %4407 = vmatpush1.msra.mxu0 %v4329
    %4408 = vmatprep.subr.mxu0 0.0
    %4409 = vmatpush1.msra.mxu0 %v4330
    %4410 = vmatprep.subr.mxu0 0.0
    %4411 = vmatpush1.msra.mxu0 %v4331
    %4412 = vmatprep.subr.mxu0 0.0
    %4413 = vmatpush1.msra.mxu0 %v4332
    %4414 = vmatprep.subr.mxu0 0.0
    %4415 = vmatpush1.msra.mxu0 %v4333
    %4416 = vmatprep.subr.mxu0 0.0
    %4417 = vmatpush1.msra.mxu0 %v4334
    %4418 = vmatprep.subr.mxu0 0.0
    %4419 = vmatpush1.msra.mxu0 %v4390
    %4420 = vmatprep.subr.mxu0 0.0
    %4421 = vmatpush1.msra.mxu0 0.0
    %4422 = vmatprep.subr.mxu0 0.0
    %4423 = vmatpush1.msra.mxu0 0.0
    %4424 = vmatprep.subr.mxu0 0.0
    %4425 = vmatpush1.msra.mxu0 0.0
    %4426 = vmatprep.subr.mxu0 0.0
    %4427 = vmatpush1.msra.mxu0 0.0
    %4428 = vmatprep.subr.mxu0 0.0
    %4429 = vmatpush1.msra.mxu0 0.0
    %4430 = vmatprep.subr.mxu0 0.0
    %4431 = vmatpush1.msra.mxu0 0.0
    %4432 = vmatprep.subr.mxu0 0.0
    %4433 = vmatpush1.msra.mxu0 0.0
    %4434 = vmatprep.subr.mxu0 0.0
    %4435 = vmatpush1.msra.mxu0 0.0
    %4436 = vmatprep.subr.mxu0 0.0
    %4437 = vmatpush1.msra.mxu0 0.0
    %4438 = vmatprep.subr.mxu0 0.0
    %4439 = vmatpush1.msra.mxu0 0.0
    %4440 = vmatprep.subr.mxu0 0.0
    %4441 = vmatpush1.msra.mxu0 0.0
    %4442 = vmatprep.subr.mxu0 0.0
    %4443 = vmatpush1.msra.mxu0 0.0
    %4444 = vmatprep.subr.mxu0 0.0
    %4445 = vmatpush1.msra.mxu0 0.0
    %4446 = vmatprep.subr.mxu0 0.0
    %4447 = vmatpush1.msra.mxu0 0.0
    %4448 = vmatprep.subr.mxu0 0.0
    %4449 = vmatpush1.msra.mxu0 0.0
    %4450 = vmatprep.subr.mxu0 0.0
    %4451 = vmatpush1.msra.mxu0 0.0
    %4452 = vmatprep.subr.mxu0 0.0
    %4453 = vmatpush1.msra.mxu0 0.0
    %4454 = vmatprep.subr.mxu0 0.0
    %4455 = vmatpush1.msra.mxu0 0.0
    %4456 = vmatprep.mubr.f32.mxu0 0.0
    %4457 = vmatmul.mubr.f32.gmra.mrb[0].mxu0 %v4342
    %v4458 = vpop.f32.mrb[0].mxu0
    %v4459 = vadd.f32 %v4340, %v4458
    %v4460 = vpop.f32.mrb[0].mxu0
    %4461 = vmatprep.mubr.f32.mxu0 0.0
    %4462 = vmatmul.mubr.f32.gmra.mrb[0].mxu0 %v4345
    %v4463 = vpop.f32.mrb[0].mxu0
    %v4464 = vadd.f32 %v4340, %v4463
    %v4465 = vpop.f32.mrb[0].mxu0
    %4466 = vmatprep.mubr.f32.mxu0 0.0
    %4467 = vmatmul.mubr.f32.gmra.mrb[0].mxu0 %v4348
    %v4468 = vpop.f32.mrb[0].mxu0
    %v4469 = vadd.f32 %v4340, %v4468
    %v4470 = vpop.f32.mrb[0].mxu0
    %4471 = vmatprep.mubr.f32.mxu0 0.0
    %4472 = vmatmul.mubr.f32.gmra.mrb[0].mxu0 %v4351
    %v4473 = vpop.f32.mrb[0].mxu0
    %v4474 = vadd.f32 %v4340, %v4473
    %v4475 = vpop.f32.mrb[0].mxu0
    %4476 = vmatprep.mubr.f32.mxu0 0.0
    %4477 = vmatmul.mubr.f32.gmra.mrb[0].mxu0 %v4354
    %v4478 = vpop.f32.mrb[0].mxu0
    %v4479 = vadd.f32 %v4340, %v4478
    %v4480 = vpop.f32.mrb[0].mxu0
    %4481 = vmatprep.mubr.f32.mxu0 0.0
    %4482 = vmatmul.mubr.f32.gmra.mrb[0].mxu0 %v4357
    %v4483 = vpop.f32.mrb[0].mxu0
    %v4484 = vadd.f32 %v4340, %v4483
    %v4485 = vpop.f32.mrb[0].mxu0
    %4486 = vmatprep.mubr.f32.mxu0 0.0
    %4487 = vmatmul.mubr.f32.gmra.mrb[0].mxu0 %v4360
    %v4488 = vpop.f32.mrb[0].mxu0
    %v4489 = vadd.f32 %v4340, %v4488
    %v4490 = vpop.f32.mrb[0].mxu0
    %4491 = vmatprep.mubr.f32.mxu0 0.0
    %4492 = vmatmul.mubr.f32.gmra.mrb[0].mxu0 %v4363
    %v4493 = vpop.f32.mrb[0].mxu0
    %v4494 = vadd.f32 %v4340, %v4493
    %v4495 = vpop.f32.mrb[0].mxu0
    %4496 = vmatprep.mubr.f32.mxu0 0.0
    %4497 = vmatmul.mubr.f32.gmra.mrb[0].mxu0 %v4366
    %v4498 = vpop.f32.mrb[0].mxu0
    %v4499 = vadd.f32 %v4340, %v4498
    %v4500 = vpop.f32.mrb[0].mxu0
    %4501 = vmatprep.mubr.f32.mxu0 0.0
    %4502 = vmatmul.mubr.f32.gmra.mrb[0].mxu0 %v4369
    %v4503 = vpop.f32.mrb[0].mxu0
    %v4504 = vadd.f32 %v4340, %v4503
    %v4505 = vpop.f32.mrb[0].mxu0
    %4506 = vmatprep.mubr.f32.mxu0 0.0
    %4507 = vmatmul.mubr.f32.gmra.mrb[0].mxu0 %v4372
    %v4508 = vpop.f32.mrb[0].mxu0
    %v4509 = vadd.f32 %v4340, %v4508
    %v4510 = vpop.f32.mrb[0].mxu0
    %4511 = vmatprep.mubr.f32.mxu0 0.0
    %4512 = vmatmul.mubr.f32.gmra.mrb[0].mxu0 %v4375
    %v4513 = vpop.f32.mrb[0].mxu0
    %v4514 = vadd.f32 %v4340, %v4513
    %v4515 = vpop.f32.mrb[0].mxu0
    %4516 = vmatprep.mubr.f32.mxu0 0.0
    %4517 = vmatmul.mubr.f32.gmra.mrb[0].mxu0 %v4378
    %v4518 = vpop.f32.mrb[0].mxu0
    %v4519 = vadd.f32 %v4340, %v4518
    %v4520 = vpop.f32.mrb[0].mxu0
    %4521 = vmatprep.mubr.f32.mxu0 0.0
    %4522 = vmatmul.mubr.f32.gmra.mrb[0].mxu0 %v4381
    %v4523 = vpop.f32.mrb[0].mxu0
    %v4524 = vadd.f32 %v4340, %v4523
    %v4525 = vpop.f32.mrb[0].mxu0
    %4526 = vmatprep.mubr.f32.mxu0 0.0
    %4527 = vmatmul.mubr.f32.gmra.mrb[0].mxu0 %v4384
    %v4528 = vpop.f32.mrb[0].mxu0
    %v4529 = vadd.f32 %v4340, %v4528
    %v4530 = vpop.f32.mrb[0].mxu0
    %4531 = vmatprep.mubr.f32.mxu0 0.0
    %4532 = vmatmul.mubr.f32.gmra.mrb[0].mxu0 %v4387
    %v4533 = vpop.f32.mrb[0].mxu0
    %v4534 = vadd.f32 %v4340, %v4533
    %v4535 = vpop.f32.mrb[0].mxu0
    %4536 = vdwg.mxu0
    %v4537 = vmax.f32 %v4459, 0.0
    %v4538 = vmax.f32 %v4464, 0.0
    %v4539 = vmax.f32 %v4469, 0.0
    %v4540 = vmax.f32 %v4474, 0.0
    %v4541 = vmax.f32 %v4479, 0.0
    %v4542 = vmax.f32 %v4484, 0.0
    %v4543 = vmax.f32 %v4489, 0.0
    %v4544 = vmax.f32 %v4494, 0.0
    %v4545 = vmax.f32 %v4499, 0.0
    %v4546 = vmax.f32 %v4504, 0.0
    %v4547 = vmax.f32 %v4509, 0.0
    %v4548 = vmax.f32 %v4514, 0.0
    %v4549 = vmax.f32 %v4519, 0.0
    %v4550 = vmax.f32 %v4524, 0.0
    %v4551 = vmax.f32 %v4529, 0.0
    %v4552 = vmax.f32 %v4534, 0.0
    %v4553 = vrot.slane %v4537, 7
    %v4554 = vrot.slane %v4538, 7
    %v4555 = vrot.slane %v4539, 7
    %v4556 = vrot.slane %v4540, 7
    %v4557 = vrot.slane %v4541, 7
    %v4558 = vrot.slane %v4542, 7
    %v4559 = vrot.slane %v4543, 7
    %v4560 = vrot.slane %v4544, 7
    %v4561 = vrot.slane %v4545, 7
    %v4562 = vrot.slane %v4546, 7
    %v4563 = vrot.slane %v4547, 7
    %v4564 = vrot.slane %v4548, 7
    %v4565 = vrot.slane %v4549, 7
    %v4566 = vrot.slane %v4550, 7
    %v4567 = vrot.slane %v4551, 7
    %v4568 = vrot.slane %v4552, 7
    %v4569 = vsel %vm166, %v4567, %v4568
    %v4570 = vsel %vm166, %v4566, %v4567
    %v4571 = vsel %vm166, %v4565, %v4566
    %v4572 = vsel %vm166, %v4564, %v4565
    %v4573 = vsel %vm166, %v4563, %v4564
    %v4574 = vsel %vm166, %v4562, %v4563
    %v4575 = vsel %vm166, %v4561, %v4562
    %v4576 = vsel %vm166, %v4560, %v4561
    %v4577 = vsel %vm166, %v4559, %v4560
    %v4578 = vsel %vm166, %v4558, %v4559
    %v4579 = vsel %vm166, %v4557, %v4558
    %v4580 = vsel %vm166, %v4556, %v4557
    %v4581 = vsel %vm166, %v4555, %v4556
    %v4582 = vsel %vm166, %v4554, %v4555
    %v4583 = vsel %vm166, %v4553, %v4554
    %v4584 = vsel %vm166, %v4568, %v4553
    %v4585 = vmul.f32 %v4584, %v728
    %v4586 = vmul.f32 %v4583, %v732
    %v4587 = vmul.f32 %v4582, %v736
    %v4588 = vmul.f32 %v4581, %v740
    %v4589 = vmul.f32 %v4580, %v744
    %v4590 = vmul.f32 %v4579, %v748
    %v4591 = vmul.f32 %v4578, %v752
    %v4592 = vmul.f32 %v4577, %v756
    %v4593 = vmul.f32 %v4576, %v760
    %v4594 = vmul.f32 %v4575, %v764
    %v4595 = vmul.f32 %v4574, %v768
    %v4596 = vmul.f32 %v4573, %v772
    %v4597 = vmul.f32 %v4572, %v776
    %v4598 = vmul.f32 %v4571, %v780
    %v4599 = vmul.f32 %v4570, %v784
    %v4600 = vmul.f32 %v4569, %v788
    %v4601 = vrot.slane %v4537, 1
    %v4602 = vrot.slane %v4538, 1
    %v4603 = vrot.slane %v4539, 1
    %v4604 = vrot.slane %v4540, 1
    %v4605 = vrot.slane %v4541, 1
    %v4606 = vrot.slane %v4542, 1
    %v4607 = vrot.slane %v4543, 1
    %v4608 = vrot.slane %v4544, 1
    %v4609 = vrot.slane %v4545, 1
    %v4610 = vrot.slane %v4546, 1
    %v4611 = vrot.slane %v4547, 1
    %v4612 = vrot.slane %v4548, 1
    %v4613 = vrot.slane %v4549, 1
    %v4614 = vrot.slane %v4550, 1
    %v4615 = vrot.slane %v4551, 1
    %v4616 = vrot.slane %v4552, 1
    %v4617 = vsel %vm215, %v4615, %v4616
    %v4618 = vsel %vm215, %v4614, %v4615
    %v4619 = vsel %vm215, %v4613, %v4614
    %v4620 = vsel %vm215, %v4612, %v4613
    %v4621 = vsel %vm215, %v4611, %v4612
    %v4622 = vsel %vm215, %v4610, %v4611
    %v4623 = vsel %vm215, %v4609, %v4610
    %v4624 = vsel %vm215, %v4608, %v4609
    %v4625 = vsel %vm215, %v4607, %v4608
    %v4626 = vsel %vm215, %v4606, %v4607
    %v4627 = vsel %vm215, %v4605, %v4606
    %v4628 = vsel %vm215, %v4604, %v4605
    %v4629 = vsel %vm215, %v4603, %v4604
    %v4630 = vsel %vm215, %v4602, %v4603
    %v4631 = vsel %vm215, %v4601, %v4602
    %v4632 = vsel %vm215, %v4616, %v4601
    %v4633 = vmul.f32 %v4631, %v840
    %v4634 = vmul.f32 %v4630, %v844
    %v4635 = vmul.f32 %v4629, %v848
    %v4636 = vmul.f32 %v4628, %v852
    %v4637 = vmul.f32 %v4627, %v856
    %v4638 = vmul.f32 %v4626, %v860
    %v4639 = vmul.f32 %v4625, %v864
    %v4640 = vmul.f32 %v4624, %v868
    %v4641 = vmul.f32 %v4623, %v872
    %v4642 = vmul.f32 %v4622, %v876
    %v4643 = vmul.f32 %v4621, %v880
    %v4644 = vmul.f32 %v4620, %v884
    %v4645 = vmul.f32 %v4619, %v888
    %v4646 = vmul.f32 %v4618, %v892
    %v4647 = vmul.f32 %v4617, %v896
    %v4648 = vmul.f32 %v4632, %v900
    %4665 = vrot.lane.b32.xlu0 %v4537, 36
    %v4666 = vpop.permute.xlu0 %4665
    %4667 = vrot.lane.b32.xlu0 %v4538, 36
    %v4668 = vpop.permute.xlu0 %4667
    %4669 = vrot.lane.b32.xlu0 %v4539, 36
    %v4670 = vpop.permute.xlu0 %4669
    %4671 = vrot.lane.b32.xlu0 %v4540, 36
    %v4672 = vpop.permute.xlu0 %4671
    %4673 = vrot.lane.b32.xlu0 %v4541, 36
    %v4674 = vpop.permute.xlu0 %4673
    %4675 = vrot.lane.b32.xlu0 %v4542, 36
    %v4676 = vpop.permute.xlu0 %4675
    %4677 = vrot.lane.b32.xlu0 %v4543, 36
    %v4678 = vpop.permute.xlu0 %4677
    %4679 = vrot.lane.b32.xlu0 %v4544, 36
    %v4680 = vpop.permute.xlu0 %4679
    %4681 = vrot.lane.b32.xlu0 %v4545, 36
    %v4682 = vpop.permute.xlu0 %4681
    %4683 = vrot.lane.b32.xlu0 %v4546, 36
    %v4684 = vpop.permute.xlu0 %4683
    %4685 = vrot.lane.b32.xlu0 %v4547, 36
    %v4686 = vpop.permute.xlu0 %4685
    %4687 = vrot.lane.b32.xlu0 %v4548, 36
    %v4688 = vpop.permute.xlu0 %4687
    %4689 = vrot.lane.b32.xlu0 %v4549, 36
    %v4690 = vpop.permute.xlu0 %4689
    %4691 = vrot.lane.b32.xlu0 %v4550, 36
    %v4692 = vpop.permute.xlu0 %4691
    %4693 = vrot.lane.b32.xlu0 %v4551, 36
    %v4694 = vpop.permute.xlu0 %4693
    %4695 = vrot.lane.b32.xlu0 %v4552, 36
    %v4696 = vpop.permute.xlu0 %4695
    %4729 = vrot.lane.b32.xlu0 %v4633, 72
    %v4730 = vpop.permute.xlu0 %4729
    %4731 = vrot.lane.b32.xlu0 %v4634, 72
    %v4732 = vpop.permute.xlu0 %4731
    %4733 = vrot.lane.b32.xlu0 %v4635, 72
    %v4734 = vpop.permute.xlu0 %4733
    %4735 = vrot.lane.b32.xlu0 %v4636, 72
    %v4736 = vpop.permute.xlu0 %4735
    %4737 = vrot.lane.b32.xlu0 %v4637, 72
    %v4738 = vpop.permute.xlu0 %4737
    %4739 = vrot.lane.b32.xlu0 %v4638, 72
    %v4740 = vpop.permute.xlu0 %4739
    %4741 = vrot.lane.b32.xlu0 %v4639, 72
    %v4742 = vpop.permute.xlu0 %4741
    %4743 = vrot.lane.b32.xlu0 %v4640, 72
    %v4744 = vpop.permute.xlu0 %4743
    %4745 = vrot.lane.b32.xlu0 %v4641, 72
    %v4746 = vpop.permute.xlu0 %4745
    %4747 = vrot.lane.b32.xlu0 %v4642, 72
    %v4748 = vpop.permute.xlu0 %4747
    %4749 = vrot.lane.b32.xlu0 %v4643, 72
    %v4750 = vpop.permute.xlu0 %4749
    %4751 = vrot.lane.b32.xlu0 %v4644, 72
    %v4752 = vpop.permute.xlu0 %4751
    %4753 = vrot.lane.b32.xlu0 %v4645, 72
    %v4754 = vpop.permute.xlu0 %4753
    %4755 = vrot.lane.b32.xlu0 %v4646, 72
    %v4756 = vpop.permute.xlu0 %4755
    %4757 = vrot.lane.b32.xlu0 %v4647, 72
    %v4758 = vpop.permute.xlu0 %4757
    %4759 = vrot.lane.b32.xlu0 %v4648, 72
    %v4760 = vpop.permute.xlu0 %4759
    %v4777 = vsel %vm1046, %v4585, %v4666
    %v4778 = vsel %vm1046, %v4586, %v4668
    %v4779 = vsel %vm1046, %v4587, %v4670
    %v4780 = vsel %vm1046, %v4588, %v4672
    %v4781 = vsel %vm1046, %v4589, %v4674
    %v4782 = vsel %vm1046, %v4590, %v4676
    %v4783 = vsel %vm1046, %v4591, %v4678
    %v4784 = vsel %vm1046, %v4592, %v4680
    %v4785 = vsel %vm1046, %v4593, %v4682
    %v4786 = vsel %vm1046, %v4594, %v4684
    %v4787 = vsel %vm1046, %v4595, %v4686
    %v4788 = vsel %vm1046, %v4596, %v4688
    %v4789 = vsel %vm1046, %v4597, %v4690
    %v4790 = vsel %vm1046, %v4598, %v4692
    %v4791 = vsel %vm1046, %v4599, %v4694
    %v4792 = vsel %vm1046, %v4600, %v4696
    %v4793 = vsel %vm1063, %v4777, %v4730
    %v4794 = vsel %vm1063, %v4778, %v4732
    %v4795 = vsel %vm1063, %v4779, %v4734
    %v4796 = vsel %vm1063, %v4780, %v4736
    %v4797 = vsel %vm1063, %v4781, %v4738
    %v4798 = vsel %vm1063, %v4782, %v4740
    %v4799 = vsel %vm1063, %v4783, %v4742
    %v4800 = vsel %vm1063, %v4784, %v4744
    %v4801 = vsel %vm1063, %v4785, %v4746
    %v4802 = vsel %vm1063, %v4786, %v4748
    %v4803 = vsel %vm1063, %v4787, %v4750
    %v4804 = vsel %vm1063, %v4788, %v4752
    %v4805 = vsel %vm1063, %v4789, %v4754
    %v4806 = vsel %vm1063, %v4790, %v4756
    %v4807 = vsel %vm1063, %v4791, %v4758
    %v4808 = vsel %vm1063, %v4792, %v4760
    %v4809 = vld [vmem:[%s16] sm:$0xff]
    %v4810 = vld [vmem:[%s16 + $0x8] sm:$0xff]
    %v4811 = vld [vmem:[%s16 + $0x10] sm:$0xff]
    %v4812 = vld [vmem:[%s16 + $0x18] sm:$0xff]
    %v4813 = vld [vmem:[%s16 + $0x20] sm:$0xff]
    %v4814 = vld [vmem:[%s16 + $0x28] sm:$0xff]
    %v4815 = vld [vmem:[%s16 + $0x30] sm:$0xff]
    %v4816 = vld [vmem:[%s16 + $0x38] sm:$0xff]
    %v4817 = vld [vmem:[%s16 + $0x40] sm:$0xff]
    %v4818 = vld [vmem:[%s16 + $0x48] sm:$0xff]
    %v4819 = vld [vmem:[%s16 + $0x50] sm:$0xff]
    %v4820 = vld [vmem:[%s16 + $0x58] sm:$0xff]
    %v4821 = vld [vmem:[%s16 + $0x60] sm:$0xff]
    %v4822 = vld [vmem:[%s16 + $0x68] sm:$0xf]
    %v4823 = vld [vmem:[%s16 + $0x6c] sm:$0x1]
    %v4824 = vlaneseq
    %v4825 = vshrl.u32 %v4824, 7
    %v4826 = vsub.s32 0, %v4825
    %v4827 = vrot.slane %v4823, %v4826
    %v4829 = vsel %vm1099, %v4793, 0
    %v4832 = vsel %vm1099, %v4794, 0
    %v4835 = vsel %vm1099, %v4795, 0
    %v4838 = vsel %vm1099, %v4796, 0
    %v4841 = vsel %vm1099, %v4797, 0
    %v4844 = vsel %vm1099, %v4798, 0
    %v4847 = vsel %vm1099, %v4799, 0
    %v4850 = vsel %vm1099, %v4800, 0
    %v4853 = vsel %vm1099, %v4801, 0
    %v4856 = vsel %vm1099, %v4802, 0
    %v4859 = vsel %vm1099, %v4803, 0
    %v4862 = vsel %vm1099, %v4804, 0
    %v4865 = vsel %vm1099, %v4805, 0
    %v4868 = vsel %vm1099, %v4806, 0
    %v4871 = vsel %vm1099, %v4807, 0
    %v4874 = vsel %vm1099, %v4808, 0
    %v4877 = vsel %vm1148, %v4822, 0
    %4879 = vmatprep.subr.mxu0 0.0
    %4880 = vmatpush1.msra.mxu0 %v4809
    %4881 = vmatprep.subr.mxu0 0.0
    %4882 = vmatpush1.msra.mxu0 %v4810
    %4883 = vmatprep.subr.mxu0 0.0
    %4884 = vmatpush1.msra.mxu0 %v4811
    %4885 = vmatprep.subr.mxu0 0.0
    %4886 = vmatpush1.msra.mxu0 %v4812
    %4887 = vmatprep.subr.mxu0 0.0
    %4888 = vmatpush1.msra.mxu0 %v4813
    %4889 = vmatprep.subr.mxu0 0.0
    %4890 = vmatpush1.msra.mxu0 %v4814
    %4891 = vmatprep.subr.mxu0 0.0
    %4892 = vmatpush1.msra.mxu0 %v4815
    %4893 = vmatprep.subr.mxu0 0.0
    %4894 = vmatpush1.msra.mxu0 %v4816
    %4895 = vmatprep.subr.mxu0 0.0
    %4896 = vmatpush1.msra.mxu0 %v4817
    %4897 = vmatprep.subr.mxu0 0.0
    %4898 = vmatpush1.msra.mxu0 %v4818
    %4899 = vmatprep.subr.mxu0 0.0
    %4900 = vmatpush1.msra.mxu0 %v4819
    %4901 = vmatprep.subr.mxu0 0.0
    %4902 = vmatpush1.msra.mxu0 %v4820
    %4903 = vmatprep.subr.mxu0 0.0
    %4904 = vmatpush1.msra.mxu0 %v4821
    %4905 = vmatprep.subr.mxu0 0.0
    %4906 = vmatpush1.msra.mxu0 %v4877
    %4907 = vmatprep.subr.mxu0 0.0
    %4908 = vmatpush1.msra.mxu0 0.0
    %4909 = vmatprep.subr.mxu0 0.0
    %4910 = vmatpush1.msra.mxu0 0.0
    %4911 = vmatprep.subr.mxu0 0.0
    %4912 = vmatpush1.msra.mxu0 0.0
    %4913 = vmatprep.subr.mxu0 0.0
    %4914 = vmatpush1.msra.mxu0 0.0
    %4915 = vmatprep.subr.mxu0 0.0
    %4916 = vmatpush1.msra.mxu0 0.0
    %4917 = vmatprep.subr.mxu0 0.0
    %4918 = vmatpush1.msra.mxu0 0.0
    %4919 = vmatprep.subr.mxu0 0.0
    %4920 = vmatpush1.msra.mxu0 0.0
    %4921 = vmatprep.subr.mxu0 0.0
    %4922 = vmatpush1.msra.mxu0 0.0
    %4923 = vmatprep.subr.mxu0 0.0
    %4924 = vmatpush1.msra.mxu0 0.0
    %4925 = vmatprep.subr.mxu0 0.0
    %4926 = vmatpush1.msra.mxu0 0.0
    %4927 = vmatprep.subr.mxu0 0.0
    %4928 = vmatpush1.msra.mxu0 0.0
    %4929 = vmatprep.subr.mxu0 0.0
    %4930 = vmatpush1.msra.mxu0 0.0
    %4931 = vmatprep.subr.mxu0 0.0
    %4932 = vmatpush1.msra.mxu0 0.0
    %4933 = vmatprep.subr.mxu0 0.0
    %4934 = vmatpush1.msra.mxu0 0.0
    %4935 = vmatprep.subr.mxu0 0.0
    %4936 = vmatpush1.msra.mxu0 0.0
    %4937 = vmatprep.subr.mxu0 0.0
    %4938 = vmatpush1.msra.mxu0 0.0
    %4939 = vmatprep.subr.mxu0 0.0
    %4940 = vmatpush1.msra.mxu0 0.0
    %4941 = vmatprep.subr.mxu0 0.0
    %4942 = vmatpush1.msra.mxu0 0.0
    %4943 = vmatprep.mubr.f32.mxu0 0.0
    %4944 = vmatmul.mubr.f32.gmra.mrb[0].mxu0 %v4829
    %v4945 = vpop.f32.mrb[0].mxu0
    %v4946 = vadd.f32 %v4827, %v4945
    %v4947 = vpop.f32.mrb[0].mxu0
    %4948 = vmatprep.mubr.f32.mxu0 0.0
    %4949 = vmatmul.mubr.f32.gmra.mrb[0].mxu0 %v4832
    %v4950 = vpop.f32.mrb[0].mxu0
    %v4951 = vadd.f32 %v4827, %v4950
    %v4952 = vpop.f32.mrb[0].mxu0
    %4953 = vmatprep.mubr.f32.mxu0 0.0
    %4954 = vmatmul.mubr.f32.gmra.mrb[0].mxu0 %v4835
    %v4955 = vpop.f32.mrb[0].mxu0
    %v4956 = vadd.f32 %v4827, %v4955
    %v4957 = vpop.f32.mrb[0].mxu0
    %4958 = vmatprep.mubr.f32.mxu0 0.0
    %4959 = vmatmul.mubr.f32.gmra.mrb[0].mxu0 %v4838
    %v4960 = vpop.f32.mrb[0].mxu0
    %v4961 = vadd.f32 %v4827, %v4960
    %v4962 = vpop.f32.mrb[0].mxu0
    %4963 = vmatprep.mubr.f32.mxu0 0.0
    %4964 = vmatmul.mubr.f32.gmra.mrb[0].mxu0 %v4841
    %v4965 = vpop.f32.mrb[0].mxu0
    %v4966 = vadd.f32 %v4827, %v4965
    %v4967 = vpop.f32.mrb[0].mxu0
    %4968 = vmatprep.mubr.f32.mxu0 0.0
    %4969 = vmatmul.mubr.f32.gmra.mrb[0].mxu0 %v4844
    %v4970 = vpop.f32.mrb[0].mxu0
    %v4971 = vadd.f32 %v4827, %v4970
    %v4972 = vpop.f32.mrb[0].mxu0
    %4973 = vmatprep.mubr.f32.mxu0 0.0
    %4974 = vmatmul.mubr.f32.gmra.mrb[0].mxu0 %v4847
    %v4975 = vpop.f32.mrb[0].mxu0
    %v4976 = vadd.f32 %v4827, %v4975
    %v4977 = vpop.f32.mrb[0].mxu0
    %4978 = vmatprep.mubr.f32.mxu0 0.0
    %4979 = vmatmul.mubr.f32.gmra.mrb[0].mxu0 %v4850
    %v4980 = vpop.f32.mrb[0].mxu0
    %v4981 = vadd.f32 %v4827, %v4980
    %v4982 = vpop.f32.mrb[0].mxu0
    %4983 = vmatprep.mubr.f32.mxu0 0.0
    %4984 = vmatmul.mubr.f32.gmra.mrb[0].mxu0 %v4853
    %v4985 = vpop.f32.mrb[0].mxu0
    %v4986 = vadd.f32 %v4827, %v4985
    %v4987 = vpop.f32.mrb[0].mxu0
    %4988 = vmatprep.mubr.f32.mxu0 0.0
    %4989 = vmatmul.mubr.f32.gmra.mrb[0].mxu0 %v4856
    %v4990 = vpop.f32.mrb[0].mxu0
    %v4991 = vadd.f32 %v4827, %v4990
    %v4992 = vpop.f32.mrb[0].mxu0
    %4993 = vmatprep.mubr.f32.mxu0 0.0
    %4994 = vmatmul.mubr.f32.gmra.mrb[0].mxu0 %v4859
    %v4995 = vpop.f32.mrb[0].mxu0
    %v4996 = vadd.f32 %v4827, %v4995
    %v4997 = vpop.f32.mrb[0].mxu0
    %4998 = vmatprep.mubr.f32.mxu0 0.0
    %4999 = vmatmul.mubr.f32.gmra.mrb[0].mxu0 %v4862
    %v5000 = vpop.f32.mrb[0].mxu0
    %v5001 = vadd.f32 %v4827, %v5000
    %v5002 = vpop.f32.mrb[0].mxu0
    %5003 = vmatprep.mubr.f32.mxu0 0.0
    %5004 = vmatmul.mubr.f32.gmra.mrb[0].mxu0 %v4865
    %v5005 = vpop.f32.mrb[0].mxu0
    %v5006 = vadd.f32 %v4827, %v5005
    %v5007 = vpop.f32.mrb[0].mxu0
    %5008 = vmatprep.mubr.f32.mxu0 0.0
    %5009 = vmatmul.mubr.f32.gmra.mrb[0].mxu0 %v4868
    %v5010 = vpop.f32.mrb[0].mxu0
    %v5011 = vadd.f32 %v4827, %v5010
    %v5012 = vpop.f32.mrb[0].mxu0
    %5013 = vmatprep.mubr.f32.mxu0 0.0
    %5014 = vmatmul.mubr.f32.gmra.mrb[0].mxu0 %v4871
    %v5015 = vpop.f32.mrb[0].mxu0
    %v5016 = vadd.f32 %v4827, %v5015
    %v5017 = vpop.f32.mrb[0].mxu0
    %5018 = vmatprep.mubr.f32.mxu0 0.0
    %5019 = vmatmul.mubr.f32.gmra.mrb[0].mxu0 %v4874
    %v5020 = vpop.f32.mrb[0].mxu0
    %v5021 = vadd.f32 %v4827, %v5020
    %v5022 = vpop.f32.mrb[0].mxu0
    %5023 = vdwg.mxu0
    %v5024 = vmax.f32 %v4946, 0.0
    %v5025 = vmax.f32 %v4951, 0.0
    %v5026 = vmax.f32 %v4956, 0.0
    %v5027 = vmax.f32 %v4961, 0.0
    %v5028 = vmax.f32 %v4966, 0.0
    %v5029 = vmax.f32 %v4971, 0.0
    %v5030 = vmax.f32 %v4976, 0.0
    %v5031 = vmax.f32 %v4981, 0.0
    %v5032 = vmax.f32 %v4986, 0.0
    %v5033 = vmax.f32 %v4991, 0.0
    %v5034 = vmax.f32 %v4996, 0.0
    %v5035 = vmax.f32 %v5001, 0.0
    %v5036 = vmax.f32 %v5006, 0.0
    %v5037 = vmax.f32 %v5011, 0.0
    %v5038 = vmax.f32 %v5016, 0.0
    %v5039 = vmax.f32 %v5021, 0.0
    %v5040 = vrot.slane %v5024, 7
    %v5041 = vrot.slane %v5025, 7
    %v5042 = vrot.slane %v5026, 7
    %v5043 = vrot.slane %v5027, 7
    %v5044 = vrot.slane %v5028, 7
    %v5045 = vrot.slane %v5029, 7
    %v5046 = vrot.slane %v5030, 7
    %v5047 = vrot.slane %v5031, 7
    %v5048 = vrot.slane %v5032, 7
    %v5049 = vrot.slane %v5033, 7
    %v5050 = vrot.slane %v5034, 7
    %v5051 = vrot.slane %v5035, 7
    %v5052 = vrot.slane %v5036, 7
    %v5053 = vrot.slane %v5037, 7
    %v5054 = vrot.slane %v5038, 7
    %v5055 = vrot.slane %v5039, 7
    %v5056 = vsel %vm166, %v5054, %v5055
    %v5057 = vsel %vm166, %v5053, %v5054
    %v5058 = vsel %vm166, %v5052, %v5053
    %v5059 = vsel %vm166, %v5051, %v5052
    %v5060 = vsel %vm166, %v5050, %v5051
    %v5061 = vsel %vm166, %v5049, %v5050
    %v5062 = vsel %vm166, %v5048, %v5049
    %v5063 = vsel %vm166, %v5047, %v5048
    %v5064 = vsel %vm166, %v5046, %v5047
    %v5065 = vsel %vm166, %v5045, %v5046
    %v5066 = vsel %vm166, %v5044, %v5045
    %v5067 = vsel %vm166, %v5043, %v5044
    %v5068 = vsel %vm166, %v5042, %v5043
    %v5069 = vsel %vm166, %v5041, %v5042
    %v5070 = vsel %vm166, %v5040, %v5041
    %v5071 = vsel %vm166, %v5055, %v5040
    %v5072 = vmul.f32 %v5071, %v728
    %v5073 = vmul.f32 %v5070, %v732
    %v5074 = vmul.f32 %v5069, %v736
    %v5075 = vmul.f32 %v5068, %v740
    %v5076 = vmul.f32 %v5067, %v744
    %v5077 = vmul.f32 %v5066, %v748
    %v5078 = vmul.f32 %v5065, %v752
    %v5079 = vmul.f32 %v5064, %v756
    %v5080 = vmul.f32 %v5063, %v760
    %v5081 = vmul.f32 %v5062, %v764
    %v5082 = vmul.f32 %v5061, %v768
    %v5083 = vmul.f32 %v5060, %v772
    %v5084 = vmul.f32 %v5059, %v776
    %v5085 = vmul.f32 %v5058, %v780
    %v5086 = vmul.f32 %v5057, %v784
    %v5087 = vmul.f32 %v5056, %v788
    %v5088 = vrot.slane %v5024, 1
    %v5089 = vrot.slane %v5025, 1
    %v5090 = vrot.slane %v5026, 1
    %v5091 = vrot.slane %v5027, 1
    %v5092 = vrot.slane %v5028, 1
    %v5093 = vrot.slane %v5029, 1
    %v5094 = vrot.slane %v5030, 1
    %v5095 = vrot.slane %v5031, 1
    %v5096 = vrot.slane %v5032, 1
    %v5097 = vrot.slane %v5033, 1
    %v5098 = vrot.slane %v5034, 1
    %v5099 = vrot.slane %v5035, 1
    %v5100 = vrot.slane %v5036, 1
    %v5101 = vrot.slane %v5037, 1
    %v5102 = vrot.slane %v5038, 1
    %v5103 = vrot.slane %v5039, 1
    %v5104 = vsel %vm215, %v5102, %v5103
    %v5105 = vsel %vm215, %v5101, %v5102
    %v5106 = vsel %vm215, %v5100, %v5101
    %v5107 = vsel %vm215, %v5099, %v5100
    %v5108 = vsel %vm215, %v5098, %v5099
    %v5109 = vsel %vm215, %v5097, %v5098
    %v5110 = vsel %vm215, %v5096, %v5097
    %v5111 = vsel %vm215, %v5095, %v5096
    %v5112 = vsel %vm215, %v5094, %v5095
    %v5113 = vsel %vm215, %v5093, %v5094
    %v5114 = vsel %vm215, %v5092, %v5093
    %v5115 = vsel %vm215, %v5091, %v5092
    %v5116 = vsel %vm215, %v5090, %v5091
    %v5117 = vsel %vm215, %v5089, %v5090
    %v5118 = vsel %vm215, %v5088, %v5089
    %v5119 = vsel %vm215, %v5103, %v5088
    %v5120 = vmul.f32 %v5118, %v840
    %v5121 = vmul.f32 %v5117, %v844
    %v5122 = vmul.f32 %v5116, %v848
    %v5123 = vmul.f32 %v5115, %v852
    %v5124 = vmul.f32 %v5114, %v856
    %v5125 = vmul.f32 %v5113, %v860
    %v5126 = vmul.f32 %v5112, %v864
    %v5127 = vmul.f32 %v5111, %v868
    %v5128 = vmul.f32 %v5110, %v872
    %v5129 = vmul.f32 %v5109, %v876
    %v5130 = vmul.f32 %v5108, %v880
    %v5131 = vmul.f32 %v5107, %v884
    %v5132 = vmul.f32 %v5106, %v888
    %v5133 = vmul.f32 %v5105, %v892
    %v5134 = vmul.f32 %v5104, %v896
    %v5135 = vmul.f32 %v5119, %v900
    %5152 = vrot.lane.b32.xlu0 %v5024, 36
    %v5153 = vpop.permute.xlu0 %5152
    %5154 = vrot.lane.b32.xlu0 %v5025, 36
    %v5155 = vpop.permute.xlu0 %5154
    %5156 = vrot.lane.b32.xlu0 %v5026, 36
    %v5157 = vpop.permute.xlu0 %5156
    %5158 = vrot.lane.b32.xlu0 %v5027, 36
    %v5159 = vpop.permute.xlu0 %5158
    %5160 = vrot.lane.b32.xlu0 %v5028, 36
    %v5161 = vpop.permute.xlu0 %5160
    %5162 = vrot.lane.b32.xlu0 %v5029, 36
    %v5163 = vpop.permute.xlu0 %5162
    %5164 = vrot.lane.b32.xlu0 %v5030, 36
    %v5165 = vpop.permute.xlu0 %5164
    %5166 = vrot.lane.b32.xlu0 %v5031, 36
    %v5167 = vpop.permute.xlu0 %5166
    %5168 = vrot.lane.b32.xlu0 %v5032, 36
    %v5169 = vpop.permute.xlu0 %5168
    %5170 = vrot.lane.b32.xlu0 %v5033, 36
    %v5171 = vpop.permute.xlu0 %5170
    %5172 = vrot.lane.b32.xlu0 %v5034, 36
    %v5173 = vpop.permute.xlu0 %5172
    %5174 = vrot.lane.b32.xlu0 %v5035, 36
    %v5175 = vpop.permute.xlu0 %5174
    %5176 = vrot.lane.b32.xlu0 %v5036, 36
    %v5177 = vpop.permute.xlu0 %5176
    %5178 = vrot.lane.b32.xlu0 %v5037, 36
    %v5179 = vpop.permute.xlu0 %5178
    %5180 = vrot.lane.b32.xlu0 %v5038, 36
    %v5181 = vpop.permute.xlu0 %5180
    %5182 = vrot.lane.b32.xlu0 %v5039, 36
    %v5183 = vpop.permute.xlu0 %5182
    %5216 = vrot.lane.b32.xlu0 %v5120, 72
    %v5217 = vpop.permute.xlu0 %5216
    %5218 = vrot.lane.b32.xlu0 %v5121, 72
    %v5219 = vpop.permute.xlu0 %5218
    %5220 = vrot.lane.b32.xlu0 %v5122, 72
    %v5221 = vpop.permute.xlu0 %5220
    %5222 = vrot.lane.b32.xlu0 %v5123, 72
    %v5223 = vpop.permute.xlu0 %5222
    %5224 = vrot.lane.b32.xlu0 %v5124, 72
    %v5225 = vpop.permute.xlu0 %5224
    %5226 = vrot.lane.b32.xlu0 %v5125, 72
    %v5227 = vpop.permute.xlu0 %5226
    %5228 = vrot.lane.b32.xlu0 %v5126, 72
    %v5229 = vpop.permute.xlu0 %5228
    %5230 = vrot.lane.b32.xlu0 %v5127, 72
    %v5231 = vpop.permute.xlu0 %5230
    %5232 = vrot.lane.b32.xlu0 %v5128, 72
    %v5233 = vpop.permute.xlu0 %5232
    %5234 = vrot.lane.b32.xlu0 %v5129, 72
    %v5235 = vpop.permute.xlu0 %5234
    %5236 = vrot.lane.b32.xlu0 %v5130, 72
    %v5237 = vpop.permute.xlu0 %5236
    %5238 = vrot.lane.b32.xlu0 %v5131, 72
    %v5239 = vpop.permute.xlu0 %5238
    %5240 = vrot.lane.b32.xlu0 %v5132, 72
    %v5241 = vpop.permute.xlu0 %5240
    %5242 = vrot.lane.b32.xlu0 %v5133, 72
    %v5243 = vpop.permute.xlu0 %5242
    %5244 = vrot.lane.b32.xlu0 %v5134, 72
    %v5245 = vpop.permute.xlu0 %5244
    %5246 = vrot.lane.b32.xlu0 %v5135, 72
    %v5247 = vpop.permute.xlu0 %5246
    %v5264 = vsel %vm1046, %v5072, %v5153
    %v5265 = vsel %vm1046, %v5073, %v5155
    %v5266 = vsel %vm1046, %v5074, %v5157
    %v5267 = vsel %vm1046, %v5075, %v5159
    %v5268 = vsel %vm1046, %v5076, %v5161
    %v5269 = vsel %vm1046, %v5077, %v5163
    %v5270 = vsel %vm1046, %v5078, %v5165
    %v5271 = vsel %vm1046, %v5079, %v5167
    %v5272 = vsel %vm1046, %v5080, %v5169
    %v5273 = vsel %vm1046, %v5081, %v5171
    %v5274 = vsel %vm1046, %v5082, %v5173
    %v5275 = vsel %vm1046, %v5083, %v5175
    %v5276 = vsel %vm1046, %v5084, %v5177
    %v5277 = vsel %vm1046, %v5085, %v5179
    %v5278 = vsel %vm1046, %v5086, %v5181
    %v5279 = vsel %vm1046, %v5087, %v5183
    %v5280 = vsel %vm1063, %v5264, %v5217
    %v5281 = vsel %vm1063, %v5265, %v5219
    %v5282 = vsel %vm1063, %v5266, %v5221
    %v5283 = vsel %vm1063, %v5267, %v5223
    %v5284 = vsel %vm1063, %v5268, %v5225
    %v5285 = vsel %vm1063, %v5269, %v5227
    %v5286 = vsel %vm1063, %v5270, %v5229
    %v5287 = vsel %vm1063, %v5271, %v5231
    %v5288 = vsel %vm1063, %v5272, %v5233
    %v5289 = vsel %vm1063, %v5273, %v5235
    %v5290 = vsel %vm1063, %v5274, %v5237
    %v5291 = vsel %vm1063, %v5275, %v5239
    %v5292 = vsel %vm1063, %v5276, %v5241
    %v5293 = vsel %vm1063, %v5277, %v5243
    %v5294 = vsel %vm1063, %v5278, %v5245
    %v5295 = vsel %vm1063, %v5279, %v5247
    %v5296 = vld [vmem:[%s17] sm:$0xff]
    %v5297 = vld [vmem:[%s17 + $0x8] sm:$0xff]
    %v5298 = vld [vmem:[%s17 + $0x10] sm:$0xff]
    %v5299 = vld [vmem:[%s17 + $0x18] sm:$0xff]
    %v5300 = vld [vmem:[%s17 + $0x20] sm:$0xff]
    %v5301 = vld [vmem:[%s17 + $0x28] sm:$0xff]
    %v5302 = vld [vmem:[%s17 + $0x30] sm:$0xff]
    %v5303 = vld [vmem:[%s17 + $0x38] sm:$0xff]
    %v5304 = vld [vmem:[%s17 + $0x40] sm:$0xff]
    %v5305 = vld [vmem:[%s17 + $0x48] sm:$0xff]
    %v5306 = vld [vmem:[%s17 + $0x50] sm:$0xff]
    %v5307 = vld [vmem:[%s17 + $0x58] sm:$0xff]
    %v5308 = vld [vmem:[%s17 + $0x60] sm:$0xff]
    %v5309 = vld [vmem:[%s17 + $0x68] sm:$0xf]
    %v5310 = vld [vmem:[%s17 + $0x6c] sm:$0x1]
    %v5311 = vlaneseq
    %v5312 = vshrl.u32 %v5311, 7
    %v5313 = vsub.s32 0, %v5312
    %v5314 = vrot.slane %v5310, %v5313
    %v5316 = vsel %vm1099, %v5280, 0
    %v5319 = vsel %vm1099, %v5281, 0
    %v5322 = vsel %vm1099, %v5282, 0
    %v5325 = vsel %vm1099, %v5283, 0
    %v5328 = vsel %vm1099, %v5284, 0
    %v5331 = vsel %vm1099, %v5285, 0
    %v5334 = vsel %vm1099, %v5286, 0
    %v5337 = vsel %vm1099, %v5287, 0
    %v5340 = vsel %vm1099, %v5288, 0
    %v5343 = vsel %vm1099, %v5289, 0
    %v5346 = vsel %vm1099, %v5290, 0
    %v5349 = vsel %vm1099, %v5291, 0
    %v5352 = vsel %vm1099, %v5292, 0
    %v5355 = vsel %vm1099, %v5293, 0
    %v5358 = vsel %vm1099, %v5294, 0
    %v5361 = vsel %vm1099, %v5295, 0
    %v5364 = vsel %vm1148, %v5309, 0
    %5366 = vmatprep.subr.mxu0 0.0
    %5367 = vmatpush1.msra.mxu0 %v5296
    %5368 = vmatprep.subr.mxu0 0.0
    %5369 = vmatpush1.msra.mxu0 %v5297
    %5370 = vmatprep.subr.mxu0 0.0
    %5371 = vmatpush1.msra.mxu0 %v5298
    %5372 = vmatprep.subr.mxu0 0.0
    %5373 = vmatpush1.msra.mxu0 %v5299
    %5374 = vmatprep.subr.mxu0 0.0
    %5375 = vmatpush1.msra.mxu0 %v5300
    %5376 = vmatprep.subr.mxu0 0.0
    %5377 = vmatpush1.msra.mxu0 %v5301
    %5378 = vmatprep.subr.mxu0 0.0
    %5379 = vmatpush1.msra.mxu0 %v5302
    %5380 = vmatprep.subr.mxu0 0.0
    %5381 = vmatpush1.msra.mxu0 %v5303
    %5382 = vmatprep.subr.mxu0 0.0
    %5383 = vmatpush1.msra.mxu0 %v5304
    %5384 = vmatprep.subr.mxu0 0.0
    %5385 = vmatpush1.msra.mxu0 %v5305
    %5386 = vmatprep.subr.mxu0 0.0
    %5387 = vmatpush1.msra.mxu0 %v5306
    %5388 = vmatprep.subr.mxu0 0.0
    %5389 = vmatpush1.msra.mxu0 %v5307
    %5390 = vmatprep.subr.mxu0 0.0
    %5391 = vmatpush1.msra.mxu0 %v5308
    %5392 = vmatprep.subr.mxu0 0.0
    %5393 = vmatpush1.msra.mxu0 %v5364
    %5394 = vmatprep.subr.mxu0 0.0
    %5395 = vmatpush1.msra.mxu0 0.0
    %5396 = vmatprep.subr.mxu0 0.0
    %5397 = vmatpush1.msra.mxu0 0.0
    %5398 = vmatprep.subr.mxu0 0.0
    %5399 = vmatpush1.msra.mxu0 0.0
    %5400 = vmatprep.subr.mxu0 0.0
    %5401 = vmatpush1.msra.mxu0 0.0
    %5402 = vmatprep.subr.mxu0 0.0
    %5403 = vmatpush1.msra.mxu0 0.0
    %5404 = vmatprep.subr.mxu0 0.0
    %5405 = vmatpush1.msra.mxu0 0.0
    %5406 = vmatprep.subr.mxu0 0.0
    %5407 = vmatpush1.msra.mxu0 0.0
    %5408 = vmatprep.subr.mxu0 0.0
    %5409 = vmatpush1.msra.mxu0 0.0
    %5410 = vmatprep.subr.mxu0 0.0
    %5411 = vmatpush1.msra.mxu0 0.0
    %5412 = vmatprep.subr.mxu0 0.0
    %5413 = vmatpush1.msra.mxu0 0.0
    %5414 = vmatprep.subr.mxu0 0.0
    %5415 = vmatpush1.msra.mxu0 0.0
    %5416 = vmatprep.subr.mxu0 0.0
    %5417 = vmatpush1.msra.mxu0 0.0
    %5418 = vmatprep.subr.mxu0 0.0
    %5419 = vmatpush1.msra.mxu0 0.0
    %5420 = vmatprep.subr.mxu0 0.0
    %5421 = vmatpush1.msra.mxu0 0.0
    %5422 = vmatprep.subr.mxu0 0.0
    %5423 = vmatpush1.msra.mxu0 0.0
    %5424 = vmatprep.subr.mxu0 0.0
    %5425 = vmatpush1.msra.mxu0 0.0
    %5426 = vmatprep.subr.mxu0 0.0
    %5427 = vmatpush1.msra.mxu0 0.0
    %5428 = vmatprep.subr.mxu0 0.0
    %5429 = vmatpush1.msra.mxu0 0.0
    %5430 = vmatprep.mubr.f32.mxu0 0.0
    %5431 = vmatmul.mubr.f32.gmra.mrb[0].mxu0 %v5316
    %v5432 = vpop.f32.mrb[0].mxu0
    %v5433 = vadd.f32 %v5314, %v5432
    %v5434 = vpop.f32.mrb[0].mxu0
    %5435 = vmatprep.mubr.f32.mxu0 0.0
    %5436 = vmatmul.mubr.f32.gmra.mrb[0].mxu0 %v5319
    %v5437 = vpop.f32.mrb[0].mxu0
    %v5438 = vadd.f32 %v5314, %v5437
    %v5439 = vpop.f32.mrb[0].mxu0
    %5440 = vmatprep.mubr.f32.mxu0 0.0
    %5441 = vmatmul.mubr.f32.gmra.mrb[0].mxu0 %v5322
    %v5442 = vpop.f32.mrb[0].mxu0
    %v5443 = vadd.f32 %v5314, %v5442
    %v5444 = vpop.f32.mrb[0].mxu0
    %5445 = vmatprep.mubr.f32.mxu0 0.0
    %5446 = vmatmul.mubr.f32.gmra.mrb[0].mxu0 %v5325
    %v5447 = vpop.f32.mrb[0].mxu0
    %v5448 = vadd.f32 %v5314, %v5447
    %v5449 = vpop.f32.mrb[0].mxu0
    %5450 = vmatprep.mubr.f32.mxu0 0.0
    %5451 = vmatmul.mubr.f32.gmra.mrb[0].mxu0 %v5328
    %v5452 = vpop.f32.mrb[0].mxu0
    %v5453 = vadd.f32 %v5314, %v5452
    %v5454 = vpop.f32.mrb[0].mxu0
    %5455 = vmatprep.mubr.f32.mxu0 0.0
    %5456 = vmatmul.mubr.f32.gmra.mrb[0].mxu0 %v5331
    %v5457 = vpop.f32.mrb[0].mxu0
    %v5458 = vadd.f32 %v5314, %v5457
    %v5459 = vpop.f32.mrb[0].mxu0
    %5460 = vmatprep.mubr.f32.mxu0 0.0
    %5461 = vmatmul.mubr.f32.gmra.mrb[0].mxu0 %v5334
    %v5462 = vpop.f32.mrb[0].mxu0
    %v5463 = vadd.f32 %v5314, %v5462
    %v5464 = vpop.f32.mrb[0].mxu0
    %5465 = vmatprep.mubr.f32.mxu0 0.0
    %5466 = vmatmul.mubr.f32.gmra.mrb[0].mxu0 %v5337
    %v5467 = vpop.f32.mrb[0].mxu0
    %v5468 = vadd.f32 %v5314, %v5467
    %v5469 = vpop.f32.mrb[0].mxu0
    %5470 = vmatprep.mubr.f32.mxu0 0.0
    %5471 = vmatmul.mubr.f32.gmra.mrb[0].mxu0 %v5340
    %v5472 = vpop.f32.mrb[0].mxu0
    %v5473 = vadd.f32 %v5314, %v5472
    %v5474 = vpop.f32.mrb[0].mxu0
    %5475 = vmatprep.mubr.f32.mxu0 0.0
    %5476 = vmatmul.mubr.f32.gmra.mrb[0].mxu0 %v5343
    %v5477 = vpop.f32.mrb[0].mxu0
    %v5478 = vadd.f32 %v5314, %v5477
    %v5479 = vpop.f32.mrb[0].mxu0
    %5480 = vmatprep.mubr.f32.mxu0 0.0
    %5481 = vmatmul.mubr.f32.gmra.mrb[0].mxu0 %v5346
    %v5482 = vpop.f32.mrb[0].mxu0
    %v5483 = vadd.f32 %v5314, %v5482
    %v5484 = vpop.f32.mrb[0].mxu0
    %5485 = vmatprep.mubr.f32.mxu0 0.0
    %5486 = vmatmul.mubr.f32.gmra.mrb[0].mxu0 %v5349
    %v5487 = vpop.f32.mrb[0].mxu0
    %v5488 = vadd.f32 %v5314, %v5487
    %v5489 = vpop.f32.mrb[0].mxu0
    %5490 = vmatprep.mubr.f32.mxu0 0.0
    %5491 = vmatmul.mubr.f32.gmra.mrb[0].mxu0 %v5352
    %v5492 = vpop.f32.mrb[0].mxu0
    %v5493 = vadd.f32 %v5314, %v5492
    %v5494 = vpop.f32.mrb[0].mxu0
    %5495 = vmatprep.mubr.f32.mxu0 0.0
    %5496 = vmatmul.mubr.f32.gmra.mrb[0].mxu0 %v5355
    %v5497 = vpop.f32.mrb[0].mxu0
    %v5498 = vadd.f32 %v5314, %v5497
    %v5499 = vpop.f32.mrb[0].mxu0
    %5500 = vmatprep.mubr.f32.mxu0 0.0
    %5501 = vmatmul.mubr.f32.gmra.mrb[0].mxu0 %v5358
    %v5502 = vpop.f32.mrb[0].mxu0
    %v5503 = vadd.f32 %v5314, %v5502
    %v5504 = vpop.f32.mrb[0].mxu0
    %5505 = vmatprep.mubr.f32.mxu0 0.0
    %5506 = vmatmul.mubr.f32.gmra.mrb[0].mxu0 %v5361
    %v5507 = vpop.f32.mrb[0].mxu0
    %v5508 = vadd.f32 %v5314, %v5507
    %v5509 = vpop.f32.mrb[0].mxu0
    %5510 = vdwg.mxu0
    %v5511 = vmax.f32 %v5433, 0.0
    %v5512 = vmax.f32 %v5438, 0.0
    %v5513 = vmax.f32 %v5443, 0.0
    %v5514 = vmax.f32 %v5448, 0.0
    %v5515 = vmax.f32 %v5453, 0.0
    %v5516 = vmax.f32 %v5458, 0.0
    %v5517 = vmax.f32 %v5463, 0.0
    %v5518 = vmax.f32 %v5468, 0.0
    %v5519 = vmax.f32 %v5473, 0.0
    %v5520 = vmax.f32 %v5478, 0.0
    %v5521 = vmax.f32 %v5483, 0.0
    %v5522 = vmax.f32 %v5488, 0.0
    %v5523 = vmax.f32 %v5493, 0.0
    %v5524 = vmax.f32 %v5498, 0.0
    %v5525 = vmax.f32 %v5503, 0.0
    %v5526 = vmax.f32 %v5508, 0.0
    %5528 = vset.pattern.permute.xlu0 0
    %5529 = vperm.xlu0 %5528, %v5511
    %v5530 = vpop.permute.xlu0 %5529
    %5533 = vset.pattern.permute.xlu0 0
    %5534 = vperm.xlu0 %5533, %v5512
    %v5535 = vpop.permute.xlu0 %5534
    %5538 = vset.pattern.permute.xlu0 0
    %5539 = vperm.xlu0 %5538, %v5513
    %v5540 = vpop.permute.xlu0 %5539
    %5543 = vset.pattern.permute.xlu0 0
    %5544 = vperm.xlu0 %5543, %v5514
    %v5545 = vpop.permute.xlu0 %5544
    %5548 = vset.pattern.permute.xlu0 0
    %5549 = vperm.xlu0 %5548, %v5515
    %v5550 = vpop.permute.xlu0 %5549
    %5553 = vset.pattern.permute.xlu0 0
    %5554 = vperm.xlu0 %5553, %v5516
    %v5555 = vpop.permute.xlu0 %5554
    %5558 = vset.pattern.permute.xlu0 0
    %5559 = vperm.xlu0 %5558, %v5517
    %v5560 = vpop.permute.xlu0 %5559
    %5563 = vset.pattern.permute.xlu0 0
    %5564 = vperm.xlu0 %5563, %v5518
    %v5565 = vpop.permute.xlu0 %5564
    %5568 = vset.pattern.permute.xlu0 0
    %5569 = vperm.xlu0 %5568, %v5519
    %v5570 = vpop.permute.xlu0 %5569
    %5573 = vset.pattern.permute.xlu0 0
    %5574 = vperm.xlu0 %5573, %v5520
    %v5575 = vpop.permute.xlu0 %5574
    %5578 = vset.pattern.permute.xlu0 0
    %5579 = vperm.xlu0 %5578, %v5521
    %v5580 = vpop.permute.xlu0 %5579
    %5583 = vset.pattern.permute.xlu0 0
    %5584 = vperm.xlu0 %5583, %v5522
    %v5585 = vpop.permute.xlu0 %5584
    %5588 = vset.pattern.permute.xlu0 0
    %5589 = vperm.xlu0 %5588, %v5523
    %v5590 = vpop.permute.xlu0 %5589
    %5593 = vset.pattern.permute.xlu0 0
    %5594 = vperm.xlu0 %5593, %v5524
    %v5595 = vpop.permute.xlu0 %5594
    %5598 = vset.pattern.permute.xlu0 0
    %5599 = vperm.xlu0 %5598, %v5525
    %v5600 = vpop.permute.xlu0 %5599
    %5603 = vset.pattern.permute.xlu0 0
    %5604 = vperm.xlu0 %5603, %v5526
    %v5605 = vpop.permute.xlu0 %5604
    %v5607 = vmul.f32 %v5530, %v78
    %v5608 = vmul.f32 %v5535, %v79
    %v5609 = vmul.f32 %v5540, %v80
    %v5610 = vmul.f32 %v5545, %v81
    %v5611 = vmul.f32 %v5550, %v82
    %v5612 = vmul.f32 %v5555, %v83
    %v5613 = vmul.f32 %v5560, %v84
    %v5614 = vmul.f32 %v5565, %v85
    %v5615 = vmul.f32 %v5570, %v86
    %v5616 = vmul.f32 %v5575, %v87
    %v5617 = vmul.f32 %v5580, %v88
    %v5618 = vmul.f32 %v5585, %v89
    %v5619 = vmul.f32 %v5590, %v90
    %v5620 = vmul.f32 %v5595, %v91
    %v5621 = vmul.f32 %v5600, %v92
    %v5622 = vmul.f32 %v5605, %v93
    %5623 = vmatprep.subr.mxu0 0.0
    %5624 = vmatpush1.msra.mxu0 %v5607
    %5625 = vmatprep.subr.mxu0 0.0
    %5626 = vmatpush1.msra.mxu0 %v5608
    %5627 = vmatprep.subr.mxu0 0.0
    %5628 = vmatpush1.msra.mxu0 %v5609
    %5629 = vmatprep.subr.mxu0 0.0
    %5630 = vmatpush1.msra.mxu0 %v5610
    %5631 = vmatprep.subr.mxu0 0.0
    %5632 = vmatpush1.msra.mxu0 %v5611
    %5633 = vmatprep.subr.mxu0 0.0
    %5634 = vmatpush1.msra.mxu0 %v5612
    %5635 = vmatprep.subr.mxu0 0.0
    %5636 = vmatpush1.msra.mxu0 %v5613
    %5637 = vmatprep.subr.mxu0 0.0
    %5638 = vmatpush1.msra.mxu0 %v5614
    %5639 = vmatprep.subr.mxu0 0.0
    %5640 = vmatpush1.msra.mxu0 %v5615
    %5641 = vmatprep.subr.mxu0 0.0
    %5642 = vmatpush1.msra.mxu0 %v5616
    %5643 = vmatprep.subr.mxu0 0.0
    %5644 = vmatpush1.msra.mxu0 %v5617
    %5645 = vmatprep.subr.mxu0 0.0
    %5646 = vmatpush1.msra.mxu0 %v5618
    %5647 = vmatprep.subr.mxu0 0.0
    %5648 = vmatpush1.msra.mxu0 %v5619
    %5649 = vmatprep.subr.mxu0 0.0
    %5650 = vmatpush1.msra.mxu0 %v5620
    %5651 = vmatprep.subr.mxu0 0.0
    %5652 = vmatpush1.msra.mxu0 %v5621
    %5653 = vmatprep.subr.mxu0 0.0
    %5654 = vmatpush1.msra.mxu0 %v5622
    %5655 = vmatprep.subr.mxu0 0.0
    %5656 = vmatpush1.msra.mxu0 0.0
    %5657 = vmatprep.subr.mxu0 0.0
    %5658 = vmatpush1.msra.mxu0 0.0
    %5659 = vmatprep.subr.mxu0 0.0
    %5660 = vmatpush1.msra.mxu0 0.0
    %5661 = vmatprep.subr.mxu0 0.0
    %5662 = vmatpush1.msra.mxu0 0.0
    %5663 = vmatprep.subr.mxu0 0.0
    %5664 = vmatpush1.msra.mxu0 0.0
    %5665 = vmatprep.subr.mxu0 0.0
    %5666 = vmatpush1.msra.mxu0 0.0
    %5667 = vmatprep.subr.mxu0 0.0
    %5668 = vmatpush1.msra.mxu0 0.0
    %5669 = vmatprep.subr.mxu0 0.0
    %5670 = vmatpush1.msra.mxu0 0.0
    %5671 = vmatprep.subr.mxu0 0.0
    %5672 = vmatpush1.msra.mxu0 0.0
    %5673 = vmatprep.subr.mxu0 0.0
    %5674 = vmatpush1.msra.mxu0 0.0
    %5675 = vmatprep.subr.mxu0 0.0
    %5676 = vmatpush1.msra.mxu0 0.0
    %5677 = vmatprep.subr.mxu0 0.0
    %5678 = vmatpush1.msra.mxu0 0.0
    %5679 = vmatprep.subr.mxu0 0.0
    %5680 = vmatpush1.msra.mxu0 0.0
    %5681 = vmatprep.subr.mxu0 0.0
    %5682 = vmatpush1.msra.mxu0 0.0
    %5683 = vmatprep.subr.mxu0 0.0
    %5684 = vmatpush1.msra.mxu0 0.0
    %5685 = vmatprep.subr.mxu0 0.0
    %5686 = vmatpush1.msra.mxu0 0.0
    %5687 = vmatprep.mubr.f32.mxu0 0.0
    %5688 = vmatmul.mubr.f32.gmra.mrb[0].mxu0 %v94
    %v5689 = vpop.f32.mrb[0].mxu0
    %v5690 = vadd.f32 0.0, %v5689
    %v5691 = vpop.f32.mrb[0].mxu0
    %5692 = vmatprep.mubr.f32.mxu0 0.0
    %5693 = vmatmul.mubr.f32.gmra.mrb[0].mxu0 %v95
    %v5694 = vpop.f32.mrb[0].mxu0
    %v5695 = vadd.f32 0.0, %v5694
    %v5696 = vpop.f32.mrb[0].mxu0
    %5697 = vdwg.mxu0
    %5698 = vst.msk [vmem:[%s18] sm:$0xff] %vm2656, %v5690
    %5699 = vst.msk [vmem:[%s18 + $0x8] sm:$0xff] %vm2656, %v5695
    // Predicated region
    $region74: #{tpu_custom_call.1} parent=1 // pred_check
      _
    $region75: #{tpu_custom_call.1} parent=1 // pred_check_branch
      %5701 = sbr.rel (0) target = $region77
    $region76: #{tpu_custom_call.1} parent=1 // pred_region
      _
    $region77: #{tpu_custom_call.1} parent=1 // pred_fallthru
      _
    // Predicated region
    $region78: #{tpu_custom_call.1} parent=1 // pred_check
      _
    $region79: #{tpu_custom_call.1} parent=1 // pred_check_branch
      %5703 = sbr.rel (0) target = $region81
    $region80: #{tpu_custom_call.1} parent=1 // pred_region
      %s5705 = ssub.s32 256, 256
      %5706 = vsyncadd [#allocation3], %s5705
      %s5707 = sshll.u32 [#allocation2], 4
      %s5708 = int_to_ptr.vmem [resolvable:$true] %s5707
      %5713 = dma.vmem_to_hbm [thread:$0]  %s5708, 256, %s19, [#allocation3], 128, 128, 8
    $region81: #{tpu_custom_call.1} parent=1 // pred_fallthru
      _
    // Predicated region
    $region82: #{tpu_custom_call.1} parent=1 // pred_check
      _
    $region83: #{tpu_custom_call.1} parent=1 // pred_check_branch
      %5715 = sbr.rel (0) target = $region85
    $region84: #{tpu_custom_call.1} parent=1 // pred_region
      _
    $region85: #{tpu_custom_call.1} parent=1 // pred_fallthru
      _
    // Predicated region
    $region86: #{tpu_custom_call.1} parent=1 // pred_check
      _
    $region87: #{tpu_custom_call.1} parent=1 // pred_check_branch
      %5717 = sbr.rel (0) target = $region89
    $region88: #{tpu_custom_call.1} parent=1 // pred_region
      %5718 = dma.done [#allocation3], 256
    $region89: #{tpu_custom_call.1} parent=1 // pred_fallthru
      _
    %5719 = vsyncpa [#allocation3], 1

</llo_original>
